<compile_context>
chip_gen: v7x
topology: tpu7x:2x2x1
jax: 0.10.0
libtpu: 0.0.40
codegen_flags: <defaults>
</compile_context>

<pallas_src>
import math
import jax
import jax.numpy as jnp
from jax.experimental import pallas as pl
from jax.experimental.pallas import tpu as pltpu  # noqa: F401  (kept for TPU-specific params if needed)

# ------------------------- small synthetic BERT config -------------------------
B = 2            # batch
S = 8            # sequence length
H = 128          # hidden size (BERT-base uses 768; scaled down)
NH = 2           # attention heads
HD = H // NH     # head dim
FF = 256         # FFN intermediate size
L = 2            # encoder layers
VOCAB = 64
TYPE_VOCAB = 2
MAX_POS = 16
EPS = 1e-12
OUT_PAD = 128    # lane-padded width for the 1-wide classifier output


def _layernorm(x, g, b):
    mu = jnp.mean(x, axis=-1, keepdims=True)
    var = jnp.mean((x - mu) ** 2, axis=-1, keepdims=True)
    return (x - mu) * jax.lax.rsqrt(var + EPS) * g + b


# --------------------------------- fused kernel ----------------------------------

def bert_fused_kernel(emb_ref, mask_ref,
                      embg_ref, embb_ref,
                      wq_ref, bq_ref, wk_ref, bk_ref, wv_ref, bv_ref,
                      wo_ref, bo_ref, ln1g_ref, ln1b_ref,
                      w1_ref, b1_ref, w2_ref, b2_ref, ln2g_ref, ln2b_ref,
                      wp_ref, bp_ref, wout_ref, bout_ref,
                      o_ref):
    # Embedding LayerNorm over all B*S rows at once (f32 math).
    x = _layernorm(emb_ref[...], embg_ref[...], embb_ref[...])      # (B*S, H)

    mask = mask_ref[...]                                            # (B, S) additive

    for l in range(L):                                              # static unroll (L=2)
        xb = x.astype(jnp.bfloat16)
        # QKV projections on all B*S rows; 1/sqrt(HD) folded into wq/bq at init.
        q = jnp.dot(xb, wq_ref[l], preferred_element_type=jnp.float32) + bq_ref[l]
        k = jnp.dot(xb, wk_ref[l], preferred_element_type=jnp.float32) + bk_ref[l]
        v = jnp.dot(xb, wv_ref[l], preferred_element_type=jnp.float32) + bv_ref[l]

        wo = wo_ref[l]                                              # (H, H) bf16
        attn_rows = []
        for b in range(B):                                          # static unroll (B=2)
            rows = slice(b * S, (b + 1) * S)
            # Broadcast the additive key mask once per batch (hoisted out of heads).
            mask_b = jnp.broadcast_to(mask[b:b + 1, :], (S, S))
            attn_b = jnp.zeros((S, H), jnp.float32)
            for h in range(NH):                                     # static unroll (NH=2)
                cols = slice(h * HD, (h + 1) * HD)
                qh = q[rows, cols].astype(jnp.bfloat16)
                kh = k[rows, cols].astype(jnp.bfloat16)
                vh = v[rows, cols].astype(jnp.bfloat16)
                s = jnp.dot(qh, kh.T, preferred_element_type=jnp.float32) + mask_b
                m = jnp.max(s, axis=-1, keepdims=True)
                e = jnp.exp(s - m)
                p = e * pl.reciprocal(jnp.sum(e, axis=-1, keepdims=True), approx=True)
                ctx_h = jnp.dot(p.astype(jnp.bfloat16), vh,
                                preferred_element_type=jnp.float32)          # (S, HD)
                # Per-head output projection via a sublane row-slice of wo:
                # avoids a 64-lane-offset concatenate + full-H concat matmul.
                attn_b = attn_b + jnp.dot(ctx_h.astype(jnp.bfloat16), wo[cols, :],
                                          preferred_element_type=jnp.float32)
            attn_rows.append(attn_b)
        attn = jnp.concatenate(attn_rows, axis=0) + bo_ref[l]                 # (B*S, H)

        x1 = _layernorm(x + attn, ln1g_ref[l], ln1b_ref[l])
        h1 = jnp.dot(x1.astype(jnp.bfloat16), w1_ref[l],
                     preferred_element_type=jnp.float32) + b1_ref[l]
        h1 = jax.nn.gelu(h1, approximate=True)  # TODO(synk): HF BERT uses exact (erf) gelu
        ffn = jnp.dot(h1.astype(jnp.bfloat16), w2_ref[l],
                      preferred_element_type=jnp.float32) + b2_ref[l]
        x = _layernorm(x1 + ffn, ln2g_ref[l], ln2b_ref[l])

    # BERT pooler on the [CLS] rows (rows 0, S, ...), tanh, Dropout(0.2)==identity
    # in eval, then final Linear(H, 1) (lane-padded to 128).
    cls = jnp.concatenate([x[b * S:b * S + 1, :] for b in range(B)], axis=0)  # (B, H)
    pooled = jnp.tanh(jnp.dot(cls.astype(jnp.bfloat16), wp_ref[...],
                              preferred_element_type=jnp.float32) + bp_ref[...])
    o_ref[...] = (jnp.dot(pooled.astype(jnp.bfloat16), wout_ref[...],
                          preferred_element_type=jnp.float32) + bout_ref[...])


# ------------------------------ parameter setup ----------------------------------

def init_params(key):
    def nrm(k, shape):
        return 0.02 * jax.random.normal(k, shape, dtype=jnp.float32)

    keys = iter(jax.random.split(key, 64))
    scale = 1.0 / math.sqrt(HD)   # folded into wq / bq

    names = ["wq", "bq", "wk", "bk", "wv", "bv", "wo", "bo",
             "ln1g", "ln1b", "w1", "b1", "w2", "b2", "ln2g", "ln2b"]
    stacks = {n: [] for n in names}
    for _ in range(L):
        stacks["wq"].append((nrm(next(keys), (H, H)) * scale).astype(jnp.bfloat16))
        stacks["bq"].append(jnp.zeros((1, H), jnp.float32) * scale)
        stacks["wk"].append(nrm(next(keys), (H, H)).astype(jnp.bfloat16))
        stacks["bk"].append(jnp.zeros((1, H), jnp.float32))
        stacks["wv"].append(nrm(next(keys), (H, H)).astype(jnp.bfloat16))
        stacks["bv"].append(jnp.zeros((1, H), jnp.float32))
        stacks["wo"].append(nrm(next(keys), (H, H)).astype(jnp.bfloat16))
        stacks["bo"].append(jnp.zeros((1, H), jnp.float32))
        stacks["ln1g"].append(jnp.ones((1, H), jnp.float32))
        stacks["ln1b"].append(jnp.zeros((1, H), jnp.float32))
        stacks["w1"].append(nrm(next(keys), (H, FF)).astype(jnp.bfloat16))
        stacks["b1"].append(jnp.zeros((1, FF), jnp.float32))
        stacks["w2"].append(nrm(next(keys), (FF, H)).astype(jnp.bfloat16))
        stacks["b2"].append(jnp.zeros((1, H), jnp.float32))
        stacks["ln2g"].append(jnp.ones((1, H), jnp.float32))
        stacks["ln2b"].append(jnp.zeros((1, H), jnp.float32))

    params = {n: jnp.stack(v, axis=0) for n, v in stacks.items()}  # leading layer axis
    params.update({
        "word_emb": nrm(next(keys), (VOCAB, H)),
        "pos_emb": nrm(next(keys), (MAX_POS, H)),
        "type_emb": nrm(next(keys), (TYPE_VOCAB, H)),
        "emb_ln_g": jnp.ones((1, H), jnp.float32),
        "emb_ln_b": jnp.zeros((1, H), jnp.float32),
        "pooler_w": nrm(next(keys), (H, H)).astype(jnp.bfloat16),
        "pooler_b": jnp.zeros((1, H), jnp.float32),
        # classifier Linear(H,1): lane-pad to 128 columns (extra cols are zero)
        "out_w": jnp.pad(nrm(next(keys), (H, 1)),
                         ((0, 0), (0, OUT_PAD - 1))).astype(jnp.bfloat16),
        "out_b": jnp.zeros((1, OUT_PAD), jnp.float32),
    })
    return params


# ------------------------------- forward pass ------------------------------------

def bert_model_forward(params, ids, mask, token_type_ids):
    # Embedding gathers (glue JAX); everything else runs in one fused Pallas kernel.
    positions = jnp.arange(S, dtype=jnp.int32)
    emb = (params["word_emb"][ids]
           + params["pos_emb"][positions][None, :, :]
           + params["type_emb"][token_type_ids]).astype(jnp.float32)
    emb2d = emb.reshape(B * S, H)                                  # (B*S, H)
    mask_add = (1.0 - mask.astype(jnp.float32)) * -1e9             # (B, S) additive mask

    out_padded = pl.pallas_call(
        bert_fused_kernel,
        out_shape=jax.ShapeDtypeStruct((B, OUT_PAD), jnp.float32),
    )(emb2d, mask_add,
      params["emb_ln_g"], params["emb_ln_b"],
      params["wq"], params["bq"], params["wk"], params["bk"],
      params["wv"], params["bv"], params["wo"], params["bo"],
      params["ln1g"], params["ln1b"], params["w1"], params["b1"],
      params["w2"], params["b2"], params["ln2g"], params["ln2b"],
      params["pooler_w"], params["pooler_b"], params["out_w"], params["out_b"])

    return out_padded[:, :1]                                       # (B, 1)


# ------------------------------------ main ---------------------------------------

if __name__ == "__main__":
    key = jax.random.PRNGKey(0)
    k_param, k_ids, k_type = jax.random.split(key, 3)

    params = init_params(k_param)

    ids = jax.random.randint(k_ids, (B, S), 0, VOCAB, dtype=jnp.int32)
    token_type_ids = jax.random.randint(k_type, (B, S), 0, TYPE_VOCAB, dtype=jnp.int32)
    # Second example has two padding positions masked out.
    mask = jnp.array([[1] * S, [1] * (S - 2) + [0, 0]], dtype=jnp.int32)

    out = bert_model_forward(params, ids, mask, token_type_ids)
    out = jax.block_until_ready(out)

    assert out.shape == (B, 1), out.shape
    assert bool(jnp.all(jnp.isfinite(out)))
    print("KERNEL_OK")
</pallas_src>

<mosaic_0001>
module attributes {stable_mosaic.version = 11 : i64} {
  func.func @bert_fused_kernel(%arg0: memref<16x128xf32, #tpu.memory_space<vmem>>, %arg1: memref<2x8xf32, #tpu.memory_space<vmem>>, %arg2: memref<1x128xf32, #tpu.memory_space<vmem>>, %arg3: memref<1x128xf32, #tpu.memory_space<vmem>>, %arg4: memref<2x128x128xbf16, #tpu.memory_space<vmem>>, %arg5: memref<2x1x128xf32, #tpu.memory_space<vmem>>, %arg6: memref<2x128x128xbf16, #tpu.memory_space<vmem>>, %arg7: memref<2x1x128xf32, #tpu.memory_space<vmem>>, %arg8: memref<2x128x128xbf16, #tpu.memory_space<vmem>>, %arg9: memref<2x1x128xf32, #tpu.memory_space<vmem>>, %arg10: memref<2x128x128xbf16, #tpu.memory_space<vmem>>, %arg11: memref<2x1x128xf32, #tpu.memory_space<vmem>>, %arg12: memref<2x1x128xf32, #tpu.memory_space<vmem>>, %arg13: memref<2x1x128xf32, #tpu.memory_space<vmem>>, %arg14: memref<2x128x256xbf16, #tpu.memory_space<vmem>>, %arg15: memref<2x1x256xf32, #tpu.memory_space<vmem>>, %arg16: memref<2x256x128xbf16, #tpu.memory_space<vmem>>, %arg17: memref<2x1x128xf32, #tpu.memory_space<vmem>>, %arg18: memref<2x1x128xf32, #tpu.memory_space<vmem>>, %arg19: memref<2x1x128xf32, #tpu.memory_space<vmem>>, %arg20: memref<128x128xbf16, #tpu.memory_space<vmem>>, %arg21: memref<1x128xf32, #tpu.memory_space<vmem>>, %arg22: memref<128x128xbf16, #tpu.memory_space<vmem>>, %arg23: memref<1x128xf32, #tpu.memory_space<vmem>>, %arg24: memref<2x128xf32, #tpu.memory_space<vmem>>) attributes {dimension_semantics = [], scalar_prefetch = 0 : i64, scratch_operands = 0 : i64, tpu.core_type = #tpu.core_type<tc>} {
    %c0 = arith.constant 0 : index
    %c0_0 = arith.constant 0 : index
    %0 = vector.load %arg0[%c0, %c0_0] : memref<16x128xf32, #tpu.memory_space<vmem>>, vector<16x128xf32>
    %c0_1 = arith.constant 0 : index
    %c0_2 = arith.constant 0 : index
    %1 = vector.load %arg2[%c0_1, %c0_2] : memref<1x128xf32, #tpu.memory_space<vmem>>, vector<1x128xf32>
    %c0_3 = arith.constant 0 : index
    %c0_4 = arith.constant 0 : index
    %2 = vector.load %arg3[%c0_3, %c0_4] : memref<1x128xf32, #tpu.memory_space<vmem>>, vector<1x128xf32>
    %cst = arith.constant dense<0.000000e+00> : vector<16xf32>
    %3 = vector.multi_reduction <add>, %0, %cst [1] : vector<16x128xf32> to vector<16xf32>
    %4 = vector.shape_cast %3 : vector<16xf32> to vector<16x1xf32>
    %cst_5 = arith.constant 1.280000e+02 : f32
    %5 = vector.broadcast %cst_5 : f32 to vector<16x1xf32>
    %6 = arith.divf %4, %5 : vector<16x1xf32>
    %7 = vector.broadcast %6 : vector<16x1xf32> to vector<16x128xf32>
    %8 = arith.subf %0, %7 : vector<16x128xf32>
    %9 = arith.mulf %8, %8 : vector<16x128xf32>
    %cst_6 = arith.constant dense<0.000000e+00> : vector<16xf32>
    %10 = vector.multi_reduction <add>, %9, %cst_6 [1] : vector<16x128xf32> to vector<16xf32>
    %11 = vector.shape_cast %10 : vector<16xf32> to vector<16x1xf32>
    %cst_7 = arith.constant 1.280000e+02 : f32
    %12 = vector.broadcast %cst_7 : f32 to vector<16x1xf32>
    %13 = arith.divf %11, %12 : vector<16x1xf32>
    %14 = vector.broadcast %6 : vector<16x1xf32> to vector<16x128xf32>
    %15 = arith.subf %0, %14 : vector<16x128xf32>
    %cst_8 = arith.constant 9.99999996E-13 : f32
    %16 = vector.broadcast %cst_8 : f32 to vector<16x1xf32>
    %17 = arith.addf %13, %16 : vector<16x1xf32>
    %18 = math.rsqrt %17 : vector<16x1xf32>
    %19 = vector.broadcast %18 : vector<16x1xf32> to vector<16x128xf32>
    %20 = arith.mulf %15, %19 : vector<16x128xf32>
    %21 = vector.broadcast %1 : vector<1x128xf32> to vector<16x128xf32>
    %22 = arith.mulf %20, %21 : vector<16x128xf32>
    %23 = vector.broadcast %2 : vector<1x128xf32> to vector<16x128xf32>
    %24 = arith.addf %22, %23 : vector<16x128xf32>
    %c0_9 = arith.constant 0 : index
    %c0_10 = arith.constant 0 : index
    %25 = vector.load %arg1[%c0_9, %c0_10] : memref<2x8xf32, #tpu.memory_space<vmem>>, vector<2x8xf32>
    %26 = arith.truncf %24 : vector<16x128xf32> to vector<16x128xbf16>
    %c0_11 = arith.constant 0 : index
    %c0_12 = arith.constant 0 : index
    %c0_13 = arith.constant 0 : index
    %27 = vector.load %arg4[%c0_11, %c0_12, %c0_13] : memref<2x128x128xbf16, #tpu.memory_space<vmem>>, vector<1x128x128xbf16>
    %28 = vector.shape_cast %27 : vector<1x128x128xbf16> to vector<128x128xbf16>
    %cst_14 = arith.constant dense<0.000000e+00> : vector<16x128xf32>
    %29 = tpu.matmul %26, %28, %cst_14 {dimension_numbers = #tpu.dot_dimension_numbers<[1], [0], [0], [1], [0, 0, 1, 1], [], []>} : vector<16x128xbf16>, vector<128x128xbf16>, vector<16x128xf32> -> vector<16x128xf32>
    %c0_15 = arith.constant 0 : index
    %c0_16 = arith.constant 0 : index
    %c0_17 = arith.constant 0 : index
    %30 = vector.load %arg5[%c0_15, %c0_16, %c0_17] : memref<2x1x128xf32, #tpu.memory_space<vmem>>, vector<1x1x128xf32>
    %31 = vector.shape_cast %30 : vector<1x1x128xf32> to vector<1x128xf32>
    %32 = vector.broadcast %31 : vector<1x128xf32> to vector<16x128xf32>
    %33 = arith.addf %29, %32 : vector<16x128xf32>
    %c0_18 = arith.constant 0 : index
    %c0_19 = arith.constant 0 : index
    %c0_20 = arith.constant 0 : index
    %34 = vector.load %arg6[%c0_18, %c0_19, %c0_20] : memref<2x128x128xbf16, #tpu.memory_space<vmem>>, vector<1x128x128xbf16>
    %35 = vector.shape_cast %34 : vector<1x128x128xbf16> to vector<128x128xbf16>
    %cst_21 = arith.constant dense<0.000000e+00> : vector<16x128xf32>
    %36 = tpu.matmul %26, %35, %cst_21 {dimension_numbers = #tpu.dot_dimension_numbers<[1], [0], [0], [1], [0, 0, 1, 1], [], []>} : vector<16x128xbf16>, vector<128x128xbf16>, vector<16x128xf32> -> vector<16x128xf32>
    %c0_22 = arith.constant 0 : index
    %c0_23 = arith.constant 0 : index
    %c0_24 = arith.constant 0 : index
    %37 = vector.load %arg7[%c0_22, %c0_23, %c0_24] : memref<2x1x128xf32, #tpu.memory_space<vmem>>, vector<1x1x128xf32>
    %38 = vector.shape_cast %37 : vector<1x1x128xf32> to vector<1x128xf32>
    %39 = vector.broadcast %38 : vector<1x128xf32> to vector<16x128xf32>
    %40 = arith.addf %36, %39 : vector<16x128xf32>
    %c0_25 = arith.constant 0 : index
    %c0_26 = arith.constant 0 : index
    %c0_27 = arith.constant 0 : index
    %41 = vector.load %arg8[%c0_25, %c0_26, %c0_27] : memref<2x128x128xbf16, #tpu.memory_space<vmem>>, vector<1x128x128xbf16>
    %42 = vector.shape_cast %41 : vector<1x128x128xbf16> to vector<128x128xbf16>
    %cst_28 = arith.constant dense<0.000000e+00> : vector<16x128xf32>
    %43 = tpu.matmul %26, %42, %cst_28 {dimension_numbers = #tpu.dot_dimension_numbers<[1], [0], [0], [1], [0, 0, 1, 1], [], []>} : vector<16x128xbf16>, vector<128x128xbf16>, vector<16x128xf32> -> vector<16x128xf32>
    %c0_29 = arith.constant 0 : index
    %c0_30 = arith.constant 0 : index
    %c0_31 = arith.constant 0 : index
    %44 = vector.load %arg9[%c0_29, %c0_30, %c0_31] : memref<2x1x128xf32, #tpu.memory_space<vmem>>, vector<1x1x128xf32>
    %45 = vector.shape_cast %44 : vector<1x1x128xf32> to vector<1x128xf32>
    %46 = vector.broadcast %45 : vector<1x128xf32> to vector<16x128xf32>
    %47 = arith.addf %43, %46 : vector<16x128xf32>
    %c0_32 = arith.constant 0 : index
    %c0_33 = arith.constant 0 : index
    %c0_34 = arith.constant 0 : index
    %48 = vector.load %arg10[%c0_32, %c0_33, %c0_34] : memref<2x128x128xbf16, #tpu.memory_space<vmem>>, vector<1x128x128xbf16>
    %49 = vector.shape_cast %48 : vector<1x128x128xbf16> to vector<128x128xbf16>
    %50 = vector.extract_strided_slice %25 {offsets = [0, 0], sizes = [1, 8], strides = [1, 1]} : vector<2x8xf32> to vector<1x8xf32>
    %51 = vector.shape_cast %50 : vector<1x8xf32> to vector<1x8xf32>
    %52 = vector.broadcast %51 : vector<1x8xf32> to vector<8x8xf32>
    %cst_35 = arith.constant 0.000000e+00 : f32
    %53 = vector.broadcast %cst_35 : f32 to vector<8x128xf32>
    %54 = vector.extract_strided_slice %33 {offsets = [0, 0], sizes = [8, 64], strides = [1, 1]} : vector<16x128xf32> to vector<8x64xf32>
    %55 = arith.truncf %54 : vector<8x64xf32> to vector<8x64xbf16>
    %56 = vector.extract_strided_slice %40 {offsets = [0, 0], sizes = [8, 64], strides = [1, 1]} : vector<16x128xf32> to vector<8x64xf32>
    %57 = arith.truncf %56 : vector<8x64xf32> to vector<8x64xbf16>
    %58 = vector.extract_strided_slice %47 {offsets = [0, 0], sizes = [8, 64], strides = [1, 1]} : vector<16x128xf32> to vector<8x64xf32>
    %59 = arith.truncf %58 : vector<8x64xf32> to vector<8x64xbf16>
    %60 = tpu.transpose %57, [1, 0] : vector<8x64xbf16> -> vector<64x8xbf16>
    %cst_36 = arith.constant dense<0.000000e+00> : vector<8x8xf32>
    %61 = tpu.matmul %55, %60, %cst_36 {dimension_numbers = #tpu.dot_dimension_numbers<[1], [0], [0], [1], [0, 0, 1, 1], [], []>} : vector<8x64xbf16>, vector<64x8xbf16>, vector<8x8xf32> -> vector<8x8xf32>
    %62 = arith.addf %61, %52 : vector<8x8xf32>
    %cst_37 = arith.constant dense<0xFF800000> : vector<8xf32>
    %63 = vector.multi_reduction <maximumf>, %62, %cst_37 [1] : vector<8x8xf32> to vector<8xf32>
    %64 = vector.shape_cast %63 : vector<8xf32> to vector<8x1xf32>
    %65 = vector.broadcast %64 : vector<8x1xf32> to vector<8x8xf32>
    %66 = arith.subf %62, %65 : vector<8x8xf32>
    %67 = math.exp %66 : vector<8x8xf32>
    %cst_38 = arith.constant dense<0.000000e+00> : vector<8xf32>
    %68 = vector.multi_reduction <add>, %67, %cst_38 [1] : vector<8x8xf32> to vector<8xf32>
    %69 = vector.shape_cast %68 : vector<8xf32> to vector<8x1xf32>
    %70 = tpu.reciprocal %69 {approx = true} : vector<8x1xf32> -> vector<8x1xf32>
    %71 = vector.broadcast %70 : vector<8x1xf32> to vector<8x8xf32>
    %72 = arith.mulf %67, %71 : vector<8x8xf32>
    %73 = arith.truncf %72 : vector<8x8xf32> to vector<8x8xbf16>
    %cst_39 = arith.constant dense<0.000000e+00> : vector<8x64xf32>
    %74 = tpu.matmul %73, %59, %cst_39 {dimension_numbers = #tpu.dot_dimension_numbers<[1], [0], [0], [1], [0, 0, 1, 1], [], []>} : vector<8x8xbf16>, vector<8x64xbf16>, vector<8x64xf32> -> vector<8x64xf32>
    %75 = arith.truncf %74 : vector<8x64xf32> to vector<8x64xbf16>
    %76 = vector.extract_strided_slice %49 {offsets = [0, 0], sizes = [64, 128], strides = [1, 1]} : vector<128x128xbf16> to vector<64x128xbf16>
    %cst_40 = arith.constant dense<0.000000e+00> : vector<8x128xf32>
    %77 = tpu.matmul %75, %76, %cst_40 {dimension_numbers = #tpu.dot_dimension_numbers<[1], [0], [0], [1], [0, 0, 1, 1], [], []>} : vector<8x64xbf16>, vector<64x128xbf16>, vector<8x128xf32> -> vector<8x128xf32>
    %78 = arith.addf %53, %77 : vector<8x128xf32>
    %79 = vector.extract_strided_slice %33 {offsets = [0, 64], sizes = [8, 64], strides = [1, 1]} : vector<16x128xf32> to vector<8x64xf32>
    %80 = arith.truncf %79 : vector<8x64xf32> to vector<8x64xbf16>
    %81 = vector.extract_strided_slice %40 {offsets = [0, 64], sizes = [8, 64], strides = [1, 1]} : vector<16x128xf32> to vector<8x64xf32>
    %82 = arith.truncf %81 : vector<8x64xf32> to vector<8x64xbf16>
    %83 = vector.extract_strided_slice %47 {offsets = [0, 64], sizes = [8, 64], strides = [1, 1]} : vector<16x128xf32> to vector<8x64xf32>
    %84 = arith.truncf %83 : vector<8x64xf32> to vector<8x64xbf16>
    %85 = tpu.transpose %82, [1, 0] : vector<8x64xbf16> -> vector<64x8xbf16>
    %cst_41 = arith.constant dense<0.000000e+00> : vector<8x8xf32>
    %86 = tpu.matmul %80, %85, %cst_41 {dimension_numbers = #tpu.dot_dimension_numbers<[1], [0], [0], [1], [0, 0, 1, 1], [], []>} : vector<8x64xbf16>, vector<64x8xbf16>, vector<8x8xf32> -> vector<8x8xf32>
    %87 = arith.addf %86, %52 : vector<8x8xf32>
    %cst_42 = arith.constant dense<0xFF800000> : vector<8xf32>
    %88 = vector.multi_reduction <maximumf>, %87, %cst_42 [1] : vector<8x8xf32> to vector<8xf32>
    %89 = vector.shape_cast %88 : vector<8xf32> to vector<8x1xf32>
    %90 = vector.broadcast %89 : vector<8x1xf32> to vector<8x8xf32>
    %91 = arith.subf %87, %90 : vector<8x8xf32>
    %92 = math.exp %91 : vector<8x8xf32>
    %cst_43 = arith.constant dense<0.000000e+00> : vector<8xf32>
    %93 = vector.multi_reduction <add>, %92, %cst_43 [1] : vector<8x8xf32> to vector<8xf32>
    %94 = vector.shape_cast %93 : vector<8xf32> to vector<8x1xf32>
    %95 = tpu.reciprocal %94 {approx = true} : vector<8x1xf32> -> vector<8x1xf32>
    %96 = vector.broadcast %95 : vector<8x1xf32> to vector<8x8xf32>
    %97 = arith.mulf %92, %96 : vector<8x8xf32>
    %98 = arith.truncf %97 : vector<8x8xf32> to vector<8x8xbf16>
    %cst_44 = arith.constant dense<0.000000e+00> : vector<8x64xf32>
    %99 = tpu.matmul %98, %84, %cst_44 {dimension_numbers = #tpu.dot_dimension_numbers<[1], [0], [0], [1], [0, 0, 1, 1], [], []>} : vector<8x8xbf16>, vector<8x64xbf16>, vector<8x64xf32> -> vector<8x64xf32>
    %100 = arith.truncf %99 : vector<8x64xf32> to vector<8x64xbf16>
    %101 = vector.extract_strided_slice %49 {offsets = [64, 0], sizes = [64, 128], strides = [1, 1]} : vector<128x128xbf16> to vector<64x128xbf16>
    %cst_45 = arith.constant dense<0.000000e+00> : vector<8x128xf32>
    %102 = tpu.matmul %100, %101, %cst_45 {dimension_numbers = #tpu.dot_dimension_numbers<[1], [0], [0], [1], [0, 0, 1, 1], [], []>} : vector<8x64xbf16>, vector<64x128xbf16>, vector<8x128xf32> -> vector<8x128xf32>
    %103 = arith.addf %78, %102 : vector<8x128xf32>
    %104 = vector.extract_strided_slice %25 {offsets = [1, 0], sizes = [1, 8], strides = [1, 1]} : vector<2x8xf32> to vector<1x8xf32>
    %105 = vector.shape_cast %104 : vector<1x8xf32> to vector<1x8xf32>
    %106 = vector.broadcast %105 : vector<1x8xf32> to vector<8x8xf32>
    %cst_46 = arith.constant 0.000000e+00 : f32
    %107 = vector.broadcast %cst_46 : f32 to vector<8x128xf32>
    %108 = vector.extract_strided_slice %33 {offsets = [8, 0], sizes = [8, 64], strides = [1, 1]} : vector<16x128xf32> to vector<8x64xf32>
    %109 = arith.truncf %108 : vector<8x64xf32> to vector<8x64xbf16>
    %110 = vector.extract_strided_slice %40 {offsets = [8, 0], sizes = [8, 64], strides = [1, 1]} : vector<16x128xf32> to vector<8x64xf32>
    %111 = arith.truncf %110 : vector<8x64xf32> to vector<8x64xbf16>
    %112 = vector.extract_strided_slice %47 {offsets = [8, 0], sizes = [8, 64], strides = [1, 1]} : vector<16x128xf32> to vector<8x64xf32>
    %113 = arith.truncf %112 : vector<8x64xf32> to vector<8x64xbf16>
    %114 = tpu.transpose %111, [1, 0] : vector<8x64xbf16> -> vector<64x8xbf16>
    %cst_47 = arith.constant dense<0.000000e+00> : vector<8x8xf32>
    %115 = tpu.matmul %109, %114, %cst_47 {dimension_numbers = #tpu.dot_dimension_numbers<[1], [0], [0], [1], [0, 0, 1, 1], [], []>} : vector<8x64xbf16>, vector<64x8xbf16>, vector<8x8xf32> -> vector<8x8xf32>
    %116 = arith.addf %115, %106 : vector<8x8xf32>
    %cst_48 = arith.constant dense<0xFF800000> : vector<8xf32>
    %117 = vector.multi_reduction <maximumf>, %116, %cst_48 [1] : vector<8x8xf32> to vector<8xf32>
    %118 = vector.shape_cast %117 : vector<8xf32> to vector<8x1xf32>
    %119 = vector.broadcast %118 : vector<8x1xf32> to vector<8x8xf32>
    %120 = arith.subf %116, %119 : vector<8x8xf32>
    %121 = math.exp %120 : vector<8x8xf32>
    %cst_49 = arith.constant dense<0.000000e+00> : vector<8xf32>
    %122 = vector.multi_reduction <add>, %121, %cst_49 [1] : vector<8x8xf32> to vector<8xf32>
    %123 = vector.shape_cast %122 : vector<8xf32> to vector<8x1xf32>
    %124 = tpu.reciprocal %123 {approx = true} : vector<8x1xf32> -> vector<8x1xf32>
    %125 = vector.broadcast %124 : vector<8x1xf32> to vector<8x8xf32>
    %126 = arith.mulf %121, %125 : vector<8x8xf32>
    %127 = arith.truncf %126 : vector<8x8xf32> to vector<8x8xbf16>
    %cst_50 = arith.constant dense<0.000000e+00> : vector<8x64xf32>
    %128 = tpu.matmul %127, %113, %cst_50 {dimension_numbers = #tpu.dot_dimension_numbers<[1], [0], [0], [1], [0, 0, 1, 1], [], []>} : vector<8x8xbf16>, vector<8x64xbf16>, vector<8x64xf32> -> vector<8x64xf32>
    %129 = arith.truncf %128 : vector<8x64xf32> to vector<8x64xbf16>
    %130 = vector.extract_strided_slice %49 {offsets = [0, 0], sizes = [64, 128], strides = [1, 1]} : vector<128x128xbf16> to vector<64x128xbf16>
    %cst_51 = arith.constant dense<0.000000e+00> : vector<8x128xf32>
    %131 = tpu.matmul %129, %130, %cst_51 {dimension_numbers = #tpu.dot_dimension_numbers<[1], [0], [0], [1], [0, 0, 1, 1], [], []>} : vector<8x64xbf16>, vector<64x128xbf16>, vector<8x128xf32> -> vector<8x128xf32>
    %132 = arith.addf %107, %131 : vector<8x128xf32>
    %133 = vector.extract_strided_slice %33 {offsets = [8, 64], sizes = [8, 64], strides = [1, 1]} : vector<16x128xf32> to vector<8x64xf32>
    %134 = arith.truncf %133 : vector<8x64xf32> to vector<8x64xbf16>
    %135 = vector.extract_strided_slice %40 {offsets = [8, 64], sizes = [8, 64], strides = [1, 1]} : vector<16x128xf32> to vector<8x64xf32>
    %136 = arith.truncf %135 : vector<8x64xf32> to vector<8x64xbf16>
    %137 = vector.extract_strided_slice %47 {offsets = [8, 64], sizes = [8, 64], strides = [1, 1]} : vector<16x128xf32> to vector<8x64xf32>
    %138 = arith.truncf %137 : vector<8x64xf32> to vector<8x64xbf16>
    %139 = tpu.transpose %136, [1, 0] : vector<8x64xbf16> -> vector<64x8xbf16>
    %cst_52 = arith.constant dense<0.000000e+00> : vector<8x8xf32>
    %140 = tpu.matmul %134, %139, %cst_52 {dimension_numbers = #tpu.dot_dimension_numbers<[1], [0], [0], [1], [0, 0, 1, 1], [], []>} : vector<8x64xbf16>, vector<64x8xbf16>, vector<8x8xf32> -> vector<8x8xf32>
    %141 = arith.addf %140, %106 : vector<8x8xf32>
    %cst_53 = arith.constant dense<0xFF800000> : vector<8xf32>
    %142 = vector.multi_reduction <maximumf>, %141, %cst_53 [1] : vector<8x8xf32> to vector<8xf32>
    %143 = vector.shape_cast %142 : vector<8xf32> to vector<8x1xf32>
    %144 = vector.broadcast %143 : vector<8x1xf32> to vector<8x8xf32>
    %145 = arith.subf %141, %144 : vector<8x8xf32>
    %146 = math.exp %145 : vector<8x8xf32>
    %cst_54 = arith.constant dense<0.000000e+00> : vector<8xf32>
    %147 = vector.multi_reduction <add>, %146, %cst_54 [1] : vector<8x8xf32> to vector<8xf32>
    %148 = vector.shape_cast %147 : vector<8xf32> to vector<8x1xf32>
    %149 = tpu.reciprocal %148 {approx = true} : vector<8x1xf32> -> vector<8x1xf32>
    %150 = vector.broadcast %149 : vector<8x1xf32> to vector<8x8xf32>
    %151 = arith.mulf %146, %150 : vector<8x8xf32>
    %152 = arith.truncf %151 : vector<8x8xf32> to vector<8x8xbf16>
    %cst_55 = arith.constant dense<0.000000e+00> : vector<8x64xf32>
    %153 = tpu.matmul %152, %138, %cst_55 {dimension_numbers = #tpu.dot_dimension_numbers<[1], [0], [0], [1], [0, 0, 1, 1], [], []>} : vector<8x8xbf16>, vector<8x64xbf16>, vector<8x64xf32> -> vector<8x64xf32>
    %154 = arith.truncf %153 : vector<8x64xf32> to vector<8x64xbf16>
    %155 = vector.extract_strided_slice %49 {offsets = [64, 0], sizes = [64, 128], strides = [1, 1]} : vector<128x128xbf16> to vector<64x128xbf16>
    %cst_56 = arith.constant dense<0.000000e+00> : vector<8x128xf32>
    %156 = tpu.matmul %154, %155, %cst_56 {dimension_numbers = #tpu.dot_dimension_numbers<[1], [0], [0], [1], [0, 0, 1, 1], [], []>} : vector<8x64xbf16>, vector<64x128xbf16>, vector<8x128xf32> -> vector<8x128xf32>
    %157 = arith.addf %132, %156 : vector<8x128xf32>
    %158 = tpu.concatenate %103, %157 in 0 : vector<8x128xf32>, vector<8x128xf32> -> vector<16x128xf32>
    %c0_57 = arith.constant 0 : index
    %c0_58 = arith.constant 0 : index
    %c0_59 = arith.constant 0 : index
    %159 = vector.load %arg11[%c0_57, %c0_58, %c0_59] : memref<2x1x128xf32, #tpu.memory_space<vmem>>, vector<1x1x128xf32>
    %160 = vector.shape_cast %159 : vector<1x1x128xf32> to vector<1x128xf32>
    %161 = vector.broadcast %160 : vector<1x128xf32> to vector<16x128xf32>
    %162 = arith.addf %158, %161 : vector<16x128xf32>
    %163 = arith.addf %24, %162 : vector<16x128xf32>
    %c0_60 = arith.constant 0 : index
    %c0_61 = arith.constant 0 : index
    %c0_62 = arith.constant 0 : index
    %164 = vector.load %arg12[%c0_60, %c0_61, %c0_62] : memref<2x1x128xf32, #tpu.memory_space<vmem>>, vector<1x1x128xf32>
    %165 = vector.shape_cast %164 : vector<1x1x128xf32> to vector<1x128xf32>
    %c0_63 = arith.constant 0 : index
    %c0_64 = arith.constant 0 : index
    %c0_65 = arith.constant 0 : index
    %166 = vector.load %arg13[%c0_63, %c0_64, %c0_65] : memref<2x1x128xf32, #tpu.memory_space<vmem>>, vector<1x1x128xf32>
    %167 = vector.shape_cast %166 : vector<1x1x128xf32> to vector<1x128xf32>
    %cst_66 = arith.constant dense<0.000000e+00> : vector<16xf32>
    %168 = vector.multi_reduction <add>, %163, %cst_66 [1] : vector<16x128xf32> to vector<16xf32>
    %169 = vector.shape_cast %168 : vector<16xf32> to vector<16x1xf32>
    %cst_67 = arith.constant 1.280000e+02 : f32
    %170 = vector.broadcast %cst_67 : f32 to vector<16x1xf32>
    %171 = arith.divf %169, %170 : vector<16x1xf32>
    %172 = vector.broadcast %171 : vector<16x1xf32> to vector<16x128xf32>
    %173 = arith.subf %163, %172 : vector<16x128xf32>
    %174 = arith.mulf %173, %173 : vector<16x128xf32>
    %cst_68 = arith.constant dense<0.000000e+00> : vector<16xf32>
    %175 = vector.multi_reduction <add>, %174, %cst_68 [1] : vector<16x128xf32> to vector<16xf32>
    %176 = vector.shape_cast %175 : vector<16xf32> to vector<16x1xf32>
    %cst_69 = arith.constant 1.280000e+02 : f32
    %177 = vector.broadcast %cst_69 : f32 to vector<16x1xf32>
    %178 = arith.divf %176, %177 : vector<16x1xf32>
    %179 = vector.broadcast %171 : vector<16x1xf32> to vector<16x128xf32>
    %180 = arith.subf %163, %179 : vector<16x128xf32>
    %cst_70 = arith.constant 9.99999996E-13 : f32
    %181 = vector.broadcast %cst_70 : f32 to vector<16x1xf32>
    %182 = arith.addf %178, %181 : vector<16x1xf32>
    %183 = math.rsqrt %182 : vector<16x1xf32>
    %184 = vector.broadcast %183 : vector<16x1xf32> to vector<16x128xf32>
    %185 = arith.mulf %180, %184 : vector<16x128xf32>
    %186 = vector.broadcast %165 : vector<1x128xf32> to vector<16x128xf32>
    %187 = arith.mulf %185, %186 : vector<16x128xf32>
    %188 = vector.broadcast %167 : vector<1x128xf32> to vector<16x128xf32>
    %189 = arith.addf %187, %188 : vector<16x128xf32>
    %190 = arith.truncf %189 : vector<16x128xf32> to vector<16x128xbf16>
    %c0_71 = arith.constant 0 : index
    %c0_72 = arith.constant 0 : index
    %c0_73 = arith.constant 0 : index
    %191 = vector.load %arg14[%c0_71, %c0_72, %c0_73] : memref<2x128x256xbf16, #tpu.memory_space<vmem>>, vector<1x128x256xbf16>
    %192 = vector.shape_cast %191 : vector<1x128x256xbf16> to vector<128x256xbf16>
    %cst_74 = arith.constant dense<0.000000e+00> : vector<16x256xf32>
    %193 = tpu.matmul %190, %192, %cst_74 {dimension_numbers = #tpu.dot_dimension_numbers<[1], [0], [0], [1], [0, 0, 1, 1], [], []>} : vector<16x128xbf16>, vector<128x256xbf16>, vector<16x256xf32> -> vector<16x256xf32>
    %c0_75 = arith.constant 0 : index
    %c0_76 = arith.constant 0 : index
    %c0_77 = arith.constant 0 : index
    %194 = vector.load %arg15[%c0_75, %c0_76, %c0_77] : memref<2x1x256xf32, #tpu.memory_space<vmem>>, vector<1x1x256xf32>
    %195 = vector.shape_cast %194 : vector<1x1x256xf32> to vector<1x256xf32>
    %196 = vector.broadcast %195 : vector<1x256xf32> to vector<16x256xf32>
    %197 = arith.addf %193, %196 : vector<16x256xf32>
    %198 = arith.mulf %197, %197 : vector<16x256xf32>
    %199 = arith.mulf %197, %198 : vector<16x256xf32>
    %cst_78 = arith.constant 4.471500e-02 : f32
    %200 = vector.broadcast %cst_78 : f32 to vector<16x256xf32>
    %201 = arith.mulf %200, %199 : vector<16x256xf32>
    %202 = arith.addf %197, %201 : vector<16x256xf32>
    %cst_79 = arith.constant 0.797884583 : f32
    %203 = vector.broadcast %cst_79 : f32 to vector<16x256xf32>
    %204 = arith.mulf %203, %202 : vector<16x256xf32>
    %205 = math.tanh %204 : vector<16x256xf32>
    %cst_80 = arith.constant 1.000000e+00 : f32
    %206 = vector.broadcast %cst_80 : f32 to vector<16x256xf32>
    %207 = arith.addf %206, %205 : vector<16x256xf32>
    %cst_81 = arith.constant 5.000000e-01 : f32
    %208 = vector.broadcast %cst_81 : f32 to vector<16x256xf32>
    %209 = arith.mulf %208, %207 : vector<16x256xf32>
    %210 = arith.mulf %197, %209 : vector<16x256xf32>
    %211 = arith.truncf %210 : vector<16x256xf32> to vector<16x256xbf16>
    %c0_82 = arith.constant 0 : index
    %c0_83 = arith.constant 0 : index
    %c0_84 = arith.constant 0 : index
    %212 = vector.load %arg16[%c0_82, %c0_83, %c0_84] : memref<2x256x128xbf16, #tpu.memory_space<vmem>>, vector<1x256x128xbf16>
    %213 = vector.shape_cast %212 : vector<1x256x128xbf16> to vector<256x128xbf16>
    %cst_85 = arith.constant dense<0.000000e+00> : vector<16x128xf32>
    %214 = tpu.matmul %211, %213, %cst_85 {dimension_numbers = #tpu.dot_dimension_numbers<[1], [0], [0], [1], [0, 0, 1, 1], [], []>} : vector<16x256xbf16>, vector<256x128xbf16>, vector<16x128xf32> -> vector<16x128xf32>
    %c0_86 = arith.constant 0 : index
    %c0_87 = arith.constant 0 : index
    %c0_88 = arith.constant 0 : index
    %215 = vector.load %arg17[%c0_86, %c0_87, %c0_88] : memref<2x1x128xf32, #tpu.memory_space<vmem>>, vector<1x1x128xf32>
    %216 = vector.shape_cast %215 : vector<1x1x128xf32> to vector<1x128xf32>
    %217 = vector.broadcast %216 : vector<1x128xf32> to vector<16x128xf32>
    %218 = arith.addf %214, %217 : vector<16x128xf32>
    %219 = arith.addf %189, %218 : vector<16x128xf32>
    %c0_89 = arith.constant 0 : index
    %c0_90 = arith.constant 0 : index
    %c0_91 = arith.constant 0 : index
    %220 = vector.load %arg18[%c0_89, %c0_90, %c0_91] : memref<2x1x128xf32, #tpu.memory_space<vmem>>, vector<1x1x128xf32>
    %221 = vector.shape_cast %220 : vector<1x1x128xf32> to vector<1x128xf32>
    %c0_92 = arith.constant 0 : index
    %c0_93 = arith.constant 0 : index
    %c0_94 = arith.constant 0 : index
    %222 = vector.load %arg19[%c0_92, %c0_93, %c0_94] : memref<2x1x128xf32, #tpu.memory_space<vmem>>, vector<1x1x128xf32>
    %223 = vector.shape_cast %222 : vector<1x1x128xf32> to vector<1x128xf32>
    %cst_95 = arith.constant dense<0.000000e+00> : vector<16xf32>
    %224 = vector.multi_reduction <add>, %219, %cst_95 [1] : vector<16x128xf32> to vector<16xf32>
    %225 = vector.shape_cast %224 : vector<16xf32> to vector<16x1xf32>
    %cst_96 = arith.constant 1.280000e+02 : f32
    %226 = vector.broadcast %cst_96 : f32 to vector<16x1xf32>
    %227 = arith.divf %225, %226 : vector<16x1xf32>
    %228 = vector.broadcast %227 : vector<16x1xf32> to vector<16x128xf32>
    %229 = arith.subf %219, %228 : vector<16x128xf32>
    %230 = arith.mulf %229, %229 : vector<16x128xf32>
    %cst_97 = arith.constant dense<0.000000e+00> : vector<16xf32>
    %231 = vector.multi_reduction <add>, %230, %cst_97 [1] : vector<16x128xf32> to vector<16xf32>
    %232 = vector.shape_cast %231 : vector<16xf32> to vector<16x1xf32>
    %cst_98 = arith.constant 1.280000e+02 : f32
    %233 = vector.broadcast %cst_98 : f32 to vector<16x1xf32>
    %234 = arith.divf %232, %233 : vector<16x1xf32>
    %235 = vector.broadcast %227 : vector<16x1xf32> to vector<16x128xf32>
    %236 = arith.subf %219, %235 : vector<16x128xf32>
    %cst_99 = arith.constant 9.99999996E-13 : f32
    %237 = vector.broadcast %cst_99 : f32 to vector<16x1xf32>
    %238 = arith.addf %234, %237 : vector<16x1xf32>
    %239 = math.rsqrt %238 : vector<16x1xf32>
    %240 = vector.broadcast %239 : vector<16x1xf32> to vector<16x128xf32>
    %241 = arith.mulf %236, %240 : vector<16x128xf32>
    %242 = vector.broadcast %221 : vector<1x128xf32> to vector<16x128xf32>
    %243 = arith.mulf %241, %242 : vector<16x128xf32>
    %244 = vector.broadcast %223 : vector<1x128xf32> to vector<16x128xf32>
    %245 = arith.addf %243, %244 : vector<16x128xf32>
    %246 = arith.truncf %245 : vector<16x128xf32> to vector<16x128xbf16>
    %c1 = arith.constant 1 : index
    %c0_100 = arith.constant 0 : index
    %c0_101 = arith.constant 0 : index
    %247 = vector.load %arg4[%c1, %c0_100, %c0_101] : memref<2x128x128xbf16, #tpu.memory_space<vmem>>, vector<1x128x128xbf16>
    %248 = vector.shape_cast %247 : vector<1x128x128xbf16> to vector<128x128xbf16>
    %cst_102 = arith.constant dense<0.000000e+00> : vector<16x128xf32>
    %249 = tpu.matmul %246, %248, %cst_102 {dimension_numbers = #tpu.dot_dimension_numbers<[1], [0], [0], [1], [0, 0, 1, 1], [], []>} : vector<16x128xbf16>, vector<128x128xbf16>, vector<16x128xf32> -> vector<16x128xf32>
    %c1_103 = arith.constant 1 : index
    %c0_104 = arith.constant 0 : index
    %c0_105 = arith.constant 0 : index
    %250 = vector.load %arg5[%c1_103, %c0_104, %c0_105] : memref<2x1x128xf32, #tpu.memory_space<vmem>>, vector<1x1x128xf32>
    %251 = vector.shape_cast %250 : vector<1x1x128xf32> to vector<1x128xf32>
    %252 = vector.broadcast %251 : vector<1x128xf32> to vector<16x128xf32>
    %253 = arith.addf %249, %252 : vector<16x128xf32>
    %c1_106 = arith.constant 1 : index
    %c0_107 = arith.constant 0 : index
    %c0_108 = arith.constant 0 : index
    %254 = vector.load %arg6[%c1_106, %c0_107, %c0_108] : memref<2x128x128xbf16, #tpu.memory_space<vmem>>, vector<1x128x128xbf16>
    %255 = vector.shape_cast %254 : vector<1x128x128xbf16> to vector<128x128xbf16>
    %cst_109 = arith.constant dense<0.000000e+00> : vector<16x128xf32>
    %256 = tpu.matmul %246, %255, %cst_109 {dimension_numbers = #tpu.dot_dimension_numbers<[1], [0], [0], [1], [0, 0, 1, 1], [], []>} : vector<16x128xbf16>, vector<128x128xbf16>, vector<16x128xf32> -> vector<16x128xf32>
    %c1_110 = arith.constant 1 : index
    %c0_111 = arith.constant 0 : index
    %c0_112 = arith.constant 0 : index
    %257 = vector.load %arg7[%c1_110, %c0_111, %c0_112] : memref<2x1x128xf32, #tpu.memory_space<vmem>>, vector<1x1x128xf32>
    %258 = vector.shape_cast %257 : vector<1x1x128xf32> to vector<1x128xf32>
    %259 = vector.broadcast %258 : vector<1x128xf32> to vector<16x128xf32>
    %260 = arith.addf %256, %259 : vector<16x128xf32>
    %c1_113 = arith.constant 1 : index
    %c0_114 = arith.constant 0 : index
    %c0_115 = arith.constant 0 : index
    %261 = vector.load %arg8[%c1_113, %c0_114, %c0_115] : memref<2x128x128xbf16, #tpu.memory_space<vmem>>, vector<1x128x128xbf16>
    %262 = vector.shape_cast %261 : vector<1x128x128xbf16> to vector<128x128xbf16>
    %cst_116 = arith.constant dense<0.000000e+00> : vector<16x128xf32>
    %263 = tpu.matmul %246, %262, %cst_116 {dimension_numbers = #tpu.dot_dimension_numbers<[1], [0], [0], [1], [0, 0, 1, 1], [], []>} : vector<16x128xbf16>, vector<128x128xbf16>, vector<16x128xf32> -> vector<16x128xf32>
    %c1_117 = arith.constant 1 : index
    %c0_118 = arith.constant 0 : index
    %c0_119 = arith.constant 0 : index
    %264 = vector.load %arg9[%c1_117, %c0_118, %c0_119] : memref<2x1x128xf32, #tpu.memory_space<vmem>>, vector<1x1x128xf32>
    %265 = vector.shape_cast %264 : vector<1x1x128xf32> to vector<1x128xf32>
    %266 = vector.broadcast %265 : vector<1x128xf32> to vector<16x128xf32>
    %267 = arith.addf %263, %266 : vector<16x128xf32>
    %c1_120 = arith.constant 1 : index
    %c0_121 = arith.constant 0 : index
    %c0_122 = arith.constant 0 : index
    %268 = vector.load %arg10[%c1_120, %c0_121, %c0_122] : memref<2x128x128xbf16, #tpu.memory_space<vmem>>, vector<1x128x128xbf16>
    %269 = vector.shape_cast %268 : vector<1x128x128xbf16> to vector<128x128xbf16>
    %270 = vector.extract_strided_slice %25 {offsets = [0, 0], sizes = [1, 8], strides = [1, 1]} : vector<2x8xf32> to vector<1x8xf32>
    %271 = vector.shape_cast %270 : vector<1x8xf32> to vector<1x8xf32>
    %272 = vector.broadcast %271 : vector<1x8xf32> to vector<8x8xf32>
    %cst_123 = arith.constant 0.000000e+00 : f32
    %273 = vector.broadcast %cst_123 : f32 to vector<8x128xf32>
    %274 = vector.extract_strided_slice %253 {offsets = [0, 0], sizes = [8, 64], strides = [1, 1]} : vector<16x128xf32> to vector<8x64xf32>
    %275 = arith.truncf %274 : vector<8x64xf32> to vector<8x64xbf16>
    %276 = vector.extract_strided_slice %260 {offsets = [0, 0], sizes = [8, 64], strides = [1, 1]} : vector<16x128xf32> to vector<8x64xf32>
    %277 = arith.truncf %276 : vector<8x64xf32> to vector<8x64xbf16>
    %278 = vector.extract_strided_slice %267 {offsets = [0, 0], sizes = [8, 64], strides = [1, 1]} : vector<16x128xf32> to vector<8x64xf32>
    %279 = arith.truncf %278 : vector<8x64xf32> to vector<8x64xbf16>
    %280 = tpu.transpose %277, [1, 0] : vector<8x64xbf16> -> vector<64x8xbf16>
    %cst_124 = arith.constant dense<0.000000e+00> : vector<8x8xf32>
    %281 = tpu.matmul %275, %280, %cst_124 {dimension_numbers = #tpu.dot_dimension_numbers<[1], [0], [0], [1], [0, 0, 1, 1], [], []>} : vector<8x64xbf16>, vector<64x8xbf16>, vector<8x8xf32> -> vector<8x8xf32>
    %282 = arith.addf %281, %272 : vector<8x8xf32>
    %cst_125 = arith.constant dense<0xFF800000> : vector<8xf32>
    %283 = vector.multi_reduction <maximumf>, %282, %cst_125 [1] : vector<8x8xf32> to vector<8xf32>
    %284 = vector.shape_cast %283 : vector<8xf32> to vector<8x1xf32>
    %285 = vector.broadcast %284 : vector<8x1xf32> to vector<8x8xf32>
    %286 = arith.subf %282, %285 : vector<8x8xf32>
    %287 = math.exp %286 : vector<8x8xf32>
    %cst_126 = arith.constant dense<0.000000e+00> : vector<8xf32>
    %288 = vector.multi_reduction <add>, %287, %cst_126 [1] : vector<8x8xf32> to vector<8xf32>
    %289 = vector.shape_cast %288 : vector<8xf32> to vector<8x1xf32>
    %290 = tpu.reciprocal %289 {approx = true} : vector<8x1xf32> -> vector<8x1xf32>
    %291 = vector.broadcast %290 : vector<8x1xf32> to vector<8x8xf32>
    %292 = arith.mulf %287, %291 : vector<8x8xf32>
    %293 = arith.truncf %292 : vector<8x8xf32> to vector<8x8xbf16>
    %cst_127 = arith.constant dense<0.000000e+00> : vector<8x64xf32>
    %294 = tpu.matmul %293, %279, %cst_127 {dimension_numbers = #tpu.dot_dimension_numbers<[1], [0], [0], [1], [0, 0, 1, 1], [], []>} : vector<8x8xbf16>, vector<8x64xbf16>, vector<8x64xf32> -> vector<8x64xf32>
    %295 = arith.truncf %294 : vector<8x64xf32> to vector<8x64xbf16>
    %296 = vector.extract_strided_slice %269 {offsets = [0, 0], sizes = [64, 128], strides = [1, 1]} : vector<128x128xbf16> to vector<64x128xbf16>
    %cst_128 = arith.constant dense<0.000000e+00> : vector<8x128xf32>
    %297 = tpu.matmul %295, %296, %cst_128 {dimension_numbers = #tpu.dot_dimension_numbers<[1], [0], [0], [1], [0, 0, 1, 1], [], []>} : vector<8x64xbf16>, vector<64x128xbf16>, vector<8x128xf32> -> vector<8x128xf32>
    %298 = arith.addf %273, %297 : vector<8x128xf32>
    %299 = vector.extract_strided_slice %253 {offsets = [0, 64], sizes = [8, 64], strides = [1, 1]} : vector<16x128xf32> to vector<8x64xf32>
    %300 = arith.truncf %299 : vector<8x64xf32> to vector<8x64xbf16>
    %301 = vector.extract_strided_slice %260 {offsets = [0, 64], sizes = [8, 64], strides = [1, 1]} : vector<16x128xf32> to vector<8x64xf32>
    %302 = arith.truncf %301 : vector<8x64xf32> to vector<8x64xbf16>
    %303 = vector.extract_strided_slice %267 {offsets = [0, 64], sizes = [8, 64], strides = [1, 1]} : vector<16x128xf32> to vector<8x64xf32>
    %304 = arith.truncf %303 : vector<8x64xf32> to vector<8x64xbf16>
    %305 = tpu.transpose %302, [1, 0] : vector<8x64xbf16> -> vector<64x8xbf16>
    %cst_129 = arith.constant dense<0.000000e+00> : vector<8x8xf32>
    %306 = tpu.matmul %300, %305, %cst_129 {dimension_numbers = #tpu.dot_dimension_numbers<[1], [0], [0], [1], [0, 0, 1, 1], [], []>} : vector<8x64xbf16>, vector<64x8xbf16>, vector<8x8xf32> -> vector<8x8xf32>
    %307 = arith.addf %306, %272 : vector<8x8xf32>
    %cst_130 = arith.constant dense<0xFF800000> : vector<8xf32>
    %308 = vector.multi_reduction <maximumf>, %307, %cst_130 [1] : vector<8x8xf32> to vector<8xf32>
    %309 = vector.shape_cast %308 : vector<8xf32> to vector<8x1xf32>
    %310 = vector.broadcast %309 : vector<8x1xf32> to vector<8x8xf32>
    %311 = arith.subf %307, %310 : vector<8x8xf32>
    %312 = math.exp %311 : vector<8x8xf32>
    %cst_131 = arith.constant dense<0.000000e+00> : vector<8xf32>
    %313 = vector.multi_reduction <add>, %312, %cst_131 [1] : vector<8x8xf32> to vector<8xf32>
    %314 = vector.shape_cast %313 : vector<8xf32> to vector<8x1xf32>
    %315 = tpu.reciprocal %314 {approx = true} : vector<8x1xf32> -> vector<8x1xf32>
    %316 = vector.broadcast %315 : vector<8x1xf32> to vector<8x8xf32>
    %317 = arith.mulf %312, %316 : vector<8x8xf32>
    %318 = arith.truncf %317 : vector<8x8xf32> to vector<8x8xbf16>
    %cst_132 = arith.constant dense<0.000000e+00> : vector<8x64xf32>
    %319 = tpu.matmul %318, %304, %cst_132 {dimension_numbers = #tpu.dot_dimension_numbers<[1], [0], [0], [1], [0, 0, 1, 1], [], []>} : vector<8x8xbf16>, vector<8x64xbf16>, vector<8x64xf32> -> vector<8x64xf32>
    %320 = arith.truncf %319 : vector<8x64xf32> to vector<8x64xbf16>
    %321 = vector.extract_strided_slice %269 {offsets = [64, 0], sizes = [64, 128], strides = [1, 1]} : vector<128x128xbf16> to vector<64x128xbf16>
    %cst_133 = arith.constant dense<0.000000e+00> : vector<8x128xf32>
    %322 = tpu.matmul %320, %321, %cst_133 {dimension_numbers = #tpu.dot_dimension_numbers<[1], [0], [0], [1], [0, 0, 1, 1], [], []>} : vector<8x64xbf16>, vector<64x128xbf16>, vector<8x128xf32> -> vector<8x128xf32>
    %323 = arith.addf %298, %322 : vector<8x128xf32>
    %324 = vector.extract_strided_slice %25 {offsets = [1, 0], sizes = [1, 8], strides = [1, 1]} : vector<2x8xf32> to vector<1x8xf32>
    %325 = vector.shape_cast %324 : vector<1x8xf32> to vector<1x8xf32>
    %326 = vector.broadcast %325 : vector<1x8xf32> to vector<8x8xf32>
    %cst_134 = arith.constant 0.000000e+00 : f32
    %327 = vector.broadcast %cst_134 : f32 to vector<8x128xf32>
    %328 = vector.extract_strided_slice %253 {offsets = [8, 0], sizes = [8, 64], strides = [1, 1]} : vector<16x128xf32> to vector<8x64xf32>
    %329 = arith.truncf %328 : vector<8x64xf32> to vector<8x64xbf16>
    %330 = vector.extract_strided_slice %260 {offsets = [8, 0], sizes = [8, 64], strides = [1, 1]} : vector<16x128xf32> to vector<8x64xf32>
    %331 = arith.truncf %330 : vector<8x64xf32> to vector<8x64xbf16>
    %332 = vector.extract_strided_slice %267 {offsets = [8, 0], sizes = [8, 64], strides = [1, 1]} : vector<16x128xf32> to vector<8x64xf32>
    %333 = arith.truncf %332 : vector<8x64xf32> to vector<8x64xbf16>
    %334 = tpu.transpose %331, [1, 0] : vector<8x64xbf16> -> vector<64x8xbf16>
    %cst_135 = arith.constant dense<0.000000e+00> : vector<8x8xf32>
    %335 = tpu.matmul %329, %334, %cst_135 {dimension_numbers = #tpu.dot_dimension_numbers<[1], [0], [0], [1], [0, 0, 1, 1], [], []>} : vector<8x64xbf16>, vector<64x8xbf16>, vector<8x8xf32> -> vector<8x8xf32>
    %336 = arith.addf %335, %326 : vector<8x8xf32>
    %cst_136 = arith.constant dense<0xFF800000> : vector<8xf32>
    %337 = vector.multi_reduction <maximumf>, %336, %cst_136 [1] : vector<8x8xf32> to vector<8xf32>
    %338 = vector.shape_cast %337 : vector<8xf32> to vector<8x1xf32>
    %339 = vector.broadcast %338 : vector<8x1xf32> to vector<8x8xf32>
    %340 = arith.subf %336, %339 : vector<8x8xf32>
    %341 = math.exp %340 : vector<8x8xf32>
    %cst_137 = arith.constant dense<0.000000e+00> : vector<8xf32>
    %342 = vector.multi_reduction <add>, %341, %cst_137 [1] : vector<8x8xf32> to vector<8xf32>
    %343 = vector.shape_cast %342 : vector<8xf32> to vector<8x1xf32>
    %344 = tpu.reciprocal %343 {approx = true} : vector<8x1xf32> -> vector<8x1xf32>
    %345 = vector.broadcast %344 : vector<8x1xf32> to vector<8x8xf32>
    %346 = arith.mulf %341, %345 : vector<8x8xf32>
    %347 = arith.truncf %346 : vector<8x8xf32> to vector<8x8xbf16>
    %cst_138 = arith.constant dense<0.000000e+00> : vector<8x64xf32>
    %348 = tpu.matmul %347, %333, %cst_138 {dimension_numbers = #tpu.dot_dimension_numbers<[1], [0], [0], [1], [0, 0, 1, 1], [], []>} : vector<8x8xbf16>, vector<8x64xbf16>, vector<8x64xf32> -> vector<8x64xf32>
    %349 = arith.truncf %348 : vector<8x64xf32> to vector<8x64xbf16>
    %350 = vector.extract_strided_slice %269 {offsets = [0, 0], sizes = [64, 128], strides = [1, 1]} : vector<128x128xbf16> to vector<64x128xbf16>
    %cst_139 = arith.constant dense<0.000000e+00> : vector<8x128xf32>
    %351 = tpu.matmul %349, %350, %cst_139 {dimension_numbers = #tpu.dot_dimension_numbers<[1], [0], [0], [1], [0, 0, 1, 1], [], []>} : vector<8x64xbf16>, vector<64x128xbf16>, vector<8x128xf32> -> vector<8x128xf32>
    %352 = arith.addf %327, %351 : vector<8x128xf32>
    %353 = vector.extract_strided_slice %253 {offsets = [8, 64], sizes = [8, 64], strides = [1, 1]} : vector<16x128xf32> to vector<8x64xf32>
    %354 = arith.truncf %353 : vector<8x64xf32> to vector<8x64xbf16>
    %355 = vector.extract_strided_slice %260 {offsets = [8, 64], sizes = [8, 64], strides = [1, 1]} : vector<16x128xf32> to vector<8x64xf32>
    %356 = arith.truncf %355 : vector<8x64xf32> to vector<8x64xbf16>
    %357 = vector.extract_strided_slice %267 {offsets = [8, 64], sizes = [8, 64], strides = [1, 1]} : vector<16x128xf32> to vector<8x64xf32>
    %358 = arith.truncf %357 : vector<8x64xf32> to vector<8x64xbf16>
    %359 = tpu.transpose %356, [1, 0] : vector<8x64xbf16> -> vector<64x8xbf16>
    %cst_140 = arith.constant dense<0.000000e+00> : vector<8x8xf32>
    %360 = tpu.matmul %354, %359, %cst_140 {dimension_numbers = #tpu.dot_dimension_numbers<[1], [0], [0], [1], [0, 0, 1, 1], [], []>} : vector<8x64xbf16>, vector<64x8xbf16>, vector<8x8xf32> -> vector<8x8xf32>
    %361 = arith.addf %360, %326 : vector<8x8xf32>
    %cst_141 = arith.constant dense<0xFF800000> : vector<8xf32>
    %362 = vector.multi_reduction <maximumf>, %361, %cst_141 [1] : vector<8x8xf32> to vector<8xf32>
    %363 = vector.shape_cast %362 : vector<8xf32> to vector<8x1xf32>
    %364 = vector.broadcast %363 : vector<8x1xf32> to vector<8x8xf32>
    %365 = arith.subf %361, %364 : vector<8x8xf32>
    %366 = math.exp %365 : vector<8x8xf32>
    %cst_142 = arith.constant dense<0.000000e+00> : vector<8xf32>
    %367 = vector.multi_reduction <add>, %366, %cst_142 [1] : vector<8x8xf32> to vector<8xf32>
    %368 = vector.shape_cast %367 : vector<8xf32> to vector<8x1xf32>
    %369 = tpu.reciprocal %368 {approx = true} : vector<8x1xf32> -> vector<8x1xf32>
    %370 = vector.broadcast %369 : vector<8x1xf32> to vector<8x8xf32>
    %371 = arith.mulf %366, %370 : vector<8x8xf32>
    %372 = arith.truncf %371 : vector<8x8xf32> to vector<8x8xbf16>
    %cst_143 = arith.constant dense<0.000000e+00> : vector<8x64xf32>
    %373 = tpu.matmul %372, %358, %cst_143 {dimension_numbers = #tpu.dot_dimension_numbers<[1], [0], [0], [1], [0, 0, 1, 1], [], []>} : vector<8x8xbf16>, vector<8x64xbf16>, vector<8x64xf32> -> vector<8x64xf32>
    %374 = arith.truncf %373 : vector<8x64xf32> to vector<8x64xbf16>
    %375 = vector.extract_strided_slice %269 {offsets = [64, 0], sizes = [64, 128], strides = [1, 1]} : vector<128x128xbf16> to vector<64x128xbf16>
    %cst_144 = arith.constant dense<0.000000e+00> : vector<8x128xf32>
    %376 = tpu.matmul %374, %375, %cst_144 {dimension_numbers = #tpu.dot_dimension_numbers<[1], [0], [0], [1], [0, 0, 1, 1], [], []>} : vector<8x64xbf16>, vector<64x128xbf16>, vector<8x128xf32> -> vector<8x128xf32>
    %377 = arith.addf %352, %376 : vector<8x128xf32>
    %378 = tpu.concatenate %323, %377 in 0 : vector<8x128xf32>, vector<8x128xf32> -> vector<16x128xf32>
    %c1_145 = arith.constant 1 : index
    %c0_146 = arith.constant 0 : index
    %c0_147 = arith.constant 0 : index
    %379 = vector.load %arg11[%c1_145, %c0_146, %c0_147] : memref<2x1x128xf32, #tpu.memory_space<vmem>>, vector<1x1x128xf32>
    %380 = vector.shape_cast %379 : vector<1x1x128xf32> to vector<1x128xf32>
    %381 = vector.broadcast %380 : vector<1x128xf32> to vector<16x128xf32>
    %382 = arith.addf %378, %381 : vector<16x128xf32>
    %383 = arith.addf %245, %382 : vector<16x128xf32>
    %c1_148 = arith.constant 1 : index
    %c0_149 = arith.constant 0 : index
    %c0_150 = arith.constant 0 : index
    %384 = vector.load %arg12[%c1_148, %c0_149, %c0_150] : memref<2x1x128xf32, #tpu.memory_space<vmem>>, vector<1x1x128xf32>
    %385 = vector.shape_cast %384 : vector<1x1x128xf32> to vector<1x128xf32>
    %c1_151 = arith.constant 1 : index
    %c0_152 = arith.constant 0 : index
    %c0_153 = arith.constant 0 : index
    %386 = vector.load %arg13[%c1_151, %c0_152, %c0_153] : memref<2x1x128xf32, #tpu.memory_space<vmem>>, vector<1x1x128xf32>
    %387 = vector.shape_cast %386 : vector<1x1x128xf32> to vector<1x128xf32>
    %cst_154 = arith.constant dense<0.000000e+00> : vector<16xf32>
    %388 = vector.multi_reduction <add>, %383, %cst_154 [1] : vector<16x128xf32> to vector<16xf32>
    %389 = vector.shape_cast %388 : vector<16xf32> to vector<16x1xf32>
    %cst_155 = arith.constant 1.280000e+02 : f32
    %390 = vector.broadcast %cst_155 : f32 to vector<16x1xf32>
    %391 = arith.divf %389, %390 : vector<16x1xf32>
    %392 = vector.broadcast %391 : vector<16x1xf32> to vector<16x128xf32>
    %393 = arith.subf %383, %392 : vector<16x128xf32>
    %394 = arith.mulf %393, %393 : vector<16x128xf32>
    %cst_156 = arith.constant dense<0.000000e+00> : vector<16xf32>
    %395 = vector.multi_reduction <add>, %394, %cst_156 [1] : vector<16x128xf32> to vector<16xf32>
    %396 = vector.shape_cast %395 : vector<16xf32> to vector<16x1xf32>
    %cst_157 = arith.constant 1.280000e+02 : f32
    %397 = vector.broadcast %cst_157 : f32 to vector<16x1xf32>
    %398 = arith.divf %396, %397 : vector<16x1xf32>
    %399 = vector.broadcast %391 : vector<16x1xf32> to vector<16x128xf32>
    %400 = arith.subf %383, %399 : vector<16x128xf32>
    %cst_158 = arith.constant 9.99999996E-13 : f32
    %401 = vector.broadcast %cst_158 : f32 to vector<16x1xf32>
    %402 = arith.addf %398, %401 : vector<16x1xf32>
    %403 = math.rsqrt %402 : vector<16x1xf32>
    %404 = vector.broadcast %403 : vector<16x1xf32> to vector<16x128xf32>
    %405 = arith.mulf %400, %404 : vector<16x128xf32>
    %406 = vector.broadcast %385 : vector<1x128xf32> to vector<16x128xf32>
    %407 = arith.mulf %405, %406 : vector<16x128xf32>
    %408 = vector.broadcast %387 : vector<1x128xf32> to vector<16x128xf32>
    %409 = arith.addf %407, %408 : vector<16x128xf32>
    %410 = arith.truncf %409 : vector<16x128xf32> to vector<16x128xbf16>
    %c1_159 = arith.constant 1 : index
    %c0_160 = arith.constant 0 : index
    %c0_161 = arith.constant 0 : index
    %411 = vector.load %arg14[%c1_159, %c0_160, %c0_161] : memref<2x128x256xbf16, #tpu.memory_space<vmem>>, vector<1x128x256xbf16>
    %412 = vector.shape_cast %411 : vector<1x128x256xbf16> to vector<128x256xbf16>
    %cst_162 = arith.constant dense<0.000000e+00> : vector<16x256xf32>
    %413 = tpu.matmul %410, %412, %cst_162 {dimension_numbers = #tpu.dot_dimension_numbers<[1], [0], [0], [1], [0, 0, 1, 1], [], []>} : vector<16x128xbf16>, vector<128x256xbf16>, vector<16x256xf32> -> vector<16x256xf32>
    %c1_163 = arith.constant 1 : index
    %c0_164 = arith.constant 0 : index
    %c0_165 = arith.constant 0 : index
    %414 = vector.load %arg15[%c1_163, %c0_164, %c0_165] : memref<2x1x256xf32, #tpu.memory_space<vmem>>, vector<1x1x256xf32>
    %415 = vector.shape_cast %414 : vector<1x1x256xf32> to vector<1x256xf32>
    %416 = vector.broadcast %415 : vector<1x256xf32> to vector<16x256xf32>
    %417 = arith.addf %413, %416 : vector<16x256xf32>
    %418 = arith.mulf %417, %417 : vector<16x256xf32>
    %419 = arith.mulf %417, %418 : vector<16x256xf32>
    %cst_166 = arith.constant 4.471500e-02 : f32
    %420 = vector.broadcast %cst_166 : f32 to vector<16x256xf32>
    %421 = arith.mulf %420, %419 : vector<16x256xf32>
    %422 = arith.addf %417, %421 : vector<16x256xf32>
    %cst_167 = arith.constant 0.797884583 : f32
    %423 = vector.broadcast %cst_167 : f32 to vector<16x256xf32>
    %424 = arith.mulf %423, %422 : vector<16x256xf32>
    %425 = math.tanh %424 : vector<16x256xf32>
    %cst_168 = arith.constant 1.000000e+00 : f32
    %426 = vector.broadcast %cst_168 : f32 to vector<16x256xf32>
    %427 = arith.addf %426, %425 : vector<16x256xf32>
    %cst_169 = arith.constant 5.000000e-01 : f32
    %428 = vector.broadcast %cst_169 : f32 to vector<16x256xf32>
    %429 = arith.mulf %428, %427 : vector<16x256xf32>
    %430 = arith.mulf %417, %429 : vector<16x256xf32>
    %431 = arith.truncf %430 : vector<16x256xf32> to vector<16x256xbf16>
    %c1_170 = arith.constant 1 : index
    %c0_171 = arith.constant 0 : index
    %c0_172 = arith.constant 0 : index
    %432 = vector.load %arg16[%c1_170, %c0_171, %c0_172] : memref<2x256x128xbf16, #tpu.memory_space<vmem>>, vector<1x256x128xbf16>
    %433 = vector.shape_cast %432 : vector<1x256x128xbf16> to vector<256x128xbf16>
    %cst_173 = arith.constant dense<0.000000e+00> : vector<16x128xf32>
    %434 = tpu.matmul %431, %433, %cst_173 {dimension_numbers = #tpu.dot_dimension_numbers<[1], [0], [0], [1], [0, 0, 1, 1], [], []>} : vector<16x256xbf16>, vector<256x128xbf16>, vector<16x128xf32> -> vector<16x128xf32>
    %c1_174 = arith.constant 1 : index
    %c0_175 = arith.constant 0 : index
    %c0_176 = arith.constant 0 : index
    %435 = vector.load %arg17[%c1_174, %c0_175, %c0_176] : memref<2x1x128xf32, #tpu.memory_space<vmem>>, vector<1x1x128xf32>
    %436 = vector.shape_cast %435 : vector<1x1x128xf32> to vector<1x128xf32>
    %437 = vector.broadcast %436 : vector<1x128xf32> to vector<16x128xf32>
    %438 = arith.addf %434, %437 : vector<16x128xf32>
    %439 = arith.addf %409, %438 : vector<16x128xf32>
    %c1_177 = arith.constant 1 : index
    %c0_178 = arith.constant 0 : index
    %c0_179 = arith.constant 0 : index
    %440 = vector.load %arg18[%c1_177, %c0_178, %c0_179] : memref<2x1x128xf32, #tpu.memory_space<vmem>>, vector<1x1x128xf32>
    %441 = vector.shape_cast %440 : vector<1x1x128xf32> to vector<1x128xf32>
    %c1_180 = arith.constant 1 : index
    %c0_181 = arith.constant 0 : index
    %c0_182 = arith.constant 0 : index
    %442 = vector.load %arg19[%c1_180, %c0_181, %c0_182] : memref<2x1x128xf32, #tpu.memory_space<vmem>>, vector<1x1x128xf32>
    %443 = vector.shape_cast %442 : vector<1x1x128xf32> to vector<1x128xf32>
    %cst_183 = arith.constant dense<0.000000e+00> : vector<16xf32>
    %444 = vector.multi_reduction <add>, %439, %cst_183 [1] : vector<16x128xf32> to vector<16xf32>
    %445 = vector.shape_cast %444 : vector<16xf32> to vector<16x1xf32>
    %cst_184 = arith.constant 1.280000e+02 : f32
    %446 = vector.broadcast %cst_184 : f32 to vector<16x1xf32>
    %447 = arith.divf %445, %446 : vector<16x1xf32>
    %448 = vector.broadcast %447 : vector<16x1xf32> to vector<16x128xf32>
    %449 = arith.subf %439, %448 : vector<16x128xf32>
    %450 = arith.mulf %449, %449 : vector<16x128xf32>
    %cst_185 = arith.constant dense<0.000000e+00> : vector<16xf32>
    %451 = vector.multi_reduction <add>, %450, %cst_185 [1] : vector<16x128xf32> to vector<16xf32>
    %452 = vector.shape_cast %451 : vector<16xf32> to vector<16x1xf32>
    %cst_186 = arith.constant 1.280000e+02 : f32
    %453 = vector.broadcast %cst_186 : f32 to vector<16x1xf32>
    %454 = arith.divf %452, %453 : vector<16x1xf32>
    %455 = vector.broadcast %447 : vector<16x1xf32> to vector<16x128xf32>
    %456 = arith.subf %439, %455 : vector<16x128xf32>
    %cst_187 = arith.constant 9.99999996E-13 : f32
    %457 = vector.broadcast %cst_187 : f32 to vector<16x1xf32>
    %458 = arith.addf %454, %457 : vector<16x1xf32>
    %459 = math.rsqrt %458 : vector<16x1xf32>
    %460 = vector.broadcast %459 : vector<16x1xf32> to vector<16x128xf32>
    %461 = arith.mulf %456, %460 : vector<16x128xf32>
    %462 = vector.broadcast %441 : vector<1x128xf32> to vector<16x128xf32>
    %463 = arith.mulf %461, %462 : vector<16x128xf32>
    %464 = vector.broadcast %443 : vector<1x128xf32> to vector<16x128xf32>
    %465 = arith.addf %463, %464 : vector<16x128xf32>
    %466 = vector.extract_strided_slice %465 {offsets = [0, 0], sizes = [1, 128], strides = [1, 1]} : vector<16x128xf32> to vector<1x128xf32>
    %467 = vector.extract_strided_slice %465 {offsets = [8, 0], sizes = [1, 128], strides = [1, 1]} : vector<16x128xf32> to vector<1x128xf32>
    %468 = tpu.concatenate %466, %467 in 0 : vector<1x128xf32>, vector<1x128xf32> -> vector<2x128xf32>
    %469 = arith.truncf %468 : vector<2x128xf32> to vector<2x128xbf16>
    %c0_188 = arith.constant 0 : index
    %c0_189 = arith.constant 0 : index
    %470 = vector.load %arg20[%c0_188, %c0_189] : memref<128x128xbf16, #tpu.memory_space<vmem>>, vector<128x128xbf16>
    %cst_190 = arith.constant dense<0.000000e+00> : vector<2x128xf32>
    %471 = tpu.matmul %469, %470, %cst_190 {dimension_numbers = #tpu.dot_dimension_numbers<[1], [0], [0], [1], [0, 0, 1, 1], [], []>} : vector<2x128xbf16>, vector<128x128xbf16>, vector<2x128xf32> -> vector<2x128xf32>
    %c0_191 = arith.constant 0 : index
    %c0_192 = arith.constant 0 : index
    %472 = vector.load %arg21[%c0_191, %c0_192] : memref<1x128xf32, #tpu.memory_space<vmem>>, vector<1x128xf32>
    %473 = vector.broadcast %472 : vector<1x128xf32> to vector<2x128xf32>
    %474 = arith.addf %471, %473 : vector<2x128xf32>
    %475 = math.tanh %474 : vector<2x128xf32>
    %476 = arith.truncf %475 : vector<2x128xf32> to vector<2x128xbf16>
    %c0_193 = arith.constant 0 : index
    %c0_194 = arith.constant 0 : index
    %477 = vector.load %arg22[%c0_193, %c0_194] : memref<128x128xbf16, #tpu.memory_space<vmem>>, vector<128x128xbf16>
    %cst_195 = arith.constant dense<0.000000e+00> : vector<2x128xf32>
    %478 = tpu.matmul %476, %477, %cst_195 {dimension_numbers = #tpu.dot_dimension_numbers<[1], [0], [0], [1], [0, 0, 1, 1], [], []>} : vector<2x128xbf16>, vector<128x128xbf16>, vector<2x128xf32> -> vector<2x128xf32>
    %c0_196 = arith.constant 0 : index
    %c0_197 = arith.constant 0 : index
    %479 = vector.load %arg23[%c0_196, %c0_197] : memref<1x128xf32, #tpu.memory_space<vmem>>, vector<1x128xf32>
    %480 = vector.broadcast %479 : vector<1x128xf32> to vector<2x128xf32>
    %481 = arith.addf %478, %480 : vector<2x128xf32>
    %c0_198 = arith.constant 0 : index
    %c0_199 = arith.constant 0 : index
    %482 = vector.load %arg24[%c0_198, %c0_199] : memref<2x128xf32, #tpu.memory_space<vmem>>, vector<2x128xf32>
    tpu.vector_store %arg24[%c0_198, %c0_199], %481 {strides = array<i32>} : memref<2x128xf32, #tpu.memory_space<vmem>>, vector<2x128xf32>,
    return
  }
}

</mosaic_0001>

<llo_original>
// kernel: tpu_custom_call.1
$region0: #{tpu_custom_call.1}
  #allocation0 [shape = 'u32[]', space=smem, size = 0x4, offset = 0x4, fixed_abs, tag = 'smem constant byte address 0x4 - core index']
  #allocation1 [shape = 'u32[144,128]{1,0:T(1,128)}', space=vmem, size = 0x12000, scoped, tag = 'internal scratch']
  %s0 = inlined_call_operand.hbm [shape: f32[16,128], index: 0, kind: input, shape index: {}]
  %s1 = inlined_call_operand.vmem [shape: f32[2,8], index: 1, kind: input, shape index: {}]
  %s2 = inlined_call_operand.vmem [shape: f32[1,128], index: 2, kind: input, shape index: {}]
  %s3 = inlined_call_operand.hbm [shape: f32[1,128], index: 3, kind: input, shape index: {}]
  %s4 = inlined_call_operand.hbm [shape: bf16[2,128,128], index: 4, kind: input, shape index: {}]
  %s5 = inlined_call_operand.vmem [shape: f32[2,1,128], index: 5, kind: input, shape index: {}]
  %s6 = inlined_call_operand.hbm [shape: bf16[2,128,128], index: 6, kind: input, shape index: {}]
  %s7 = inlined_call_operand.vmem [shape: f32[2,1,128], index: 7, kind: input, shape index: {}]
  %s8 = inlined_call_operand.hbm [shape: bf16[2,128,128], index: 8, kind: input, shape index: {}]
  %s9 = inlined_call_operand.hbm [shape: f32[2,1,128], index: 9, kind: input, shape index: {}]
  %s10 = inlined_call_operand.hbm [shape: bf16[2,128,128], index: 10, kind: input, shape index: {}]
  %s11 = inlined_call_operand.hbm [shape: f32[2,1,128], index: 11, kind: input, shape index: {}]
  %s12 = inlined_call_operand.hbm [shape: f32[2,1,128], index: 12, kind: input, shape index: {}]
  %s13 = inlined_call_operand.hbm [shape: f32[2,1,128], index: 13, kind: input, shape index: {}]
  %s14 = inlined_call_operand.hbm [shape: bf16[2,128,256], index: 14, kind: input, shape index: {}]
  %s15 = inlined_call_operand.vmem [shape: f32[2,1,256], index: 15, kind: input, shape index: {}]
  %s16 = inlined_call_operand.hbm [shape: bf16[2,256,128], index: 16, kind: input, shape index: {}]
  %s17 = inlined_call_operand.hbm [shape: f32[2,1,128], index: 17, kind: input, shape index: {}]
  %s18 = inlined_call_operand.hbm [shape: f32[2,1,128], index: 18, kind: input, shape index: {}]
  %s19 = inlined_call_operand.hbm [shape: f32[2,1,128], index: 19, kind: input, shape index: {}]
  %s20 = inlined_call_operand.vmem [shape: bf16[128,128], index: 20, kind: input, shape index: {}]
  %s21 = inlined_call_operand.vmem [shape: f32[1,128], index: 21, kind: input, shape index: {}]
  %s22 = inlined_call_operand.hbm [shape: bf16[128,128], index: 22, kind: input, shape index: {}]
  %s23 = inlined_call_operand.vmem [shape: f32[1,128], index: 23, kind: input, shape index: {}]
  %s24 = inlined_call_operand.hbm [shape: f32[2,128], index: 24, kind: output, shape index: {}]
  %s25 = sld [smem:[#allocation0]]
  $region170: #{tpu_custom_call.1} parent=0
    _
  %s27 = ssub.s32 1, %s25
  %s28 = scalar_select 0, %s27, %s25
  $region1: #{tpu_custom_call.1} parent=0
    #allocation2 [shape = 'u8[8192]{0}', space=vmem, size = 0x2000, scoped, tag = 'input window, operand 0, single buffered']
    #allocation3 [shape = 's32[1]{0}', space=sflag, size = 0x4, scoped, tag = 'scoped memory for tpu_custom_call.1']
    #allocation4 [shape = 's32[1]{0}', space=sflag, size = 0x4, scoped, tag = 'scoped memory for tpu_custom_call.1']
    #allocation5 [shape = 'u8[512]{0}', space=vmem, size = 0x400, scoped, tag = 'input window, operand 3, single buffered']
    #allocation6 [shape = 's32[1]{0}', space=sflag, size = 0x4, scoped, tag = 'scoped memory for tpu_custom_call.1']
    #allocation7 [shape = 'u8[65536]{0}', space=vmem, size = 0x10000, scoped, tag = 'input window, operand 4, single buffered']
    #allocation8 [shape = 'u8[65536]{0}', space=vmem, size = 0x10000, scoped, tag = 'input window, operand 6, single buffered']
    #allocation9 [shape = 's32[1]{0}', space=sflag, size = 0x4, scoped, tag = 'scoped memory for tpu_custom_call.1']
    #allocation10 [shape = 'u8[65536]{0}', space=vmem, size = 0x10000, scoped, tag = 'input window, operand 8, single buffered']
    #allocation11 [shape = 'u8[1024]{0}', space=vmem, size = 0x400, scoped, tag = 'input window, operand 9, single buffered']
    #allocation12 [shape = 's32[1]{0}', space=sflag, size = 0x4, scoped, tag = 'scoped memory for tpu_custom_call.1']
    #allocation13 [shape = 'u8[65536]{0}', space=vmem, size = 0x10000, scoped, tag = 'input window, operand 10, single buffered']
    #allocation14 [shape = 'u8[1024]{0}', space=vmem, size = 0x400, scoped, tag = 'input window, operand 11, single buffered']
    #allocation15 [shape = 's32[1]{0}', space=sflag, size = 0x4, scoped, tag = 'scoped memory for tpu_custom_call.1']
    #allocation16 [shape = 'u8[1024]{0}', space=vmem, size = 0x400, scoped, tag = 'input window, operand 12, single buffered']
    #allocation17 [shape = 'u8[1024]{0}', space=vmem, size = 0x400, scoped, tag = 'input window, operand 13, single buffered']
    #allocation18 [shape = 's32[1]{0}', space=sflag, size = 0x4, scoped, tag = 'scoped memory for tpu_custom_call.1']
    #allocation19 [shape = 'u8[131072]{0}', space=vmem, size = 0x20000, scoped, tag = 'input window, operand 14, single buffered']
    #allocation20 [shape = 'u8[131072]{0}', space=vmem, size = 0x20000, scoped, tag = 'input window, operand 16, single buffered']
    #allocation21 [shape = 's32[1]{0}', space=sflag, size = 0x4, scoped, tag = 'scoped memory for tpu_custom_call.1']
    #allocation22 [shape = 'u8[1024]{0}', space=vmem, size = 0x400, scoped, tag = 'input window, operand 17, single buffered']
    #allocation23 [shape = 'u8[1024]{0}', space=vmem, size = 0x400, scoped, tag = 'input window, operand 18, single buffered']
    #allocation24 [shape = 's32[1]{0}', space=sflag, size = 0x4, scoped, tag = 'scoped memory for tpu_custom_call.1']
    #allocation25 [shape = 'u8[1024]{0}', space=vmem, size = 0x400, scoped, tag = 'input window, operand 19, single buffered']
    #allocation26 [shape = 'u8[32768]{0}', space=vmem, size = 0x8000, scoped, tag = 'input window, operand 22, single buffered']
    #allocation27 [shape = 's32[1]{0}', space=sflag, size = 0x4, scoped, tag = 'scoped memory for tpu_custom_call.1']
    #allocation28 [shape = 'u8[1024]{0}', space=vmem, size = 0x400, scoped, tag = 'output window, operand 0, single buffered']
    %29 = vsyncpa [#allocation3], 0
    %30 = vsyncpa [#allocation6], 0
    %31 = vsyncpa [#allocation9], 0
    %32 = vsyncpa [#allocation12], 0
    %33 = vsyncpa [#allocation15], 0
    %34 = vsyncpa [#allocation18], 0
    %35 = vsyncpa [#allocation21], 0
    %36 = vsyncpa [#allocation24], 0
    %37 = vsyncpa [#allocation27], 0
    %38 = vsyncpa [#allocation4], 0
    // Predicated region
    $region2: #{tpu_custom_call.1} parent=1 // pred_check
      _
    $region3: #{tpu_custom_call.1} parent=1 // pred_check_branch
      %40 = sbr.rel (0) target = $region5
    $region4: #{tpu_custom_call.1} parent=1 // pred_region
      %s42 = ssub.s32 256, 256
      %43 = vsyncadd [#allocation3], %s42
      %s44 = sshll.u32 [#allocation2], 4
      %s45 = int_to_ptr.vmem [resolvable:$true] %s44
      %50 = dma.hbm_to_vmem [thread:$0]  %s0, 256, %s45, [#allocation3], 128, 128, 8
    $region5: #{tpu_custom_call.1} parent=1 // pred_fallthru
      _
    // Predicated region
    $region6: #{tpu_custom_call.1} parent=1 // pred_check
      _
    $region7: #{tpu_custom_call.1} parent=1 // pred_check_branch
      %52 = sbr.rel (0) target = $region9
    $region8: #{tpu_custom_call.1} parent=1 // pred_region
      _
    $region9: #{tpu_custom_call.1} parent=1 // pred_fallthru
      _
    // Predicated region
    $region10: #{tpu_custom_call.1} parent=1 // pred_check
      _
    $region11: #{tpu_custom_call.1} parent=1 // pred_check_branch
      %54 = sbr.rel (0) target = $region13
    $region12: #{tpu_custom_call.1} parent=1 // pred_region
      _
    $region13: #{tpu_custom_call.1} parent=1 // pred_fallthru
      _
    // Predicated region
    $region14: #{tpu_custom_call.1} parent=1 // pred_check
      _
    $region15: #{tpu_custom_call.1} parent=1 // pred_check_branch
      %56 = sbr.rel (0) target = $region17
    $region16: #{tpu_custom_call.1} parent=1 // pred_region
      %s58 = ssub.s32 16, 16
      %59 = vsyncadd [#allocation6], %s58
      %s61 = sshll.u32 [#allocation5], 4
      %s62 = int_to_ptr.vmem [resolvable:$true] %s61
      %64 = dma.hbm_to_vmem [thread:$0]  %s3, 16, %s62, [#allocation6]
    $region17: #{tpu_custom_call.1} parent=1 // pred_fallthru
      _
    // Predicated region
    $region18: #{tpu_custom_call.1} parent=1 // pred_check
      _
    $region19: #{tpu_custom_call.1} parent=1 // pred_check_branch
      %66 = sbr.rel (0) target = $region21
    $region20: #{tpu_custom_call.1} parent=1 // pred_region
      %s68 = ssub.s32 2048, 2048
      %69 = vsyncadd [#allocation6], %s68
      %s70 = sshll.u32 [#allocation7], 4
      %s71 = int_to_ptr.vmem [resolvable:$true] %s70
      %76 = dma.hbm_to_vmem [thread:$0]  %s4, 2048, %s71, [#allocation6], 64, 64, 4
    $region21: #{tpu_custom_call.1} parent=1 // pred_fallthru
      _
    // Predicated region
    $region22: #{tpu_custom_call.1} parent=1 // pred_check
      _
    $region23: #{tpu_custom_call.1} parent=1 // pred_check_branch
      %78 = sbr.rel (0) target = $region25
    $region24: #{tpu_custom_call.1} parent=1 // pred_region
      _
    $region25: #{tpu_custom_call.1} parent=1 // pred_fallthru
      _
    // Predicated region
    $region26: #{tpu_custom_call.1} parent=1 // pred_check
      _
    $region27: #{tpu_custom_call.1} parent=1 // pred_check_branch
      %80 = sbr.rel (0) target = $region29
    $region28: #{tpu_custom_call.1} parent=1 // pred_region
      %s82 = ssub.s32 2048, 2048
      %83 = vsyncadd [#allocation9], %s82
      %s84 = sshll.u32 [#allocation8], 4
      %s85 = int_to_ptr.vmem [resolvable:$true] %s84
      %90 = dma.hbm_to_vmem [thread:$0]  %s6, 2048, %s85, [#allocation9], 64, 64, 4
    $region29: #{tpu_custom_call.1} parent=1 // pred_fallthru
      _
    // Predicated region
    $region30: #{tpu_custom_call.1} parent=1 // pred_check
      _
    $region31: #{tpu_custom_call.1} parent=1 // pred_check_branch
      %92 = sbr.rel (0) target = $region33
    $region32: #{tpu_custom_call.1} parent=1 // pred_region
      _
    $region33: #{tpu_custom_call.1} parent=1 // pred_fallthru
      _
    // Predicated region
    $region34: #{tpu_custom_call.1} parent=1 // pred_check
      _
    $region35: #{tpu_custom_call.1} parent=1 // pred_check_branch
      %94 = sbr.rel (0) target = $region37
    $region36: #{tpu_custom_call.1} parent=1 // pred_region
      %s96 = ssub.s32 2048, 2048
      %97 = vsyncadd [#allocation9], %s96
      %s98 = sshll.u32 [#allocation10], 4
      %s99 = int_to_ptr.vmem [resolvable:$true] %s98
      %104 = dma.hbm_to_vmem [thread:$0]  %s8, 2048, %s99, [#allocation9], 64, 64, 4
    $region37: #{tpu_custom_call.1} parent=1 // pred_fallthru
      _
    // Predicated region
    $region38: #{tpu_custom_call.1} parent=1 // pred_check
      _
    $region39: #{tpu_custom_call.1} parent=1 // pred_check_branch
      %106 = sbr.rel (0) target = $region41
    $region40: #{tpu_custom_call.1} parent=1 // pred_region
      %s108 = ssub.s32 32, 32
      %109 = vsyncadd [#allocation12], %s108
      %s110 = sshll.u32 [#allocation11], 4
      %s111 = int_to_ptr.vmem [resolvable:$true] %s110
      %116 = dma.hbm_to_vmem [thread:$0]  %s9, 32, %s111, [#allocation12], 16, 16, 1
    $region41: #{tpu_custom_call.1} parent=1 // pred_fallthru
      _
    // Predicated region
    $region42: #{tpu_custom_call.1} parent=1 // pred_check
      _
    $region43: #{tpu_custom_call.1} parent=1 // pred_check_branch
      %118 = sbr.rel (0) target = $region45
    $region44: #{tpu_custom_call.1} parent=1 // pred_region
      %s120 = ssub.s32 2048, 2048
      %121 = vsyncadd [#allocation12], %s120
      %s122 = sshll.u32 [#allocation13], 4
      %s123 = int_to_ptr.vmem [resolvable:$true] %s122
      %128 = dma.hbm_to_vmem [thread:$0]  %s10, 2048, %s123, [#allocation12], 64, 64, 4
    $region45: #{tpu_custom_call.1} parent=1 // pred_fallthru
      _
    // Predicated region
    $region46: #{tpu_custom_call.1} parent=1 // pred_check
      _
    $region47: #{tpu_custom_call.1} parent=1 // pred_check_branch
      %130 = sbr.rel (0) target = $region49
    $region48: #{tpu_custom_call.1} parent=1 // pred_region
      %s132 = ssub.s32 32, 32
      %133 = vsyncadd [#allocation15], %s132
      %s134 = sshll.u32 [#allocation14], 4
      %s135 = int_to_ptr.vmem [resolvable:$true] %s134
      %140 = dma.hbm_to_vmem [thread:$0]  %s11, 32, %s135, [#allocation15], 16, 16, 1
    $region49: #{tpu_custom_call.1} parent=1 // pred_fallthru
      _
    // Predicated region
    $region50: #{tpu_custom_call.1} parent=1 // pred_check
      _
    $region51: #{tpu_custom_call.1} parent=1 // pred_check_branch
      %142 = sbr.rel (0) target = $region53
    $region52: #{tpu_custom_call.1} parent=1 // pred_region
      %s144 = ssub.s32 32, 32
      %145 = vsyncadd [#allocation15], %s144
      %s146 = sshll.u32 [#allocation16], 4
      %s147 = int_to_ptr.vmem [resolvable:$true] %s146
      %152 = dma.hbm_to_vmem [thread:$0]  %s12, 32, %s147, [#allocation15], 16, 16, 1
    $region53: #{tpu_custom_call.1} parent=1 // pred_fallthru
      _
    // Predicated region
    $region54: #{tpu_custom_call.1} parent=1 // pred_check
      _
    $region55: #{tpu_custom_call.1} parent=1 // pred_check_branch
      %154 = sbr.rel (0) target = $region57
    $region56: #{tpu_custom_call.1} parent=1 // pred_region
      %s156 = ssub.s32 32, 32
      %157 = vsyncadd [#allocation18], %s156
      %s158 = sshll.u32 [#allocation17], 4
      %s159 = int_to_ptr.vmem [resolvable:$true] %s158
      %164 = dma.hbm_to_vmem [thread:$0]  %s13, 32, %s159, [#allocation18], 16, 16, 1
    $region57: #{tpu_custom_call.1} parent=1 // pred_fallthru
      _
    // Predicated region
    $region58: #{tpu_custom_call.1} parent=1 // pred_check
      _
    $region59: #{tpu_custom_call.1} parent=1 // pred_check_branch
      %166 = sbr.rel (0) target = $region61
    $region60: #{tpu_custom_call.1} parent=1 // pred_region
      %s168 = ssub.s32 4096, 4096
      %169 = vsyncadd [#allocation18], %s168
      %s170 = sshll.u32 [#allocation19], 4
      %s171 = int_to_ptr.vmem [resolvable:$true] %s170
      %176 = dma.hbm_to_vmem [thread:$0]  %s14, 4096, %s171, [#allocation18], 128, 128, 8
    $region61: #{tpu_custom_call.1} parent=1 // pred_fallthru
      _
    // Predicated region
    $region62: #{tpu_custom_call.1} parent=1 // pred_check
      _
    $region63: #{tpu_custom_call.1} parent=1 // pred_check_branch
      %178 = sbr.rel (0) target = $region65
    $region64: #{tpu_custom_call.1} parent=1 // pred_region
      _
    $region65: #{tpu_custom_call.1} parent=1 // pred_fallthru
      _
    // Predicated region
    $region66: #{tpu_custom_call.1} parent=1 // pred_check
      _
    $region67: #{tpu_custom_call.1} parent=1 // pred_check_branch
      %180 = sbr.rel (0) target = $region69
    $region68: #{tpu_custom_call.1} parent=1 // pred_region
      %s182 = ssub.s32 4096, 4096
      %183 = vsyncadd [#allocation21], %s182
      %s184 = sshll.u32 [#allocation20], 4
      %s185 = int_to_ptr.vmem [resolvable:$true] %s184
      %190 = dma.hbm_to_vmem [thread:$0]  %s16, 4096, %s185, [#allocation21], 64, 64, 4
    $region69: #{tpu_custom_call.1} parent=1 // pred_fallthru
      _
    // Predicated region
    $region70: #{tpu_custom_call.1} parent=1 // pred_check
      _
    $region71: #{tpu_custom_call.1} parent=1 // pred_check_branch
      %192 = sbr.rel (0) target = $region73
    $region72: #{tpu_custom_call.1} parent=1 // pred_region
      %s194 = ssub.s32 32, 32
      %195 = vsyncadd [#allocation21], %s194
      %s196 = sshll.u32 [#allocation22], 4
      %s197 = int_to_ptr.vmem [resolvable:$true] %s196
      %202 = dma.hbm_to_vmem [thread:$0]  %s17, 32, %s197, [#allocation21], 16, 16, 1
    $region73: #{tpu_custom_call.1} parent=1 // pred_fallthru
      _
    // Predicated region
    $region74: #{tpu_custom_call.1} parent=1 // pred_check
      _
    $region75: #{tpu_custom_call.1} parent=1 // pred_check_branch
      %204 = sbr.rel (0) target = $region77
    $region76: #{tpu_custom_call.1} parent=1 // pred_region
      %s206 = ssub.s32 32, 32
      %207 = vsyncadd [#allocation24], %s206
      %s208 = sshll.u32 [#allocation23], 4
      %s209 = int_to_ptr.vmem [resolvable:$true] %s208
      %214 = dma.hbm_to_vmem [thread:$0]  %s18, 32, %s209, [#allocation24], 16, 16, 1
    $region77: #{tpu_custom_call.1} parent=1 // pred_fallthru
      _
    // Predicated region
    $region78: #{tpu_custom_call.1} parent=1 // pred_check
      _
    $region79: #{tpu_custom_call.1} parent=1 // pred_check_branch
      %216 = sbr.rel (0) target = $region81
    $region80: #{tpu_custom_call.1} parent=1 // pred_region
      %s218 = ssub.s32 32, 32
      %219 = vsyncadd [#allocation24], %s218
      %s220 = sshll.u32 [#allocation25], 4
      %s221 = int_to_ptr.vmem [resolvable:$true] %s220
      %226 = dma.hbm_to_vmem [thread:$0]  %s19, 32, %s221, [#allocation24], 16, 16, 1
    $region81: #{tpu_custom_call.1} parent=1 // pred_fallthru
      _
    // Predicated region
    $region82: #{tpu_custom_call.1} parent=1 // pred_check
      _
    $region83: #{tpu_custom_call.1} parent=1 // pred_check_branch
      %228 = sbr.rel (0) target = $region85
    $region84: #{tpu_custom_call.1} parent=1 // pred_region
      _
    $region85: #{tpu_custom_call.1} parent=1 // pred_fallthru
      _
    // Predicated region
    $region86: #{tpu_custom_call.1} parent=1 // pred_check
      _
    $region87: #{tpu_custom_call.1} parent=1 // pred_check_branch
      %230 = sbr.rel (0) target = $region89
    $region88: #{tpu_custom_call.1} parent=1 // pred_region
      _
    $region89: #{tpu_custom_call.1} parent=1 // pred_fallthru
      _
    // Predicated region
    $region90: #{tpu_custom_call.1} parent=1 // pred_check
      _
    $region91: #{tpu_custom_call.1} parent=1 // pred_check_branch
      %232 = sbr.rel (0) target = $region93
    $region92: #{tpu_custom_call.1} parent=1 // pred_region
      %s234 = ssub.s32 1024, 1024
      %235 = vsyncadd [#allocation27], %s234
      %s236 = sshll.u32 [#allocation26], 4
      %s237 = int_to_ptr.vmem [resolvable:$true] %s236
      %242 = dma.hbm_to_vmem [thread:$0]  %s22, 1024, %s237, [#allocation27], 64, 64, 4
    $region93: #{tpu_custom_call.1} parent=1 // pred_fallthru
      _
    // Predicated region
    $region94: #{tpu_custom_call.1} parent=1 // pred_check
      _
    $region95: #{tpu_custom_call.1} parent=1 // pred_check_branch
      %244 = sbr.rel (0) target = $region97
    $region96: #{tpu_custom_call.1} parent=1 // pred_region
      _
    $region97: #{tpu_custom_call.1} parent=1 // pred_fallthru
      _
    // Predicated region
    $region98: #{tpu_custom_call.1} parent=1 // pred_check
      _
    $region99: #{tpu_custom_call.1} parent=1 // pred_check_branch
      %246 = sbr.rel (0) target = $region101
    $region100: #{tpu_custom_call.1} parent=1 // pred_region
      %247 = dma.done [#allocation3], 256
    $region101: #{tpu_custom_call.1} parent=1 // pred_fallthru
      _
    // Predicated region
    $region102: #{tpu_custom_call.1} parent=1 // pred_check
      _
    $region103: #{tpu_custom_call.1} parent=1 // pred_check_branch
      %249 = sbr.rel (0) target = $region105
    $region104: #{tpu_custom_call.1} parent=1 // pred_region
      %250 = dma.done [#allocation6], 16
    $region105: #{tpu_custom_call.1} parent=1 // pred_fallthru
      _
    // Predicated region
    $region106: #{tpu_custom_call.1} parent=1 // pred_check
      _
    $region107: #{tpu_custom_call.1} parent=1 // pred_check_branch
      %252 = sbr.rel (0) target = $region109
    $region108: #{tpu_custom_call.1} parent=1 // pred_region
      %253 = dma.done [#allocation6], 2048
    $region109: #{tpu_custom_call.1} parent=1 // pred_fallthru
      _
    // Predicated region
    $region110: #{tpu_custom_call.1} parent=1 // pred_check
      _
    $region111: #{tpu_custom_call.1} parent=1 // pred_check_branch
      %255 = sbr.rel (0) target = $region113
    $region112: #{tpu_custom_call.1} parent=1 // pred_region
      %256 = dma.done [#allocation9], 2048
    $region113: #{tpu_custom_call.1} parent=1 // pred_fallthru
      _
    // Predicated region
    $region114: #{tpu_custom_call.1} parent=1 // pred_check
      _
    $region115: #{tpu_custom_call.1} parent=1 // pred_check_branch
      %258 = sbr.rel (0) target = $region117
    $region116: #{tpu_custom_call.1} parent=1 // pred_region
      %259 = dma.done [#allocation9], 2048
    $region117: #{tpu_custom_call.1} parent=1 // pred_fallthru
      _
    // Predicated region
    $region118: #{tpu_custom_call.1} parent=1 // pred_check
      _
    $region119: #{tpu_custom_call.1} parent=1 // pred_check_branch
      %261 = sbr.rel (0) target = $region121
    $region120: #{tpu_custom_call.1} parent=1 // pred_region
      %262 = dma.done [#allocation12], 32
    $region121: #{tpu_custom_call.1} parent=1 // pred_fallthru
      _
    // Predicated region
    $region122: #{tpu_custom_call.1} parent=1 // pred_check
      _
    $region123: #{tpu_custom_call.1} parent=1 // pred_check_branch
      %264 = sbr.rel (0) target = $region125
    $region124: #{tpu_custom_call.1} parent=1 // pred_region
      %265 = dma.done [#allocation12], 2048
    $region125: #{tpu_custom_call.1} parent=1 // pred_fallthru
      _
    // Predicated region
    $region126: #{tpu_custom_call.1} parent=1 // pred_check
      _
    $region127: #{tpu_custom_call.1} parent=1 // pred_check_branch
      %267 = sbr.rel (0) target = $region129
    $region128: #{tpu_custom_call.1} parent=1 // pred_region
      %268 = dma.done [#allocation15], 32
    $region129: #{tpu_custom_call.1} parent=1 // pred_fallthru
      _
    // Predicated region
    $region130: #{tpu_custom_call.1} parent=1 // pred_check
      _
    $region131: #{tpu_custom_call.1} parent=1 // pred_check_branch
      %270 = sbr.rel (0) target = $region133
    $region132: #{tpu_custom_call.1} parent=1 // pred_region
      %271 = dma.done [#allocation15], 32
    $region133: #{tpu_custom_call.1} parent=1 // pred_fallthru
      _
    // Predicated region
    $region134: #{tpu_custom_call.1} parent=1 // pred_check
      _
    $region135: #{tpu_custom_call.1} parent=1 // pred_check_branch
      %273 = sbr.rel (0) target = $region137
    $region136: #{tpu_custom_call.1} parent=1 // pred_region
      %274 = dma.done [#allocation18], 32
    $region137: #{tpu_custom_call.1} parent=1 // pred_fallthru
      _
    // Predicated region
    $region138: #{tpu_custom_call.1} parent=1 // pred_check
      _
    $region139: #{tpu_custom_call.1} parent=1 // pred_check_branch
      %276 = sbr.rel (0) target = $region141
    $region140: #{tpu_custom_call.1} parent=1 // pred_region
      %277 = dma.done [#allocation18], 4096
    $region141: #{tpu_custom_call.1} parent=1 // pred_fallthru
      _
    // Predicated region
    $region142: #{tpu_custom_call.1} parent=1 // pred_check
      _
    $region143: #{tpu_custom_call.1} parent=1 // pred_check_branch
      %279 = sbr.rel (0) target = $region145
    $region144: #{tpu_custom_call.1} parent=1 // pred_region
      %280 = dma.done [#allocation21], 4096
    $region145: #{tpu_custom_call.1} parent=1 // pred_fallthru
      _
    // Predicated region
    $region146: #{tpu_custom_call.1} parent=1 // pred_check
      _
    $region147: #{tpu_custom_call.1} parent=1 // pred_check_branch
      %282 = sbr.rel (0) target = $region149
    $region148: #{tpu_custom_call.1} parent=1 // pred_region
      %283 = dma.done [#allocation21], 32
    $region149: #{tpu_custom_call.1} parent=1 // pred_fallthru
      _
    // Predicated region
    $region150: #{tpu_custom_call.1} parent=1 // pred_check
      _
    $region151: #{tpu_custom_call.1} parent=1 // pred_check_branch
      %285 = sbr.rel (0) target = $region153
    $region152: #{tpu_custom_call.1} parent=1 // pred_region
      %286 = dma.done [#allocation24], 32
    $region153: #{tpu_custom_call.1} parent=1 // pred_fallthru
      _
    // Predicated region
    $region154: #{tpu_custom_call.1} parent=1 // pred_check
      _
    $region155: #{tpu_custom_call.1} parent=1 // pred_check_branch
      %288 = sbr.rel (0) target = $region157
    $region156: #{tpu_custom_call.1} parent=1 // pred_region
      %289 = dma.done [#allocation24], 32
    $region157: #{tpu_custom_call.1} parent=1 // pred_fallthru
      _
    // Predicated region
    $region158: #{tpu_custom_call.1} parent=1 // pred_check
      _
    $region159: #{tpu_custom_call.1} parent=1 // pred_check_branch
      %291 = sbr.rel (0) target = $region161
    $region160: #{tpu_custom_call.1} parent=1 // pred_region
      %292 = dma.done [#allocation27], 1024
    $region161: #{tpu_custom_call.1} parent=1 // pred_fallthru
      _
    %v294 = vld [vmem:[#allocation2] sm:$0xff]
    %v295 = vld [vmem:[#allocation2 + $0x8] sm:$0xff]
    %v296 = vld [vmem:[%s2] sm:$0x1]
    %v297 = vld [vmem:[#allocation5] sm:$0x1]
    %298 = vadd.xlane.f32.xlu0 %v294
    %v299 = vpop.xlane.xlu0 %298
    %300 = vadd.xlane.f32.xlu0 %v295
    %v301 = vpop.xlane.xlu0 %300
    %v302 = vrcp.pop 128.0
    %v303 = vmul.f32 %v299, %v302
    %v304 = vmul.f32 %v301, %v302
    %v305 = vsub.f32 %v294, %v303
    %v306 = vsub.f32 %v295, %v304
    %v307 = vmul.f32 %v305, %v305
    %v308 = vmul.f32 %v306, %v306
    %309 = vadd.xlane.f32.xlu0 %v307
    %v310 = vpop.xlane.xlu0 %309
    %311 = vadd.xlane.f32.xlu0 %v308
    %v312 = vpop.xlane.xlu0 %311
    %v313 = vmul.f32 %v310, %v302
    %v314 = vmul.f32 %v312, %v302
    %v315 = vadd.f32 %v313, 1e-12
    %v316 = vadd.f32 %v314, 1e-12
    %v317 = vrsqrt.pop %v315
    %v318 = vrsqrt.pop %v316
    %v319 = vmul.f32 %v305, %v317
    %v320 = vmul.f32 %v306, %v318
    %v322 = vlaneseq
    %v323 = vshrl.u32 %v322, 7
    %v324 = vsub.s32 0, %v323
    %v325 = vrot.slane %v296, %v324
    %v327 = vmul.f32 %v319, %v325
    %v328 = vmul.f32 %v320, %v325
    %v330 = vlaneseq
    %v331 = vshrl.u32 %v330, 7
    %v332 = vsub.s32 0, %v331
    %v333 = vrot.slane %v297, %v332
    %v335 = vadd.f32 %v327, %v333
    %v336 = vadd.f32 %v328, %v333
    %v337 = vld [vmem:[%s1] sm:$0x3]
    %v338 = vpack.c.bf16 %v336, %v335
    %v339 = vld [vmem:[#allocation7] sm:$0xf]
    %v340 = vld [vmem:[#allocation7 + $0x4] sm:$0xf]
    %v341 = vld [vmem:[#allocation7 + $0x8] sm:$0xf]
    %v342 = vld [vmem:[#allocation7 + $0xc] sm:$0xf]
    %v343 = vld [vmem:[#allocation7 + $0x10] sm:$0xf]
    %v344 = vld [vmem:[#allocation7 + $0x14] sm:$0xf]
    %v345 = vld [vmem:[#allocation7 + $0x18] sm:$0xf]
    %v346 = vld [vmem:[#allocation7 + $0x1c] sm:$0xf]
    %v347 = vld [vmem:[#allocation7 + $0x20] sm:$0xf]
    %v348 = vld [vmem:[#allocation7 + $0x24] sm:$0xf]
    %v349 = vld [vmem:[#allocation7 + $0x28] sm:$0xf]
    %v350 = vld [vmem:[#allocation7 + $0x2c] sm:$0xf]
    %v351 = vld [vmem:[#allocation7 + $0x30] sm:$0xf]
    %v352 = vld [vmem:[#allocation7 + $0x34] sm:$0xf]
    %v353 = vld [vmem:[#allocation7 + $0x38] sm:$0xf]
    %v354 = vld [vmem:[#allocation7 + $0x3c] sm:$0xf]
    %v355 = vld [vmem:[%s5] sm:$0x1]
    %v357 = vlaneseq
    %v358 = vshrl.u32 %v357, 7
    %v359 = vsub.s32 0, %v358
    %v360 = vrot.slane %v355, %v359
    %v378 = vunpack.c.l.b16 %v339
    %v379 = vunpack.c.l.b16 %v340
    %v380 = vunpack.c.l.b16 %v341
    %v381 = vunpack.c.l.b16 %v342
    %v382 = vunpack.c.l.b16 %v343
    %v383 = vunpack.c.l.b16 %v344
    %v384 = vunpack.c.l.b16 %v345
    %v385 = vunpack.c.l.b16 %v346
    %v386 = vunpack.c.l.b16 %v347
    %v387 = vunpack.c.l.b16 %v348
    %v388 = vunpack.c.l.b16 %v349
    %v389 = vunpack.c.l.b16 %v350
    %v390 = vunpack.c.l.b16 %v351
    %v391 = vunpack.c.l.b16 %v352
    %v392 = vunpack.c.l.b16 %v353
    %v393 = vunpack.c.l.b16 %v354
    %v394 = vpack.c.b16 %v379, %v378
    %v395 = vpack.c.b16 %v381, %v380
    %v396 = vpack.c.b16 %v383, %v382
    %v397 = vpack.c.b16 %v385, %v384
    %v398 = vpack.c.b16 %v387, %v386
    %v399 = vpack.c.b16 %v389, %v388
    %v400 = vpack.c.b16 %v391, %v390
    %v401 = vpack.c.b16 %v393, %v392
    %410 = vmatprep.subr.bf16.mxu0 0
    %411 = vmatpush1.bf16.msra.mxu0 %v394
    %412 = vmatprep.subr.bf16.mxu0 0
    %413 = vmatpush1.bf16.msra.mxu0 %v395
    %414 = vmatprep.subr.bf16.mxu0 0
    %415 = vmatpush1.bf16.msra.mxu0 %v396
    %416 = vmatprep.subr.bf16.mxu0 0
    %417 = vmatpush1.bf16.msra.mxu0 %v397
    %418 = vmatprep.subr.bf16.mxu0 0
    %419 = vmatpush1.bf16.msra.mxu0 %v398
    %420 = vmatprep.subr.bf16.mxu0 0
    %421 = vmatpush1.bf16.msra.mxu0 %v399
    %422 = vmatprep.subr.bf16.mxu0 0
    %423 = vmatpush1.bf16.msra.mxu0 %v400
    %424 = vmatprep.subr.bf16.mxu0 0
    %425 = vmatpush1.bf16.msra.mxu0 %v401
    %426 = vmatprep.subr.bf16.mxu0 0
    %427 = vmatpush1.bf16.msra.mxu0 0
    %428 = vmatprep.subr.bf16.mxu0 0
    %429 = vmatpush1.bf16.msra.mxu0 0
    %430 = vmatprep.subr.bf16.mxu0 0
    %431 = vmatpush1.bf16.msra.mxu0 0
    %432 = vmatprep.subr.bf16.mxu0 0
    %433 = vmatpush1.bf16.msra.mxu0 0
    %434 = vmatprep.subr.bf16.mxu0 0
    %435 = vmatpush1.bf16.msra.mxu0 0
    %436 = vmatprep.subr.bf16.mxu0 0
    %437 = vmatpush1.bf16.msra.mxu0 0
    %438 = vmatprep.subr.bf16.mxu0 0
    %439 = vmatpush1.bf16.msra.mxu0 0
    %440 = vmatprep.subr.bf16.mxu0 0
    %441 = vmatpush1.bf16.msra.mxu0 0
    %442 = vmatprep.mubr.bf16.mxu0 0
    %443 = vmatmul.mubr.bf16.gmra.mrb[0].mxu0 %v338
    %v444 = vpop.f32.mrb[0].mxu0
    %v445 = vadd.f32 %v360, %v444
    %v446 = vpop.f32.mrb[0].mxu0
    %v447 = vpop.f32.mrb[0].mxu0
    %v448 = vadd.f32 %v360, %v447
    %v449 = vpop.f32.mrb[0].mxu0
    %450 = vdwg.mxu0
    %v451 = vld [vmem:[#allocation8] sm:$0xf]
    %v452 = vld [vmem:[#allocation8 + $0x4] sm:$0xf]
    %v453 = vld [vmem:[#allocation8 + $0x8] sm:$0xf]
    %v454 = vld [vmem:[#allocation8 + $0xc] sm:$0xf]
    %v455 = vld [vmem:[#allocation8 + $0x10] sm:$0xf]
    %v456 = vld [vmem:[#allocation8 + $0x14] sm:$0xf]
    %v457 = vld [vmem:[#allocation8 + $0x18] sm:$0xf]
    %v458 = vld [vmem:[#allocation8 + $0x1c] sm:$0xf]
    %v459 = vld [vmem:[#allocation8 + $0x20] sm:$0xf]
    %v460 = vld [vmem:[#allocation8 + $0x24] sm:$0xf]
    %v461 = vld [vmem:[#allocation8 + $0x28] sm:$0xf]
    %v462 = vld [vmem:[#allocation8 + $0x2c] sm:$0xf]
    %v463 = vld [vmem:[#allocation8 + $0x30] sm:$0xf]
    %v464 = vld [vmem:[#allocation8 + $0x34] sm:$0xf]
    %v465 = vld [vmem:[#allocation8 + $0x38] sm:$0xf]
    %v466 = vld [vmem:[#allocation8 + $0x3c] sm:$0xf]
    %v467 = vld [vmem:[%s7] sm:$0x1]
    %v469 = vlaneseq
    %v470 = vshrl.u32 %v469, 7
    %v471 = vsub.s32 0, %v470
    %v472 = vrot.slane %v467, %v471
    %v490 = vunpack.c.l.b16 %v451
    %v491 = vunpack.c.l.b16 %v452
    %v492 = vunpack.c.l.b16 %v453
    %v493 = vunpack.c.l.b16 %v454
    %v494 = vunpack.c.l.b16 %v455
    %v495 = vunpack.c.l.b16 %v456
    %v496 = vunpack.c.l.b16 %v457
    %v497 = vunpack.c.l.b16 %v458
    %v498 = vunpack.c.l.b16 %v459
    %v499 = vunpack.c.l.b16 %v460
    %v500 = vunpack.c.l.b16 %v461
    %v501 = vunpack.c.l.b16 %v462
    %v502 = vunpack.c.l.b16 %v463
    %v503 = vunpack.c.l.b16 %v464
    %v504 = vunpack.c.l.b16 %v465
    %v505 = vunpack.c.l.b16 %v466
    %v506 = vpack.c.b16 %v491, %v490
    %v507 = vpack.c.b16 %v493, %v492
    %v508 = vpack.c.b16 %v495, %v494
    %v509 = vpack.c.b16 %v497, %v496
    %v510 = vpack.c.b16 %v499, %v498
    %v511 = vpack.c.b16 %v501, %v500
    %v512 = vpack.c.b16 %v503, %v502
    %v513 = vpack.c.b16 %v505, %v504
    %522 = vmatprep.subr.bf16.mxu0 0
    %523 = vmatpush1.bf16.msra.mxu0 %v506
    %524 = vmatprep.subr.bf16.mxu0 0
    %525 = vmatpush1.bf16.msra.mxu0 %v507
    %526 = vmatprep.subr.bf16.mxu0 0
    %527 = vmatpush1.bf16.msra.mxu0 %v508
    %528 = vmatprep.subr.bf16.mxu0 0
    %529 = vmatpush1.bf16.msra.mxu0 %v509
    %530 = vmatprep.subr.bf16.mxu0 0
    %531 = vmatpush1.bf16.msra.mxu0 %v510
    %532 = vmatprep.subr.bf16.mxu0 0
    %533 = vmatpush1.bf16.msra.mxu0 %v511
    %534 = vmatprep.subr.bf16.mxu0 0
    %535 = vmatpush1.bf16.msra.mxu0 %v512
    %536 = vmatprep.subr.bf16.mxu0 0
    %537 = vmatpush1.bf16.msra.mxu0 %v513
    %538 = vmatprep.subr.bf16.mxu0 0
    %539 = vmatpush1.bf16.msra.mxu0 0
    %540 = vmatprep.subr.bf16.mxu0 0
    %541 = vmatpush1.bf16.msra.mxu0 0
    %542 = vmatprep.subr.bf16.mxu0 0
    %543 = vmatpush1.bf16.msra.mxu0 0
    %544 = vmatprep.subr.bf16.mxu0 0
    %545 = vmatpush1.bf16.msra.mxu0 0
    %546 = vmatprep.subr.bf16.mxu0 0
    %547 = vmatpush1.bf16.msra.mxu0 0
    %548 = vmatprep.subr.bf16.mxu0 0
    %549 = vmatpush1.bf16.msra.mxu0 0
    %550 = vmatprep.subr.bf16.mxu0 0
    %551 = vmatpush1.bf16.msra.mxu0 0
    %552 = vmatprep.subr.bf16.mxu0 0
    %553 = vmatpush1.bf16.msra.mxu0 0
    %554 = vmatprep.mubr.bf16.mxu0 0
    %555 = vmatmul.mubr.bf16.gmra.mrb[0].mxu0 %v338
    %v556 = vpop.f32.mrb[0].mxu0
    %v557 = vadd.f32 %v472, %v556
    %v558 = vpop.f32.mrb[0].mxu0
    %v559 = vpop.f32.mrb[0].mxu0
    %v560 = vadd.f32 %v472, %v559
    %v561 = vpop.f32.mrb[0].mxu0
    %562 = vdwg.mxu0
    %v563 = vld [vmem:[#allocation10] sm:$0xf]
    %v564 = vld [vmem:[#allocation10 + $0x4] sm:$0xf]
    %v565 = vld [vmem:[#allocation10 + $0x8] sm:$0xf]
    %v566 = vld [vmem:[#allocation10 + $0xc] sm:$0xf]
    %v567 = vld [vmem:[#allocation10 + $0x10] sm:$0xf]
    %v568 = vld [vmem:[#allocation10 + $0x14] sm:$0xf]
    %v569 = vld [vmem:[#allocation10 + $0x18] sm:$0xf]
    %v570 = vld [vmem:[#allocation10 + $0x1c] sm:$0xf]
    %v571 = vld [vmem:[#allocation10 + $0x20] sm:$0xf]
    %v572 = vld [vmem:[#allocation10 + $0x24] sm:$0xf]
    %v573 = vld [vmem:[#allocation10 + $0x28] sm:$0xf]
    %v574 = vld [vmem:[#allocation10 + $0x2c] sm:$0xf]
    %v575 = vld [vmem:[#allocation10 + $0x30] sm:$0xf]
    %v576 = vld [vmem:[#allocation10 + $0x34] sm:$0xf]
    %v577 = vld [vmem:[#allocation10 + $0x38] sm:$0xf]
    %v578 = vld [vmem:[#allocation10 + $0x3c] sm:$0xf]
    %v579 = vld [vmem:[#allocation11] sm:$0x1]
    %v581 = vlaneseq
    %v582 = vshrl.u32 %v581, 7
    %v583 = vsub.s32 0, %v582
    %v584 = vrot.slane %v579, %v583
    %v602 = vunpack.c.l.b16 %v563
    %v603 = vunpack.c.l.b16 %v564
    %v604 = vunpack.c.l.b16 %v565
    %v605 = vunpack.c.l.b16 %v566
    %v606 = vunpack.c.l.b16 %v567
    %v607 = vunpack.c.l.b16 %v568
    %v608 = vunpack.c.l.b16 %v569
    %v609 = vunpack.c.l.b16 %v570
    %v610 = vunpack.c.l.b16 %v571
    %v611 = vunpack.c.l.b16 %v572
    %v612 = vunpack.c.l.b16 %v573
    %v613 = vunpack.c.l.b16 %v574
    %v614 = vunpack.c.l.b16 %v575
    %v615 = vunpack.c.l.b16 %v576
    %v616 = vunpack.c.l.b16 %v577
    %v617 = vunpack.c.l.b16 %v578
    %v618 = vpack.c.b16 %v603, %v602
    %v619 = vpack.c.b16 %v605, %v604
    %v620 = vpack.c.b16 %v607, %v606
    %v621 = vpack.c.b16 %v609, %v608
    %v622 = vpack.c.b16 %v611, %v610
    %v623 = vpack.c.b16 %v613, %v612
    %v624 = vpack.c.b16 %v615, %v614
    %v625 = vpack.c.b16 %v617, %v616
    %634 = vmatprep.subr.bf16.mxu0 0
    %635 = vmatpush1.bf16.msra.mxu0 %v618
    %636 = vmatprep.subr.bf16.mxu0 0
    %637 = vmatpush1.bf16.msra.mxu0 %v619
    %638 = vmatprep.subr.bf16.mxu0 0
    %639 = vmatpush1.bf16.msra.mxu0 %v620
    %640 = vmatprep.subr.bf16.mxu0 0
    %641 = vmatpush1.bf16.msra.mxu0 %v621
    %642 = vmatprep.subr.bf16.mxu0 0
    %643 = vmatpush1.bf16.msra.mxu0 %v622
    %644 = vmatprep.subr.bf16.mxu0 0
    %645 = vmatpush1.bf16.msra.mxu0 %v623
    %646 = vmatprep.subr.bf16.mxu0 0
    %647 = vmatpush1.bf16.msra.mxu0 %v624
    %648 = vmatprep.subr.bf16.mxu0 0
    %649 = vmatpush1.bf16.msra.mxu0 %v625
    %650 = vmatprep.subr.bf16.mxu0 0
    %651 = vmatpush1.bf16.msra.mxu0 0
    %652 = vmatprep.subr.bf16.mxu0 0
    %653 = vmatpush1.bf16.msra.mxu0 0
    %654 = vmatprep.subr.bf16.mxu0 0
    %655 = vmatpush1.bf16.msra.mxu0 0
    %656 = vmatprep.subr.bf16.mxu0 0
    %657 = vmatpush1.bf16.msra.mxu0 0
    %658 = vmatprep.subr.bf16.mxu0 0
    %659 = vmatpush1.bf16.msra.mxu0 0
    %660 = vmatprep.subr.bf16.mxu0 0
    %661 = vmatpush1.bf16.msra.mxu0 0
    %662 = vmatprep.subr.bf16.mxu0 0
    %663 = vmatpush1.bf16.msra.mxu0 0
    %664 = vmatprep.subr.bf16.mxu0 0
    %665 = vmatpush1.bf16.msra.mxu0 0
    %666 = vmatprep.mubr.bf16.mxu0 0
    %667 = vmatmul.mubr.bf16.gmra.mrb[0].mxu0 %v338
    %v668 = vpop.f32.mrb[0].mxu0
    %v669 = vadd.f32 %v584, %v668
    %v670 = vpop.f32.mrb[0].mxu0
    %v671 = vpop.f32.mrb[0].mxu0
    %v672 = vadd.f32 %v584, %v671
    %v673 = vpop.f32.mrb[0].mxu0
    %674 = vdwg.mxu0
    %v675 = vld [vmem:[#allocation13] sm:$0xf]
    %v676 = vld [vmem:[#allocation13 + $0x4] sm:$0xf]
    %v677 = vld [vmem:[#allocation13 + $0x8] sm:$0xf]
    %v678 = vld [vmem:[#allocation13 + $0xc] sm:$0xf]
    %v679 = vld [vmem:[#allocation13 + $0x10] sm:$0xf]
    %v680 = vld [vmem:[#allocation13 + $0x14] sm:$0xf]
    %v681 = vld [vmem:[#allocation13 + $0x18] sm:$0xf]
    %v682 = vld [vmem:[#allocation13 + $0x1c] sm:$0xf]
    %v683 = vld [vmem:[#allocation13 + $0x20] sm:$0xf]
    %v684 = vld [vmem:[#allocation13 + $0x24] sm:$0xf]
    %v685 = vld [vmem:[#allocation13 + $0x28] sm:$0xf]
    %v686 = vld [vmem:[#allocation13 + $0x2c] sm:$0xf]
    %v687 = vld [vmem:[#allocation13 + $0x30] sm:$0xf]
    %v688 = vld [vmem:[#allocation13 + $0x34] sm:$0xf]
    %v689 = vld [vmem:[#allocation13 + $0x38] sm:$0xf]
    %v690 = vld [vmem:[#allocation13 + $0x3c] sm:$0xf]
    %v691 = vlaneseq
    %v692 = vshrl.u32 %v691, 7
    %v693 = vsub.s32 0, %v692
    %v694 = vrot.slane %v337, %v693
    %v695 = vpack.c.bf16 %v445, %v445
    %v696 = vpack.c.bf16 %v557, %v557
    %v697 = vpack.c.bf16 %v669, %v669
    %vm698 = vcmask 523264
    %v700 = vsel %vm698, %v695, 0
    %v703 = vsel %vm698, %v696, 0
    %705 = vmatprep.subr.bf16.mxu0 0
    %706 = vmatpush1.bf16.xpose.msra.mxu0 %v703
    %707 = vmatprep.subr.bf16.mxu0 0
    %708 = vmatpush1.bf16.xpose.msra.mxu0 0
    %709 = vmatprep.subr.bf16.mxu0 0
    %710 = vmatpush1.bf16.xpose.msra.mxu0 0
    %711 = vmatprep.subr.bf16.mxu0 0
    %712 = vmatpush1.bf16.xpose.msra.mxu0 0
    %713 = vmatprep.subr.bf16.mxu0 0
    %714 = vmatpush1.bf16.xpose.msra.mxu0 0
    %715 = vmatprep.subr.bf16.mxu0 0
    %716 = vmatpush1.bf16.xpose.msra.mxu0 0
    %717 = vmatprep.subr.bf16.mxu0 0
    %718 = vmatpush1.bf16.xpose.msra.mxu0 0
    %719 = vmatprep.subr.bf16.mxu0 0
    %720 = vmatpush1.bf16.xpose.msra.mxu0 0
    %721 = vmatprep.subr.bf16.mxu0 0
    %722 = vmatpush1.bf16.xpose.msra.mxu0 0
    %723 = vmatprep.subr.bf16.mxu0 0
    %724 = vmatpush1.bf16.xpose.msra.mxu0 0
    %725 = vmatprep.subr.bf16.mxu0 0
    %726 = vmatpush1.bf16.xpose.msra.mxu0 0
    %727 = vmatprep.subr.bf16.mxu0 0
    %728 = vmatpush1.bf16.xpose.msra.mxu0 0
    %729 = vmatprep.subr.bf16.mxu0 0
    %730 = vmatpush1.bf16.xpose.msra.mxu0 0
    %731 = vmatprep.subr.bf16.mxu0 0
    %732 = vmatpush1.bf16.xpose.msra.mxu0 0
    %733 = vmatprep.subr.bf16.mxu0 0
    %734 = vmatpush1.bf16.xpose.msra.mxu0 0
    %735 = vmatprep.subr.bf16.mxu0 0
    %736 = vmatpush1.bf16.xpose.msra.mxu0 0
    %737 = vmatprep.mubr.bf16.mxu0 0
    %738 = vmatmul.mubr.bf16.gmra.mrb[0].mxu0 %v700
    %v739 = vpop.f32.mrb[0].mxu0
    %v740 = vadd.f32 %v694, %v739
    %v741 = vpop.f32.mrb[0].mxu0
    %v742 = vpop.f32.mrb[0].mxu0
    %v743 = vpop.f32.mrb[0].mxu0
    %744 = vdwg.mxu0
    %vm745 = vcmask 64512
    %v746 = vsel %vm745, %v740, -inf
    %747 = vmax.xlane.f32.xlu0 %v746
    %v748 = vpop.xlane.xlu0 %747
    %v749 = vsub.f32 %v740, %v748
    %v750 = vmul.f32 %v749, 1.442695
    %v751 = vpow.pop %v750
    %v752 = vsel %vm745, %v751, 0.0
    %753 = vadd.xlane.f32.xlu0 %v752
    %v754 = vpop.xlane.xlu0 %753
    %v755 = vrcp.pop %v754
    %v756 = vmul.f32 %v751, %v755
    %v757 = vpack.c.bf16 %v756, %v756
    %v759 = vsel %vm745, %v757, 0
    %vm761 = vcmask 1043456
    %v763 = vsel %vm761, %v697, 0
    %765 = vmatprep.subr.bf16.mxu0 0
    %766 = vmatpush1.bf16.msra.mxu0 %v763
    %767 = vmatprep.subr.bf16.mxu0 0
    %768 = vmatpush1.bf16.msra.mxu0 0
    %769 = vmatprep.subr.bf16.mxu0 0
    %770 = vmatpush1.bf16.msra.mxu0 0
    %771 = vmatprep.subr.bf16.mxu0 0
    %772 = vmatpush1.bf16.msra.mxu0 0
    %773 = vmatprep.subr.bf16.mxu0 0
    %774 = vmatpush1.bf16.msra.mxu0 0
    %775 = vmatprep.subr.bf16.mxu0 0
    %776 = vmatpush1.bf16.msra.mxu0 0
    %777 = vmatprep.subr.bf16.mxu0 0
    %778 = vmatpush1.bf16.msra.mxu0 0
    %779 = vmatprep.subr.bf16.mxu0 0
    %780 = vmatpush1.bf16.msra.mxu0 0
    %781 = vmatprep.subr.bf16.mxu0 0
    %782 = vmatpush1.bf16.msra.mxu0 0
    %783 = vmatprep.subr.bf16.mxu0 0
    %784 = vmatpush1.bf16.msra.mxu0 0
    %785 = vmatprep.subr.bf16.mxu0 0
    %786 = vmatpush1.bf16.msra.mxu0 0
    %787 = vmatprep.subr.bf16.mxu0 0
    %788 = vmatpush1.bf16.msra.mxu0 0
    %789 = vmatprep.subr.bf16.mxu0 0
    %790 = vmatpush1.bf16.msra.mxu0 0
    %791 = vmatprep.subr.bf16.mxu0 0
    %792 = vmatpush1.bf16.msra.mxu0 0
    %793 = vmatprep.subr.bf16.mxu0 0
    %794 = vmatpush1.bf16.msra.mxu0 0
    %795 = vmatprep.subr.bf16.mxu0 0
    %796 = vmatpush1.bf16.msra.mxu0 0
    %797 = vmatprep.mubr.bf16.mxu0 0
    %798 = vmatmul.mubr.bf16.gmra.mrb[0].mxu0 %v759
    %v799 = vpop.f32.mrb[0].mxu0
    %v800 = vadd.f32 0.0, %v799
    %v801 = vpop.f32.mrb[0].mxu0
    %v802 = vpop.f32.mrb[0].mxu0
    %v803 = vpop.f32.mrb[0].mxu0
    %804 = vdwg.mxu0
    %v805 = vpack.c.bf16 %v800, %v800
    %807 = vrot.lane.b32.xlu0 %v695, 64
    %v808 = vpop.permute.xlu0 %807
    %810 = vrot.lane.b32.xlu0 %v696, 64
    %v811 = vpop.permute.xlu0 %810
    %v813 = vsel %vm698, %v808, 0
    %v816 = vsel %vm698, %v811, 0
    %818 = vmatprep.subr.bf16.mxu0 0
    %819 = vmatpush1.bf16.xpose.msra.mxu0 %v816
    %820 = vmatprep.subr.bf16.mxu0 0
    %821 = vmatpush1.bf16.xpose.msra.mxu0 0
    %822 = vmatprep.subr.bf16.mxu0 0
    %823 = vmatpush1.bf16.xpose.msra.mxu0 0
    %824 = vmatprep.subr.bf16.mxu0 0
    %825 = vmatpush1.bf16.xpose.msra.mxu0 0
    %826 = vmatprep.subr.bf16.mxu0 0
    %827 = vmatpush1.bf16.xpose.msra.mxu0 0
    %828 = vmatprep.subr.bf16.mxu0 0
    %829 = vmatpush1.bf16.xpose.msra.mxu0 0
    %830 = vmatprep.subr.bf16.mxu0 0
    %831 = vmatpush1.bf16.xpose.msra.mxu0 0
    %832 = vmatprep.subr.bf16.mxu0 0
    %833 = vmatpush1.bf16.xpose.msra.mxu0 0
    %834 = vmatprep.subr.bf16.mxu0 0
    %835 = vmatpush1.bf16.xpose.msra.mxu0 0
    %836 = vmatprep.subr.bf16.mxu0 0
    %837 = vmatpush1.bf16.xpose.msra.mxu0 0
    %838 = vmatprep.subr.bf16.mxu0 0
    %839 = vmatpush1.bf16.xpose.msra.mxu0 0
    %840 = vmatprep.subr.bf16.mxu0 0
    %841 = vmatpush1.bf16.xpose.msra.mxu0 0
    %842 = vmatprep.subr.bf16.mxu0 0
    %843 = vmatpush1.bf16.xpose.msra.mxu0 0
    %844 = vmatprep.subr.bf16.mxu0 0
    %845 = vmatpush1.bf16.xpose.msra.mxu0 0
    %846 = vmatprep.subr.bf16.mxu0 0
    %847 = vmatpush1.bf16.xpose.msra.mxu0 0
    %848 = vmatprep.subr.bf16.mxu0 0
    %849 = vmatpush1.bf16.xpose.msra.mxu0 0
    %850 = vmatprep.mubr.bf16.mxu0 0
    %851 = vmatmul.mubr.bf16.gmra.mrb[0].mxu0 %v813
    %v852 = vpop.f32.mrb[0].mxu0
    %v853 = vadd.f32 %v694, %v852
    %v854 = vpop.f32.mrb[0].mxu0
    %v855 = vpop.f32.mrb[0].mxu0
    %v856 = vpop.f32.mrb[0].mxu0
    %857 = vdwg.mxu0
    %v858 = vsel %vm745, %v853, -inf
    %859 = vmax.xlane.f32.xlu0 %v858
    %v860 = vpop.xlane.xlu0 %859
    %v861 = vsub.f32 %v853, %v860
    %v862 = vmul.f32 %v861, 1.442695
    %v863 = vpow.pop %v862
    %v864 = vsel %vm745, %v863, 0.0
    %865 = vadd.xlane.f32.xlu0 %v864
    %v866 = vpop.xlane.xlu0 %865
    %v867 = vrcp.pop %v866
    %v868 = vmul.f32 %v863, %v867
    %v869 = vpack.c.bf16 %v868, %v868
    %871 = vrot.lane.b32.xlu0 %v697, 64
    %v872 = vpop.permute.xlu0 %871
    %v874 = vsel %vm745, %v869, 0
    %v877 = vsel %vm761, %v872, 0
    %879 = vmatprep.subr.bf16.mxu0 0
    %880 = vmatpush1.bf16.msra.mxu0 %v877
    %881 = vmatprep.subr.bf16.mxu0 0
    %882 = vmatpush1.bf16.msra.mxu0 0
    %883 = vmatprep.subr.bf16.mxu0 0
    %884 = vmatpush1.bf16.msra.mxu0 0
    %885 = vmatprep.subr.bf16.mxu0 0
    %886 = vmatpush1.bf16.msra.mxu0 0
    %887 = vmatprep.subr.bf16.mxu0 0
    %888 = vmatpush1.bf16.msra.mxu0 0
    %889 = vmatprep.subr.bf16.mxu0 0
    %890 = vmatpush1.bf16.msra.mxu0 0
    %891 = vmatprep.subr.bf16.mxu0 0
    %892 = vmatpush1.bf16.msra.mxu0 0
    %893 = vmatprep.subr.bf16.mxu0 0
    %894 = vmatpush1.bf16.msra.mxu0 0
    %895 = vmatprep.subr.bf16.mxu0 0
    %896 = vmatpush1.bf16.msra.mxu0 0
    %897 = vmatprep.subr.bf16.mxu0 0
    %898 = vmatpush1.bf16.msra.mxu0 0
    %899 = vmatprep.subr.bf16.mxu0 0
    %900 = vmatpush1.bf16.msra.mxu0 0
    %901 = vmatprep.subr.bf16.mxu0 0
    %902 = vmatpush1.bf16.msra.mxu0 0
    %903 = vmatprep.subr.bf16.mxu0 0
    %904 = vmatpush1.bf16.msra.mxu0 0
    %905 = vmatprep.subr.bf16.mxu0 0
    %906 = vmatpush1.bf16.msra.mxu0 0
    %907 = vmatprep.subr.bf16.mxu0 0
    %908 = vmatpush1.bf16.msra.mxu0 0
    %909 = vmatprep.subr.bf16.mxu0 0
    %910 = vmatpush1.bf16.msra.mxu0 0
    %911 = vmatprep.mubr.bf16.mxu0 0
    %912 = vmatmul.mubr.bf16.gmra.mrb[0].mxu0 %v874
    %v913 = vpop.f32.mrb[0].mxu0
    %v914 = vadd.f32 0.0, %v913
    %v915 = vpop.f32.mrb[0].mxu0
    %v916 = vpop.f32.mrb[0].mxu0
    %v917 = vpop.f32.mrb[0].mxu0
    %918 = vdwg.mxu0
    %v919 = vpack.c.bf16 %v914, %v914
    %v928 = vunpack.c.l.b16 %v683
    %v929 = vunpack.c.l.b16 %v684
    %v930 = vunpack.c.l.b16 %v685
    %v931 = vunpack.c.l.b16 %v686
    %v932 = vunpack.c.l.b16 %v687
    %v933 = vunpack.c.l.b16 %v688
    %v934 = vunpack.c.l.b16 %v689
    %v935 = vunpack.c.l.b16 %v690
    %v936 = vpack.c.b16 %v929, %v928
    %v937 = vpack.c.b16 %v931, %v930
    %v938 = vpack.c.b16 %v933, %v932
    %v939 = vpack.c.b16 %v935, %v934
    %v945 = vsel %vm698, %v919, 0
    %947 = vmatprep.subr.bf16.mxu0 0
    %948 = vmatpush1.bf16.msra.mxu0 %v936
    %949 = vmatprep.subr.bf16.mxu0 0
    %950 = vmatpush1.bf16.msra.mxu0 %v937
    %951 = vmatprep.subr.bf16.mxu0 0
    %952 = vmatpush1.bf16.msra.mxu0 %v938
    %953 = vmatprep.subr.bf16.mxu0 0
    %954 = vmatpush1.bf16.msra.mxu0 %v939
    %955 = vmatprep.subr.bf16.mxu0 0
    %956 = vmatpush1.bf16.msra.mxu0 0
    %957 = vmatprep.subr.bf16.mxu0 0
    %958 = vmatpush1.bf16.msra.mxu0 0
    %959 = vmatprep.subr.bf16.mxu0 0
    %960 = vmatpush1.bf16.msra.mxu0 0
    %961 = vmatprep.subr.bf16.mxu0 0
    %962 = vmatpush1.bf16.msra.mxu0 0
    %963 = vmatprep.subr.bf16.mxu0 0
    %964 = vmatpush1.bf16.msra.mxu0 0
    %965 = vmatprep.subr.bf16.mxu0 0
    %966 = vmatpush1.bf16.msra.mxu0 0
    %967 = vmatprep.subr.bf16.mxu0 0
    %968 = vmatpush1.bf16.msra.mxu0 0
    %969 = vmatprep.subr.bf16.mxu0 0
    %970 = vmatpush1.bf16.msra.mxu0 0
    %971 = vmatprep.subr.bf16.mxu0 0
    %972 = vmatpush1.bf16.msra.mxu0 0
    %973 = vmatprep.subr.bf16.mxu0 0
    %974 = vmatpush1.bf16.msra.mxu0 0
    %975 = vmatprep.subr.bf16.mxu0 0
    %976 = vmatpush1.bf16.msra.mxu0 0
    %977 = vmatprep.subr.bf16.mxu0 0
    %978 = vmatpush1.bf16.msra.mxu0 0
    %979 = vmatprep.mubr.bf16.mxu0 0
    %980 = vmatmul.mubr.bf16.gmra.mrb[0].mxu0 %v945
    %v981 = vpop.f32.mrb[0].mxu0
    %v982 = vadd.f32 0.0, %v981
    %v983 = vpop.f32.mrb[0].mxu0
    %v984 = vpop.f32.mrb[0].mxu0
    %v985 = vpop.f32.mrb[0].mxu0
    %986 = vdwg.mxu0
    %v995 = vunpack.c.l.b16 %v675
    %v996 = vunpack.c.l.b16 %v676
    %v997 = vunpack.c.l.b16 %v677
    %v998 = vunpack.c.l.b16 %v678
    %v999 = vunpack.c.l.b16 %v679
    %v1000 = vunpack.c.l.b16 %v680
    %v1001 = vunpack.c.l.b16 %v681
    %v1002 = vunpack.c.l.b16 %v682
    %v1003 = vpack.c.b16 %v996, %v995
    %v1004 = vpack.c.b16 %v998, %v997
    %v1005 = vpack.c.b16 %v1000, %v999
    %v1006 = vpack.c.b16 %v1002, %v1001
    %v1012 = vsel %vm698, %v805, 0
    %1014 = vmatprep.subr.bf16.mxu0 0
    %1015 = vmatpush1.bf16.msra.mxu0 %v1003
    %1016 = vmatprep.subr.bf16.mxu0 0
    %1017 = vmatpush1.bf16.msra.mxu0 %v1004
    %1018 = vmatprep.subr.bf16.mxu0 0
    %1019 = vmatpush1.bf16.msra.mxu0 %v1005
    %1020 = vmatprep.subr.bf16.mxu0 0
    %1021 = vmatpush1.bf16.msra.mxu0 %v1006
    %1022 = vmatprep.subr.bf16.mxu0 0
    %1023 = vmatpush1.bf16.msra.mxu0 0
    %1024 = vmatprep.subr.bf16.mxu0 0
    %1025 = vmatpush1.bf16.msra.mxu0 0
    %1026 = vmatprep.subr.bf16.mxu0 0
    %1027 = vmatpush1.bf16.msra.mxu0 0
    %1028 = vmatprep.subr.bf16.mxu0 0
    %1029 = vmatpush1.bf16.msra.mxu0 0
    %1030 = vmatprep.subr.bf16.mxu0 0
    %1031 = vmatpush1.bf16.msra.mxu0 0
    %1032 = vmatprep.subr.bf16.mxu0 0
    %1033 = vmatpush1.bf16.msra.mxu0 0
    %1034 = vmatprep.subr.bf16.mxu0 0
    %1035 = vmatpush1.bf16.msra.mxu0 0
    %1036 = vmatprep.subr.bf16.mxu0 0
    %1037 = vmatpush1.bf16.msra.mxu0 0
    %1038 = vmatprep.subr.bf16.mxu0 0
    %1039 = vmatpush1.bf16.msra.mxu0 0
    %1040 = vmatprep.subr.bf16.mxu0 0
    %1041 = vmatpush1.bf16.msra.mxu0 0
    %1042 = vmatprep.subr.bf16.mxu0 0
    %1043 = vmatpush1.bf16.msra.mxu0 0
    %1044 = vmatprep.subr.bf16.mxu0 0
    %1045 = vmatpush1.bf16.msra.mxu0 0
    %1046 = vmatprep.mubr.bf16.mxu0 0
    %1047 = vmatmul.mubr.bf16.gmra.mrb[0].mxu0 %v1012
    %v1048 = vpop.f32.mrb[0].mxu0
    %v1049 = vadd.f32 %v982, %v1048
    %v1050 = vpop.f32.mrb[0].mxu0
    %v1051 = vpop.f32.mrb[0].mxu0
    %v1052 = vpop.f32.mrb[0].mxu0
    %1053 = vdwg.mxu0
    %v1054 = vlaneseq
    %v1055 = vshrl.u32 %v1054, 7
    %v1056 = vsub.s32 1, %v1055
    %v1057 = vrot.slane %v337, %v1056
    %v1058 = vpack.c.bf16 %v448, %v448
    %v1059 = vpack.c.bf16 %v560, %v560
    %v1060 = vpack.c.bf16 %v672, %v672
    %v1062 = vsel %vm698, %v1058, 0
    %v1065 = vsel %vm698, %v1059, 0
    %1067 = vmatprep.subr.bf16.mxu0 0
    %1068 = vmatpush1.bf16.xpose.msra.mxu0 %v1065
    %1069 = vmatprep.subr.bf16.mxu0 0
    %1070 = vmatpush1.bf16.xpose.msra.mxu0 0
    %1071 = vmatprep.subr.bf16.mxu0 0
    %1072 = vmatpush1.bf16.xpose.msra.mxu0 0
    %1073 = vmatprep.subr.bf16.mxu0 0
    %1074 = vmatpush1.bf16.xpose.msra.mxu0 0
    %1075 = vmatprep.subr.bf16.mxu0 0
    %1076 = vmatpush1.bf16.xpose.msra.mxu0 0
    %1077 = vmatprep.subr.bf16.mxu0 0
    %1078 = vmatpush1.bf16.xpose.msra.mxu0 0
    %1079 = vmatprep.subr.bf16.mxu0 0
    %1080 = vmatpush1.bf16.xpose.msra.mxu0 0
    %1081 = vmatprep.subr.bf16.mxu0 0
    %1082 = vmatpush1.bf16.xpose.msra.mxu0 0
    %1083 = vmatprep.subr.bf16.mxu0 0
    %1084 = vmatpush1.bf16.xpose.msra.mxu0 0
    %1085 = vmatprep.subr.bf16.mxu0 0
    %1086 = vmatpush1.bf16.xpose.msra.mxu0 0
    %1087 = vmatprep.subr.bf16.mxu0 0
    %1088 = vmatpush1.bf16.xpose.msra.mxu0 0
    %1089 = vmatprep.subr.bf16.mxu0 0
    %1090 = vmatpush1.bf16.xpose.msra.mxu0 0
    %1091 = vmatprep.subr.bf16.mxu0 0
    %1092 = vmatpush1.bf16.xpose.msra.mxu0 0
    %1093 = vmatprep.subr.bf16.mxu0 0
    %1094 = vmatpush1.bf16.xpose.msra.mxu0 0
    %1095 = vmatprep.subr.bf16.mxu0 0
    %1096 = vmatpush1.bf16.xpose.msra.mxu0 0
    %1097 = vmatprep.subr.bf16.mxu0 0
    %1098 = vmatpush1.bf16.xpose.msra.mxu0 0
    %1099 = vmatprep.mubr.bf16.mxu0 0
    %1100 = vmatmul.mubr.bf16.gmra.mrb[0].mxu0 %v1062
    %v1101 = vpop.f32.mrb[0].mxu0
    %v1102 = vadd.f32 %v1057, %v1101
    %v1103 = vpop.f32.mrb[0].mxu0
    %v1104 = vpop.f32.mrb[0].mxu0
    %v1105 = vpop.f32.mrb[0].mxu0
    %1106 = vdwg.mxu0
    %v1107 = vsel %vm745, %v1102, -inf
    %1108 = vmax.xlane.f32.xlu0 %v1107
    %v1109 = vpop.xlane.xlu0 %1108
    %v1110 = vsub.f32 %v1102, %v1109
    %v1111 = vmul.f32 %v1110, 1.442695
    %v1112 = vpow.pop %v1111
    %v1113 = vsel %vm745, %v1112, 0.0
    %1114 = vadd.xlane.f32.xlu0 %v1113
    %v1115 = vpop.xlane.xlu0 %1114
    %v1116 = vrcp.pop %v1115
    %v1117 = vmul.f32 %v1112, %v1116
    %v1118 = vpack.c.bf16 %v1117, %v1117
    %v1120 = vsel %vm745, %v1118, 0
    %v1123 = vsel %vm761, %v1060, 0
    %1125 = vmatprep.subr.bf16.mxu0 0
    %1126 = vmatpush1.bf16.msra.mxu0 %v1123
    %1127 = vmatprep.subr.bf16.mxu0 0
    %1128 = vmatpush1.bf16.msra.mxu0 0
    %1129 = vmatprep.subr.bf16.mxu0 0
    %1130 = vmatpush1.bf16.msra.mxu0 0
    %1131 = vmatprep.subr.bf16.mxu0 0
    %1132 = vmatpush1.bf16.msra.mxu0 0
    %1133 = vmatprep.subr.bf16.mxu0 0
    %1134 = vmatpush1.bf16.msra.mxu0 0
    %1135 = vmatprep.subr.bf16.mxu0 0
    %1136 = vmatpush1.bf16.msra.mxu0 0
    %1137 = vmatprep.subr.bf16.mxu0 0
    %1138 = vmatpush1.bf16.msra.mxu0 0
    %1139 = vmatprep.subr.bf16.mxu0 0
    %1140 = vmatpush1.bf16.msra.mxu0 0
    %1141 = vmatprep.subr.bf16.mxu0 0
    %1142 = vmatpush1.bf16.msra.mxu0 0
    %1143 = vmatprep.subr.bf16.mxu0 0
    %1144 = vmatpush1.bf16.msra.mxu0 0
    %1145 = vmatprep.subr.bf16.mxu0 0
    %1146 = vmatpush1.bf16.msra.mxu0 0
    %1147 = vmatprep.subr.bf16.mxu0 0
    %1148 = vmatpush1.bf16.msra.mxu0 0
    %1149 = vmatprep.subr.bf16.mxu0 0
    %1150 = vmatpush1.bf16.msra.mxu0 0
    %1151 = vmatprep.subr.bf16.mxu0 0
    %1152 = vmatpush1.bf16.msra.mxu0 0
    %1153 = vmatprep.subr.bf16.mxu0 0
    %1154 = vmatpush1.bf16.msra.mxu0 0
    %1155 = vmatprep.subr.bf16.mxu0 0
    %1156 = vmatpush1.bf16.msra.mxu0 0
    %1157 = vmatprep.mubr.bf16.mxu0 0
    %1158 = vmatmul.mubr.bf16.gmra.mrb[0].mxu0 %v1120
    %v1159 = vpop.f32.mrb[0].mxu0
    %v1160 = vadd.f32 0.0, %v1159
    %v1161 = vpop.f32.mrb[0].mxu0
    %v1162 = vpop.f32.mrb[0].mxu0
    %v1163 = vpop.f32.mrb[0].mxu0
    %1164 = vdwg.mxu0
    %v1165 = vpack.c.bf16 %v1160, %v1160
    %1167 = vrot.lane.b32.xlu0 %v1058, 64
    %v1168 = vpop.permute.xlu0 %1167
    %1170 = vrot.lane.b32.xlu0 %v1059, 64
    %v1171 = vpop.permute.xlu0 %1170
    %v1173 = vsel %vm698, %v1168, 0
    %v1176 = vsel %vm698, %v1171, 0
    %1178 = vmatprep.subr.bf16.mxu0 0
    %1179 = vmatpush1.bf16.xpose.msra.mxu0 %v1176
    %1180 = vmatprep.subr.bf16.mxu0 0
    %1181 = vmatpush1.bf16.xpose.msra.mxu0 0
    %1182 = vmatprep.subr.bf16.mxu0 0
    %1183 = vmatpush1.bf16.xpose.msra.mxu0 0
    %1184 = vmatprep.subr.bf16.mxu0 0
    %1185 = vmatpush1.bf16.xpose.msra.mxu0 0
    %1186 = vmatprep.subr.bf16.mxu0 0
    %1187 = vmatpush1.bf16.xpose.msra.mxu0 0
    %1188 = vmatprep.subr.bf16.mxu0 0
    %1189 = vmatpush1.bf16.xpose.msra.mxu0 0
    %1190 = vmatprep.subr.bf16.mxu0 0
    %1191 = vmatpush1.bf16.xpose.msra.mxu0 0
    %1192 = vmatprep.subr.bf16.mxu0 0
    %1193 = vmatpush1.bf16.xpose.msra.mxu0 0
    %1194 = vmatprep.subr.bf16.mxu0 0
    %1195 = vmatpush1.bf16.xpose.msra.mxu0 0
    %1196 = vmatprep.subr.bf16.mxu0 0
    %1197 = vmatpush1.bf16.xpose.msra.mxu0 0
    %1198 = vmatprep.subr.bf16.mxu0 0
    %1199 = vmatpush1.bf16.xpose.msra.mxu0 0
    %1200 = vmatprep.subr.bf16.mxu0 0
    %1201 = vmatpush1.bf16.xpose.msra.mxu0 0
    %1202 = vmatprep.subr.bf16.mxu0 0
    %1203 = vmatpush1.bf16.xpose.msra.mxu0 0
    %1204 = vmatprep.subr.bf16.mxu0 0
    %1205 = vmatpush1.bf16.xpose.msra.mxu0 0
    %1206 = vmatprep.subr.bf16.mxu0 0
    %1207 = vmatpush1.bf16.xpose.msra.mxu0 0
    %1208 = vmatprep.subr.bf16.mxu0 0
    %1209 = vmatpush1.bf16.xpose.msra.mxu0 0
    %1210 = vmatprep.mubr.bf16.mxu0 0
    %1211 = vmatmul.mubr.bf16.gmra.mrb[0].mxu0 %v1173
    %v1212 = vpop.f32.mrb[0].mxu0
    %v1213 = vadd.f32 %v1057, %v1212
    %v1214 = vpop.f32.mrb[0].mxu0
    %v1215 = vpop.f32.mrb[0].mxu0
    %v1216 = vpop.f32.mrb[0].mxu0
    %1217 = vdwg.mxu0
    %v1218 = vsel %vm745, %v1213, -inf
    %1219 = vmax.xlane.f32.xlu0 %v1218
    %v1220 = vpop.xlane.xlu0 %1219
    %v1221 = vsub.f32 %v1213, %v1220
    %v1222 = vmul.f32 %v1221, 1.442695
    %v1223 = vpow.pop %v1222
    %v1224 = vsel %vm745, %v1223, 0.0
    %1225 = vadd.xlane.f32.xlu0 %v1224
    %v1226 = vpop.xlane.xlu0 %1225
    %v1227 = vrcp.pop %v1226
    %v1228 = vmul.f32 %v1223, %v1227
    %v1229 = vpack.c.bf16 %v1228, %v1228
    %1231 = vrot.lane.b32.xlu0 %v1060, 64
    %v1232 = vpop.permute.xlu0 %1231
    %v1234 = vsel %vm745, %v1229, 0
    %v1237 = vsel %vm761, %v1232, 0
    %1239 = vmatprep.subr.bf16.mxu0 0
    %1240 = vmatpush1.bf16.msra.mxu0 %v1237
    %1241 = vmatprep.subr.bf16.mxu0 0
    %1242 = vmatpush1.bf16.msra.mxu0 0
    %1243 = vmatprep.subr.bf16.mxu0 0
    %1244 = vmatpush1.bf16.msra.mxu0 0
    %1245 = vmatprep.subr.bf16.mxu0 0
    %1246 = vmatpush1.bf16.msra.mxu0 0
    %1247 = vmatprep.subr.bf16.mxu0 0
    %1248 = vmatpush1.bf16.msra.mxu0 0
    %1249 = vmatprep.subr.bf16.mxu0 0
    %1250 = vmatpush1.bf16.msra.mxu0 0
    %1251 = vmatprep.subr.bf16.mxu0 0
    %1252 = vmatpush1.bf16.msra.mxu0 0
    %1253 = vmatprep.subr.bf16.mxu0 0
    %1254 = vmatpush1.bf16.msra.mxu0 0
    %1255 = vmatprep.subr.bf16.mxu0 0
    %1256 = vmatpush1.bf16.msra.mxu0 0
    %1257 = vmatprep.subr.bf16.mxu0 0
    %1258 = vmatpush1.bf16.msra.mxu0 0
    %1259 = vmatprep.subr.bf16.mxu0 0
    %1260 = vmatpush1.bf16.msra.mxu0 0
    %1261 = vmatprep.subr.bf16.mxu0 0
    %1262 = vmatpush1.bf16.msra.mxu0 0
    %1263 = vmatprep.subr.bf16.mxu0 0
    %1264 = vmatpush1.bf16.msra.mxu0 0
    %1265 = vmatprep.subr.bf16.mxu0 0
    %1266 = vmatpush1.bf16.msra.mxu0 0
    %1267 = vmatprep.subr.bf16.mxu0 0
    %1268 = vmatpush1.bf16.msra.mxu0 0
    %1269 = vmatprep.subr.bf16.mxu0 0
    %1270 = vmatpush1.bf16.msra.mxu0 0
    %1271 = vmatprep.mubr.bf16.mxu0 0
    %1272 = vmatmul.mubr.bf16.gmra.mrb[0].mxu0 %v1234
    %v1273 = vpop.f32.mrb[0].mxu0
    %v1274 = vadd.f32 0.0, %v1273
    %v1275 = vpop.f32.mrb[0].mxu0
    %v1276 = vpop.f32.mrb[0].mxu0
    %v1277 = vpop.f32.mrb[0].mxu0
    %1278 = vdwg.mxu0
    %v1279 = vpack.c.bf16 %v1274, %v1274
    %v1281 = vsel %vm698, %v1279, 0
    %1283 = vmatprep.subr.bf16.mxu0 0
    %1284 = vmatpush1.bf16.msra.mxu0 %v936
    %1285 = vmatprep.subr.bf16.mxu0 0
    %1286 = vmatpush1.bf16.msra.mxu0 %v937
    %1287 = vmatprep.subr.bf16.mxu0 0
    %1288 = vmatpush1.bf16.msra.mxu0 %v938
    %1289 = vmatprep.subr.bf16.mxu0 0
    %1290 = vmatpush1.bf16.msra.mxu0 %v939
    %1291 = vmatprep.subr.bf16.mxu0 0
    %1292 = vmatpush1.bf16.msra.mxu0 0
    %1293 = vmatprep.subr.bf16.mxu0 0
    %1294 = vmatpush1.bf16.msra.mxu0 0
    %1295 = vmatprep.subr.bf16.mxu0 0
    %1296 = vmatpush1.bf16.msra.mxu0 0
    %1297 = vmatprep.subr.bf16.mxu0 0
    %1298 = vmatpush1.bf16.msra.mxu0 0
    %1299 = vmatprep.subr.bf16.mxu0 0
    %1300 = vmatpush1.bf16.msra.mxu0 0
    %1301 = vmatprep.subr.bf16.mxu0 0
    %1302 = vmatpush1.bf16.msra.mxu0 0
    %1303 = vmatprep.subr.bf16.mxu0 0
    %1304 = vmatpush1.bf16.msra.mxu0 0
    %1305 = vmatprep.subr.bf16.mxu0 0
    %1306 = vmatpush1.bf16.msra.mxu0 0
    %1307 = vmatprep.subr.bf16.mxu0 0
    %1308 = vmatpush1.bf16.msra.mxu0 0
    %1309 = vmatprep.subr.bf16.mxu0 0
    %1310 = vmatpush1.bf16.msra.mxu0 0
    %1311 = vmatprep.subr.bf16.mxu0 0
    %1312 = vmatpush1.bf16.msra.mxu0 0
    %1313 = vmatprep.subr.bf16.mxu0 0
    %1314 = vmatpush1.bf16.msra.mxu0 0
    %1315 = vmatprep.mubr.bf16.mxu0 0
    %1316 = vmatmul.mubr.bf16.gmra.mrb[0].mxu0 %v1281
    %v1317 = vpop.f32.mrb[0].mxu0
    %v1318 = vadd.f32 0.0, %v1317
    %v1319 = vpop.f32.mrb[0].mxu0
    %v1320 = vpop.f32.mrb[0].mxu0
    %v1321 = vpop.f32.mrb[0].mxu0
    %1322 = vdwg.mxu0
    %v1324 = vsel %vm698, %v1165, 0
    %1326 = vmatprep.subr.bf16.mxu0 0
    %1327 = vmatpush1.bf16.msra.mxu0 %v1003
    %1328 = vmatprep.subr.bf16.mxu0 0
    %1329 = vmatpush1.bf16.msra.mxu0 %v1004
    %1330 = vmatprep.subr.bf16.mxu0 0
    %1331 = vmatpush1.bf16.msra.mxu0 %v1005
    %1332 = vmatprep.subr.bf16.mxu0 0
    %1333 = vmatpush1.bf16.msra.mxu0 %v1006
    %1334 = vmatprep.subr.bf16.mxu0 0
    %1335 = vmatpush1.bf16.msra.mxu0 0
    %1336 = vmatprep.subr.bf16.mxu0 0
    %1337 = vmatpush1.bf16.msra.mxu0 0
    %1338 = vmatprep.subr.bf16.mxu0 0
    %1339 = vmatpush1.bf16.msra.mxu0 0
    %1340 = vmatprep.subr.bf16.mxu0 0
    %1341 = vmatpush1.bf16.msra.mxu0 0
    %1342 = vmatprep.subr.bf16.mxu0 0
    %1343 = vmatpush1.bf16.msra.mxu0 0
    %1344 = vmatprep.subr.bf16.mxu0 0
    %1345 = vmatpush1.bf16.msra.mxu0 0
    %1346 = vmatprep.subr.bf16.mxu0 0
    %1347 = vmatpush1.bf16.msra.mxu0 0
    %1348 = vmatprep.subr.bf16.mxu0 0
    %1349 = vmatpush1.bf16.msra.mxu0 0
    %1350 = vmatprep.subr.bf16.mxu0 0
    %1351 = vmatpush1.bf16.msra.mxu0 0
    %1352 = vmatprep.subr.bf16.mxu0 0
    %1353 = vmatpush1.bf16.msra.mxu0 0
    %1354 = vmatprep.subr.bf16.mxu0 0
    %1355 = vmatpush1.bf16.msra.mxu0 0
    %1356 = vmatprep.subr.bf16.mxu0 0
    %1357 = vmatpush1.bf16.msra.mxu0 0
    %1358 = vmatprep.mubr.bf16.mxu0 0
    %1359 = vmatmul.mubr.bf16.gmra.mrb[0].mxu0 %v1324
    %v1360 = vpop.f32.mrb[0].mxu0
    %v1361 = vadd.f32 %v1318, %v1360
    %v1362 = vpop.f32.mrb[0].mxu0
    %v1363 = vpop.f32.mrb[0].mxu0
    %v1364 = vpop.f32.mrb[0].mxu0
    %1365 = vdwg.mxu0
    %v1366 = vld [vmem:[#allocation14] sm:$0x1]
    %v1368 = vlaneseq
    %v1369 = vshrl.u32 %v1368, 7
    %v1370 = vsub.s32 0, %v1369
    %v1371 = vrot.slane %v1366, %v1370
    %v1373 = vadd.f32 %v1049, %v1371
    %v1374 = vadd.f32 %v1361, %v1371
    %v1375 = vadd.f32 %v335, %v1373
    %v1376 = vadd.f32 %v336, %v1374
    %v1377 = vld [vmem:[#allocation16] sm:$0x1]
    %v1378 = vld [vmem:[#allocation17] sm:$0x1]
    %1379 = vadd.xlane.f32.xlu0 %v1375
    %v1380 = vpop.xlane.xlu0 %1379
    %1381 = vadd.xlane.f32.xlu0 %v1376
    %v1382 = vpop.xlane.xlu0 %1381
    %v1383 = vmul.f32 %v1380, %v302
    %v1384 = vmul.f32 %v1382, %v302
    %v1385 = vsub.f32 %v1375, %v1383
    %v1386 = vsub.f32 %v1376, %v1384
    %v1387 = vmul.f32 %v1385, %v1385
    %v1388 = vmul.f32 %v1386, %v1386
    %1389 = vadd.xlane.f32.xlu0 %v1387
    %v1390 = vpop.xlane.xlu0 %1389
    %1391 = vadd.xlane.f32.xlu0 %v1388
    %v1392 = vpop.xlane.xlu0 %1391
    %v1393 = vmul.f32 %v1390, %v302
    %v1394 = vmul.f32 %v1392, %v302
    %v1395 = vadd.f32 %v1393, 1e-12
    %v1396 = vadd.f32 %v1394, 1e-12
    %v1397 = vrsqrt.pop %v1395
    %v1398 = vrsqrt.pop %v1396
    %v1399 = vmul.f32 %v1385, %v1397
    %v1400 = vmul.f32 %v1386, %v1398
    %v1402 = vlaneseq
    %v1403 = vshrl.u32 %v1402, 7
    %v1404 = vsub.s32 0, %v1403
    %v1405 = vrot.slane %v1377, %v1404
    %v1407 = vmul.f32 %v1399, %v1405
    %v1408 = vmul.f32 %v1400, %v1405
    %v1410 = vlaneseq
    %v1411 = vshrl.u32 %v1410, 7
    %v1412 = vsub.s32 0, %v1411
    %v1413 = vrot.slane %v1378, %v1412
    %v1415 = vadd.f32 %v1407, %v1413
    %v1416 = vadd.f32 %v1408, %v1413
    %v1417 = vpack.c.bf16 %v1416, %v1415
    %v1418 = vld [vmem:[#allocation19] sm:$0xff]
    %v1419 = vld [vmem:[#allocation19 + $0x8] sm:$0xff]
    %v1420 = vld [vmem:[#allocation19 + $0x10] sm:$0xff]
    %v1421 = vld [vmem:[#allocation19 + $0x18] sm:$0xff]
    %v1422 = vld [vmem:[#allocation19 + $0x20] sm:$0xff]
    %v1423 = vld [vmem:[#allocation19 + $0x28] sm:$0xff]
    %v1424 = vld [vmem:[#allocation19 + $0x30] sm:$0xff]
    %v1425 = vld [vmem:[#allocation19 + $0x38] sm:$0xff]
    %v1426 = vld [vmem:[#allocation19 + $0x40] sm:$0xff]
    %v1427 = vld [vmem:[#allocation19 + $0x48] sm:$0xff]
    %v1428 = vld [vmem:[#allocation19 + $0x50] sm:$0xff]
    %v1429 = vld [vmem:[#allocation19 + $0x58] sm:$0xff]
    %v1430 = vld [vmem:[#allocation19 + $0x60] sm:$0xff]
    %v1431 = vld [vmem:[#allocation19 + $0x68] sm:$0xff]
    %v1432 = vld [vmem:[#allocation19 + $0x70] sm:$0xff]
    %v1433 = vld [vmem:[#allocation19 + $0x78] sm:$0xff]
    %v1434 = vld [vmem:[%s15] sm:$0x3]
    %v1436 = vlaneseq
    %v1437 = vshrl.u32 %v1436, 7
    %v1438 = vsub.s32 0, %v1437
    %v1439 = vrot.slane %v1434, %v1438
    %v1440 = vlaneseq
    %v1441 = vshrl.u32 %v1440, 7
    %v1442 = vsub.s32 1, %v1441
    %v1443 = vrot.slane %v1434, %v1442
    %v1462 = vunpack.c.l.b16 %v1418
    %v1463 = vunpack.c.h.b16 %v1418
    %v1464 = vunpack.c.l.b16 %v1419
    %v1465 = vunpack.c.h.b16 %v1419
    %v1466 = vunpack.c.l.b16 %v1420
    %v1467 = vunpack.c.h.b16 %v1420
    %v1468 = vunpack.c.l.b16 %v1421
    %v1469 = vunpack.c.h.b16 %v1421
    %v1470 = vunpack.c.l.b16 %v1422
    %v1471 = vunpack.c.h.b16 %v1422
    %v1472 = vunpack.c.l.b16 %v1423
    %v1473 = vunpack.c.h.b16 %v1423
    %v1474 = vunpack.c.l.b16 %v1424
    %v1475 = vunpack.c.h.b16 %v1424
    %v1476 = vunpack.c.l.b16 %v1425
    %v1477 = vunpack.c.h.b16 %v1425
    %v1478 = vunpack.c.l.b16 %v1426
    %v1479 = vunpack.c.h.b16 %v1426
    %v1480 = vunpack.c.l.b16 %v1427
    %v1481 = vunpack.c.h.b16 %v1427
    %v1482 = vunpack.c.l.b16 %v1428
    %v1483 = vunpack.c.h.b16 %v1428
    %v1484 = vunpack.c.l.b16 %v1429
    %v1485 = vunpack.c.h.b16 %v1429
    %v1486 = vunpack.c.l.b16 %v1430
    %v1487 = vunpack.c.h.b16 %v1430
    %v1488 = vunpack.c.l.b16 %v1431
    %v1489 = vunpack.c.h.b16 %v1431
    %v1490 = vunpack.c.l.b16 %v1432
    %v1491 = vunpack.c.h.b16 %v1432
    %v1492 = vunpack.c.l.b16 %v1433
    %v1493 = vunpack.c.h.b16 %v1433
    %v1494 = vpack.c.b16 %v1464, %v1462
    %v1495 = vpack.c.b16 %v1465, %v1463
    %v1496 = vpack.c.b16 %v1468, %v1466
    %v1497 = vpack.c.b16 %v1469, %v1467
    %v1498 = vpack.c.b16 %v1472, %v1470
    %v1499 = vpack.c.b16 %v1473, %v1471
    %v1500 = vpack.c.b16 %v1476, %v1474
    %v1501 = vpack.c.b16 %v1477, %v1475
    %v1502 = vpack.c.b16 %v1480, %v1478
    %v1503 = vpack.c.b16 %v1481, %v1479
    %v1504 = vpack.c.b16 %v1484, %v1482
    %v1505 = vpack.c.b16 %v1485, %v1483
    %v1506 = vpack.c.b16 %v1488, %v1486
    %v1507 = vpack.c.b16 %v1489, %v1487
    %v1508 = vpack.c.b16 %v1492, %v1490
    %v1509 = vpack.c.b16 %v1493, %v1491
    %1526 = vmatprep.subr.bf16.mxu0 %v1495
    %1527 = vmatpush1.bf16.msra.mxu0 %v1494
    %1528 = vmatprep.subr.bf16.mxu0 %v1497
    %1529 = vmatpush1.bf16.msra.mxu0 %v1496
    %1530 = vmatprep.subr.bf16.mxu0 %v1499
    %1531 = vmatpush1.bf16.msra.mxu0 %v1498
    %1532 = vmatprep.subr.bf16.mxu0 %v1501
    %1533 = vmatpush1.bf16.msra.mxu0 %v1500
    %1534 = vmatprep.subr.bf16.mxu0 %v1503
    %1535 = vmatpush1.bf16.msra.mxu0 %v1502
    %1536 = vmatprep.subr.bf16.mxu0 %v1505
    %1537 = vmatpush1.bf16.msra.mxu0 %v1504
    %1538 = vmatprep.subr.bf16.mxu0 %v1507
    %1539 = vmatpush1.bf16.msra.mxu0 %v1506
    %1540 = vmatprep.subr.bf16.mxu0 %v1509
    %1541 = vmatpush1.bf16.msra.mxu0 %v1508
    %1542 = vmatprep.subr.bf16.mxu0 0
    %1543 = vmatpush1.bf16.msra.mxu0 0
    %1544 = vmatprep.subr.bf16.mxu0 0
    %1545 = vmatpush1.bf16.msra.mxu0 0
    %1546 = vmatprep.subr.bf16.mxu0 0
    %1547 = vmatpush1.bf16.msra.mxu0 0
    %1548 = vmatprep.subr.bf16.mxu0 0
    %1549 = vmatpush1.bf16.msra.mxu0 0
    %1550 = vmatprep.subr.bf16.mxu0 0
    %1551 = vmatpush1.bf16.msra.mxu0 0
    %1552 = vmatprep.subr.bf16.mxu0 0
    %1553 = vmatpush1.bf16.msra.mxu0 0
    %1554 = vmatprep.subr.bf16.mxu0 0
    %1555 = vmatpush1.bf16.msra.mxu0 0
    %1556 = vmatprep.subr.bf16.mxu0 0
    %1557 = vmatpush1.bf16.msra.mxu0 0
    %1558 = vmatprep.mubr.bf16.mxu0 0
    %1559 = vmatmul.mubr.bf16.gmra.mrb[0].mxu0 %v1417
    %v1560 = vpop.f32.mrb[0].mxu0
    %v1561 = vadd.f32 %v1439, %v1560
    %v1562 = vpop.f32.mrb[0].mxu0
    %v1563 = vadd.f32 %v1443, %v1562
    %v1564 = vpop.f32.mrb[0].mxu0
    %v1565 = vadd.f32 %v1439, %v1564
    %v1566 = vpop.f32.mrb[0].mxu0
    %v1567 = vadd.f32 %v1443, %v1566
    %1568 = vdwg.mxu0
    %v1569 = vmul.f32 %v1561, %v1561
    %v1570 = vmul.f32 %v1563, %v1563
    %v1571 = vmul.f32 %v1565, %v1565
    %v1572 = vmul.f32 %v1567, %v1567
    %v1573 = vmul.f32 %v1561, %v1569
    %v1574 = vmul.f32 %v1563, %v1570
    %v1575 = vmul.f32 %v1565, %v1571
    %v1576 = vmul.f32 %v1567, %v1572
    %v1577 = vmul.f32 %v1573, 0.044715
    %v1578 = vmul.f32 %v1574, 0.044715
    %v1579 = vmul.f32 %v1575, 0.044715
    %v1580 = vmul.f32 %v1576, 0.044715
    %v1581 = vadd.f32 %v1561, %v1577
    %v1582 = vadd.f32 %v1563, %v1578
    %v1583 = vadd.f32 %v1565, %v1579
    %v1584 = vadd.f32 %v1567, %v1580
    %v1585 = vmul.f32 %v1581, 0.7978846
    %v1586 = vmul.f32 %v1582, 0.7978846
    %v1587 = vmul.f32 %v1583, 0.7978846
    %v1588 = vmul.f32 %v1584, 0.7978846
    %v1589 = vtanh.pop %v1585
    %v1590 = vtanh.pop %v1586
    %v1591 = vtanh.pop %v1587
    %v1592 = vtanh.pop %v1588
    %v1593 = vadd.f32 %v1589, 1.0
    %v1594 = vadd.f32 %v1590, 1.0
    %v1595 = vadd.f32 %v1591, 1.0
    %v1596 = vadd.f32 %v1592, 1.0
    %v1597 = vmul.f32 %v1593, 0.5
    %v1598 = vmul.f32 %v1594, 0.5
    %v1599 = vmul.f32 %v1595, 0.5
    %v1600 = vmul.f32 %v1596, 0.5
    %v1601 = vmul.f32 %v1561, %v1597
    %v1602 = vmul.f32 %v1563, %v1598
    %v1603 = vmul.f32 %v1565, %v1599
    %v1604 = vmul.f32 %v1567, %v1600
    %v1605 = vpack.c.bf16 %v1603, %v1601
    %v1606 = vpack.c.bf16 %v1604, %v1602
    %v1607 = vld [vmem:[#allocation20] sm:$0xf]
    %v1608 = vld [vmem:[#allocation20 + $0x4] sm:$0xf]
    %v1609 = vld [vmem:[#allocation20 + $0x8] sm:$0xf]
    %v1610 = vld [vmem:[#allocation20 + $0xc] sm:$0xf]
    %v1611 = vld [vmem:[#allocation20 + $0x10] sm:$0xf]
    %v1612 = vld [vmem:[#allocation20 + $0x14] sm:$0xf]
    %v1613 = vld [vmem:[#allocation20 + $0x18] sm:$0xf]
    %v1614 = vld [vmem:[#allocation20 + $0x1c] sm:$0xf]
    %v1615 = vld [vmem:[#allocation20 + $0x20] sm:$0xf]
    %v1616 = vld [vmem:[#allocation20 + $0x24] sm:$0xf]
    %v1617 = vld [vmem:[#allocation20 + $0x28] sm:$0xf]
    %v1618 = vld [vmem:[#allocation20 + $0x2c] sm:$0xf]
    %v1619 = vld [vmem:[#allocation20 + $0x30] sm:$0xf]
    %v1620 = vld [vmem:[#allocation20 + $0x34] sm:$0xf]
    %v1621 = vld [vmem:[#allocation20 + $0x38] sm:$0xf]
    %v1622 = vld [vmem:[#allocation20 + $0x3c] sm:$0xf]
    %v1623 = vld [vmem:[#allocation20 + $0x40] sm:$0xf]
    %v1624 = vld [vmem:[#allocation20 + $0x44] sm:$0xf]
    %v1625 = vld [vmem:[#allocation20 + $0x48] sm:$0xf]
    %v1626 = vld [vmem:[#allocation20 + $0x4c] sm:$0xf]
    %v1627 = vld [vmem:[#allocation20 + $0x50] sm:$0xf]
    %v1628 = vld [vmem:[#allocation20 + $0x54] sm:$0xf]
    %v1629 = vld [vmem:[#allocation20 + $0x58] sm:$0xf]
    %v1630 = vld [vmem:[#allocation20 + $0x5c] sm:$0xf]
    %v1631 = vld [vmem:[#allocation20 + $0x60] sm:$0xf]
    %v1632 = vld [vmem:[#allocation20 + $0x64] sm:$0xf]
    %v1633 = vld [vmem:[#allocation20 + $0x68] sm:$0xf]
    %v1634 = vld [vmem:[#allocation20 + $0x6c] sm:$0xf]
    %v1635 = vld [vmem:[#allocation20 + $0x70] sm:$0xf]
    %v1636 = vld [vmem:[#allocation20 + $0x74] sm:$0xf]
    %v1637 = vld [vmem:[#allocation20 + $0x78] sm:$0xf]
    %v1638 = vld [vmem:[#allocation20 + $0x7c] sm:$0xf]
    %v1639 = vld [vmem:[#allocation22] sm:$0x1]
    %v1641 = vlaneseq
    %v1642 = vshrl.u32 %v1641, 7
    %v1643 = vsub.s32 0, %v1642
    %v1644 = vrot.slane %v1639, %v1643
    %v1678 = vunpack.c.l.b16 %v1607
    %v1679 = vunpack.c.l.b16 %v1608
    %v1680 = vunpack.c.l.b16 %v1609
    %v1681 = vunpack.c.l.b16 %v1610
    %v1682 = vunpack.c.l.b16 %v1611
    %v1683 = vunpack.c.l.b16 %v1612
    %v1684 = vunpack.c.l.b16 %v1613
    %v1685 = vunpack.c.l.b16 %v1614
    %v1686 = vunpack.c.l.b16 %v1615
    %v1687 = vunpack.c.l.b16 %v1616
    %v1688 = vunpack.c.l.b16 %v1617
    %v1689 = vunpack.c.l.b16 %v1618
    %v1690 = vunpack.c.l.b16 %v1619
    %v1691 = vunpack.c.l.b16 %v1620
    %v1692 = vunpack.c.l.b16 %v1621
    %v1693 = vunpack.c.l.b16 %v1622
    %v1694 = vunpack.c.l.b16 %v1623
    %v1695 = vunpack.c.l.b16 %v1624
    %v1696 = vunpack.c.l.b16 %v1625
    %v1697 = vunpack.c.l.b16 %v1626
    %v1698 = vunpack.c.l.b16 %v1627
    %v1699 = vunpack.c.l.b16 %v1628
    %v1700 = vunpack.c.l.b16 %v1629
    %v1701 = vunpack.c.l.b16 %v1630
    %v1702 = vunpack.c.l.b16 %v1631
    %v1703 = vunpack.c.l.b16 %v1632
    %v1704 = vunpack.c.l.b16 %v1633
    %v1705 = vunpack.c.l.b16 %v1634
    %v1706 = vunpack.c.l.b16 %v1635
    %v1707 = vunpack.c.l.b16 %v1636
    %v1708 = vunpack.c.l.b16 %v1637
    %v1709 = vunpack.c.l.b16 %v1638
    %v1710 = vpack.c.b16 %v1679, %v1678
    %v1711 = vpack.c.b16 %v1681, %v1680
    %v1712 = vpack.c.b16 %v1683, %v1682
    %v1713 = vpack.c.b16 %v1685, %v1684
    %v1714 = vpack.c.b16 %v1687, %v1686
    %v1715 = vpack.c.b16 %v1689, %v1688
    %v1716 = vpack.c.b16 %v1691, %v1690
    %v1717 = vpack.c.b16 %v1693, %v1692
    %v1718 = vpack.c.b16 %v1695, %v1694
    %v1719 = vpack.c.b16 %v1697, %v1696
    %v1720 = vpack.c.b16 %v1699, %v1698
    %v1721 = vpack.c.b16 %v1701, %v1700
    %v1722 = vpack.c.b16 %v1703, %v1702
    %v1723 = vpack.c.b16 %v1705, %v1704
    %v1724 = vpack.c.b16 %v1707, %v1706
    %v1725 = vpack.c.b16 %v1709, %v1708
    %1742 = vmatprep.subr.bf16.mxu0 0
    %1743 = vmatpush1.bf16.msra.mxu0 %v1710
    %1744 = vmatprep.subr.bf16.mxu0 0
    %1745 = vmatpush1.bf16.msra.mxu0 %v1711
    %1746 = vmatprep.subr.bf16.mxu0 0
    %1747 = vmatpush1.bf16.msra.mxu0 %v1712
    %1748 = vmatprep.subr.bf16.mxu0 0
    %1749 = vmatpush1.bf16.msra.mxu0 %v1713
    %1750 = vmatprep.subr.bf16.mxu0 0
    %1751 = vmatpush1.bf16.msra.mxu0 %v1714
    %1752 = vmatprep.subr.bf16.mxu0 0
    %1753 = vmatpush1.bf16.msra.mxu0 %v1715
    %1754 = vmatprep.subr.bf16.mxu0 0
    %1755 = vmatpush1.bf16.msra.mxu0 %v1716
    %1756 = vmatprep.subr.bf16.mxu0 0
    %1757 = vmatpush1.bf16.msra.mxu0 %v1717
    %1758 = vmatprep.subr.bf16.mxu0 0
    %1759 = vmatpush1.bf16.msra.mxu0 %v1718
    %1760 = vmatprep.subr.bf16.mxu0 0
    %1761 = vmatpush1.bf16.msra.mxu0 %v1719
    %1762 = vmatprep.subr.bf16.mxu0 0
    %1763 = vmatpush1.bf16.msra.mxu0 %v1720
    %1764 = vmatprep.subr.bf16.mxu0 0
    %1765 = vmatpush1.bf16.msra.mxu0 %v1721
    %1766 = vmatprep.subr.bf16.mxu0 0
    %1767 = vmatpush1.bf16.msra.mxu0 %v1722
    %1768 = vmatprep.subr.bf16.mxu0 0
    %1769 = vmatpush1.bf16.msra.mxu0 %v1723
    %1770 = vmatprep.subr.bf16.mxu0 0
    %1771 = vmatpush1.bf16.msra.mxu0 %v1724
    %1772 = vmatprep.subr.bf16.mxu0 0
    %1773 = vmatpush1.bf16.msra.mxu0 %v1725
    %1774 = vmatprep.mubr.bf16.mxu0 %v1606
    %1775 = vmatmul.mubr.bf16.gmra.mrb[0].mxu0 %v1605
    %v1776 = vpop.f32.mrb[0].mxu0
    %v1777 = vadd.f32 %v1644, %v1776
    %v1778 = vpop.f32.mrb[0].mxu0
    %v1779 = vpop.f32.mrb[0].mxu0
    %v1780 = vadd.f32 %v1644, %v1779
    %v1781 = vpop.f32.mrb[0].mxu0
    %1782 = vdwg.mxu0
    %v1783 = vadd.f32 %v1415, %v1777
    %v1784 = vadd.f32 %v1416, %v1780
    %v1785 = vld [vmem:[#allocation23] sm:$0x1]
    %v1786 = vld [vmem:[#allocation25] sm:$0x1]
    %1787 = vadd.xlane.f32.xlu0 %v1783
    %v1788 = vpop.xlane.xlu0 %1787
    %1789 = vadd.xlane.f32.xlu0 %v1784
    %v1790 = vpop.xlane.xlu0 %1789
    %v1791 = vmul.f32 %v1788, %v302
    %v1792 = vmul.f32 %v1790, %v302
    %v1793 = vsub.f32 %v1783, %v1791
    %v1794 = vsub.f32 %v1784, %v1792
    %v1795 = vmul.f32 %v1793, %v1793
    %v1796 = vmul.f32 %v1794, %v1794
    %1797 = vadd.xlane.f32.xlu0 %v1795
    %v1798 = vpop.xlane.xlu0 %1797
    %1799 = vadd.xlane.f32.xlu0 %v1796
    %v1800 = vpop.xlane.xlu0 %1799
    %v1801 = vmul.f32 %v1798, %v302
    %v1802 = vmul.f32 %v1800, %v302
    %v1803 = vadd.f32 %v1801, 1e-12
    %v1804 = vadd.f32 %v1802, 1e-12
    %v1805 = vrsqrt.pop %v1803
    %v1806 = vrsqrt.pop %v1804
    %v1807 = vmul.f32 %v1793, %v1805
    %v1808 = vmul.f32 %v1794, %v1806
    %v1810 = vlaneseq
    %v1811 = vshrl.u32 %v1810, 7
    %v1812 = vsub.s32 0, %v1811
    %v1813 = vrot.slane %v1785, %v1812
    %v1815 = vmul.f32 %v1807, %v1813
    %v1816 = vmul.f32 %v1808, %v1813
    %v1818 = vlaneseq
    %v1819 = vshrl.u32 %v1818, 7
    %v1820 = vsub.s32 0, %v1819
    %v1821 = vrot.slane %v1786, %v1820
    %v1823 = vadd.f32 %v1815, %v1821
    %v1824 = vadd.f32 %v1816, %v1821
    %v1825 = vpack.c.bf16 %v1824, %v1823
    %s1826 = scalar_lea.vmem [#allocation7], 64
    %v1827 = vld [vmem:[%s1826] sm:$0xf]
    %v1828 = vld [vmem:[%s1826 + $0x4] sm:$0xf]
    %v1829 = vld [vmem:[%s1826 + $0x8] sm:$0xf]
    %v1830 = vld [vmem:[%s1826 + $0xc] sm:$0xf]
    %v1831 = vld [vmem:[%s1826 + $0x10] sm:$0xf]
    %v1832 = vld [vmem:[%s1826 + $0x14] sm:$0xf]
    %v1833 = vld [vmem:[%s1826 + $0x18] sm:$0xf]
    %v1834 = vld [vmem:[%s1826 + $0x1c] sm:$0xf]
    %v1835 = vld [vmem:[%s1826 + $0x20] sm:$0xf]
    %v1836 = vld [vmem:[%s1826 + $0x24] sm:$0xf]
    %v1837 = vld [vmem:[%s1826 + $0x28] sm:$0xf]
    %v1838 = vld [vmem:[%s1826 + $0x2c] sm:$0xf]
    %v1839 = vld [vmem:[%s1826 + $0x30] sm:$0xf]
    %v1840 = vld [vmem:[%s1826 + $0x34] sm:$0xf]
    %v1841 = vld [vmem:[%s1826 + $0x38] sm:$0xf]
    %v1842 = vld [vmem:[%s1826 + $0x3c] sm:$0xf]
    %s1843 = scalar_lea.vmem %s5, 1
    %v1844 = vld [vmem:[%s1843] sm:$0x1]
    %v1846 = vlaneseq
    %v1847 = vshrl.u32 %v1846, 7
    %v1848 = vsub.s32 0, %v1847
    %v1849 = vrot.slane %v1844, %v1848
    %v1867 = vunpack.c.l.b16 %v1827
    %v1868 = vunpack.c.l.b16 %v1828
    %v1869 = vunpack.c.l.b16 %v1829
    %v1870 = vunpack.c.l.b16 %v1830
    %v1871 = vunpack.c.l.b16 %v1831
    %v1872 = vunpack.c.l.b16 %v1832
    %v1873 = vunpack.c.l.b16 %v1833
    %v1874 = vunpack.c.l.b16 %v1834
    %v1875 = vunpack.c.l.b16 %v1835
    %v1876 = vunpack.c.l.b16 %v1836
    %v1877 = vunpack.c.l.b16 %v1837
    %v1878 = vunpack.c.l.b16 %v1838
    %v1879 = vunpack.c.l.b16 %v1839
    %v1880 = vunpack.c.l.b16 %v1840
    %v1881 = vunpack.c.l.b16 %v1841
    %v1882 = vunpack.c.l.b16 %v1842
    %v1883 = vpack.c.b16 %v1868, %v1867
    %v1884 = vpack.c.b16 %v1870, %v1869
    %v1885 = vpack.c.b16 %v1872, %v1871
    %v1886 = vpack.c.b16 %v1874, %v1873
    %v1887 = vpack.c.b16 %v1876, %v1875
    %v1888 = vpack.c.b16 %v1878, %v1877
    %v1889 = vpack.c.b16 %v1880, %v1879
    %v1890 = vpack.c.b16 %v1882, %v1881
    %1899 = vmatprep.subr.bf16.mxu0 0
    %1900 = vmatpush1.bf16.msra.mxu0 %v1883
    %1901 = vmatprep.subr.bf16.mxu0 0
    %1902 = vmatpush1.bf16.msra.mxu0 %v1884
    %1903 = vmatprep.subr.bf16.mxu0 0
    %1904 = vmatpush1.bf16.msra.mxu0 %v1885
    %1905 = vmatprep.subr.bf16.mxu0 0
    %1906 = vmatpush1.bf16.msra.mxu0 %v1886
    %1907 = vmatprep.subr.bf16.mxu0 0
    %1908 = vmatpush1.bf16.msra.mxu0 %v1887
    %1909 = vmatprep.subr.bf16.mxu0 0
    %1910 = vmatpush1.bf16.msra.mxu0 %v1888
    %1911 = vmatprep.subr.bf16.mxu0 0
    %1912 = vmatpush1.bf16.msra.mxu0 %v1889
    %1913 = vmatprep.subr.bf16.mxu0 0
    %1914 = vmatpush1.bf16.msra.mxu0 %v1890
    %1915 = vmatprep.subr.bf16.mxu0 0
    %1916 = vmatpush1.bf16.msra.mxu0 0
    %1917 = vmatprep.subr.bf16.mxu0 0
    %1918 = vmatpush1.bf16.msra.mxu0 0
    %1919 = vmatprep.subr.bf16.mxu0 0
    %1920 = vmatpush1.bf16.msra.mxu0 0
    %1921 = vmatprep.subr.bf16.mxu0 0
    %1922 = vmatpush1.bf16.msra.mxu0 0
    %1923 = vmatprep.subr.bf16.mxu0 0
    %1924 = vmatpush1.bf16.msra.mxu0 0
    %1925 = vmatprep.subr.bf16.mxu0 0
    %1926 = vmatpush1.bf16.msra.mxu0 0
    %1927 = vmatprep.subr.bf16.mxu0 0
    %1928 = vmatpush1.bf16.msra.mxu0 0
    %1929 = vmatprep.subr.bf16.mxu0 0
    %1930 = vmatpush1.bf16.msra.mxu0 0
    %1931 = vmatprep.mubr.bf16.mxu0 0
    %1932 = vmatmul.mubr.bf16.gmra.mrb[0].mxu0 %v1825
    %v1933 = vpop.f32.mrb[0].mxu0
    %v1934 = vadd.f32 %v1849, %v1933
    %v1935 = vpop.f32.mrb[0].mxu0
    %v1936 = vpop.f32.mrb[0].mxu0
    %v1937 = vadd.f32 %v1849, %v1936
    %v1938 = vpop.f32.mrb[0].mxu0
    %1939 = vdwg.mxu0
    %s1940 = scalar_lea.vmem [#allocation8], 64
    %v1941 = vld [vmem:[%s1940] sm:$0xf]
    %v1942 = vld [vmem:[%s1940 + $0x4] sm:$0xf]
    %v1943 = vld [vmem:[%s1940 + $0x8] sm:$0xf]
    %v1944 = vld [vmem:[%s1940 + $0xc] sm:$0xf]
    %v1945 = vld [vmem:[%s1940 + $0x10] sm:$0xf]
    %v1946 = vld [vmem:[%s1940 + $0x14] sm:$0xf]
    %v1947 = vld [vmem:[%s1940 + $0x18] sm:$0xf]
    %v1948 = vld [vmem:[%s1940 + $0x1c] sm:$0xf]
    %v1949 = vld [vmem:[%s1940 + $0x20] sm:$0xf]
    %v1950 = vld [vmem:[%s1940 + $0x24] sm:$0xf]
    %v1951 = vld [vmem:[%s1940 + $0x28] sm:$0xf]
    %v1952 = vld [vmem:[%s1940 + $0x2c] sm:$0xf]
    %v1953 = vld [vmem:[%s1940 + $0x30] sm:$0xf]
    %v1954 = vld [vmem:[%s1940 + $0x34] sm:$0xf]
    %v1955 = vld [vmem:[%s1940 + $0x38] sm:$0xf]
    %v1956 = vld [vmem:[%s1940 + $0x3c] sm:$0xf]
    %s1957 = scalar_lea.vmem %s7, 1
    %v1958 = vld [vmem:[%s1957] sm:$0x1]
    %v1960 = vlaneseq
    %v1961 = vshrl.u32 %v1960, 7
    %v1962 = vsub.s32 0, %v1961
    %v1963 = vrot.slane %v1958, %v1962
    %v1981 = vunpack.c.l.b16 %v1941
    %v1982 = vunpack.c.l.b16 %v1942
    %v1983 = vunpack.c.l.b16 %v1943
    %v1984 = vunpack.c.l.b16 %v1944
    %v1985 = vunpack.c.l.b16 %v1945
    %v1986 = vunpack.c.l.b16 %v1946
    %v1987 = vunpack.c.l.b16 %v1947
    %v1988 = vunpack.c.l.b16 %v1948
    %v1989 = vunpack.c.l.b16 %v1949
    %v1990 = vunpack.c.l.b16 %v1950
    %v1991 = vunpack.c.l.b16 %v1951
    %v1992 = vunpack.c.l.b16 %v1952
    %v1993 = vunpack.c.l.b16 %v1953
    %v1994 = vunpack.c.l.b16 %v1954
    %v1995 = vunpack.c.l.b16 %v1955
    %v1996 = vunpack.c.l.b16 %v1956
    %v1997 = vpack.c.b16 %v1982, %v1981
    %v1998 = vpack.c.b16 %v1984, %v1983
    %v1999 = vpack.c.b16 %v1986, %v1985
    %v2000 = vpack.c.b16 %v1988, %v1987
    %v2001 = vpack.c.b16 %v1990, %v1989
    %v2002 = vpack.c.b16 %v1992, %v1991
    %v2003 = vpack.c.b16 %v1994, %v1993
    %v2004 = vpack.c.b16 %v1996, %v1995
    %2013 = vmatprep.subr.bf16.mxu0 0
    %2014 = vmatpush1.bf16.msra.mxu0 %v1997
    %2015 = vmatprep.subr.bf16.mxu0 0
    %2016 = vmatpush1.bf16.msra.mxu0 %v1998
    %2017 = vmatprep.subr.bf16.mxu0 0
    %2018 = vmatpush1.bf16.msra.mxu0 %v1999
    %2019 = vmatprep.subr.bf16.mxu0 0
    %2020 = vmatpush1.bf16.msra.mxu0 %v2000
    %2021 = vmatprep.subr.bf16.mxu0 0
    %2022 = vmatpush1.bf16.msra.mxu0 %v2001
    %2023 = vmatprep.subr.bf16.mxu0 0
    %2024 = vmatpush1.bf16.msra.mxu0 %v2002
    %2025 = vmatprep.subr.bf16.mxu0 0
    %2026 = vmatpush1.bf16.msra.mxu0 %v2003
    %2027 = vmatprep.subr.bf16.mxu0 0
    %2028 = vmatpush1.bf16.msra.mxu0 %v2004
    %2029 = vmatprep.subr.bf16.mxu0 0
    %2030 = vmatpush1.bf16.msra.mxu0 0
    %2031 = vmatprep.subr.bf16.mxu0 0
    %2032 = vmatpush1.bf16.msra.mxu0 0
    %2033 = vmatprep.subr.bf16.mxu0 0
    %2034 = vmatpush1.bf16.msra.mxu0 0
    %2035 = vmatprep.subr.bf16.mxu0 0
    %2036 = vmatpush1.bf16.msra.mxu0 0
    %2037 = vmatprep.subr.bf16.mxu0 0
    %2038 = vmatpush1.bf16.msra.mxu0 0
    %2039 = vmatprep.subr.bf16.mxu0 0
    %2040 = vmatpush1.bf16.msra.mxu0 0
    %2041 = vmatprep.subr.bf16.mxu0 0
    %2042 = vmatpush1.bf16.msra.mxu0 0
    %2043 = vmatprep.subr.bf16.mxu0 0
    %2044 = vmatpush1.bf16.msra.mxu0 0
    %2045 = vmatprep.mubr.bf16.mxu0 0
    %2046 = vmatmul.mubr.bf16.gmra.mrb[0].mxu0 %v1825
    %v2047 = vpop.f32.mrb[0].mxu0
    %v2048 = vadd.f32 %v1963, %v2047
    %v2049 = vpop.f32.mrb[0].mxu0
    %v2050 = vpop.f32.mrb[0].mxu0
    %v2051 = vadd.f32 %v1963, %v2050
    %v2052 = vpop.f32.mrb[0].mxu0
    %2053 = vdwg.mxu0
    %s2054 = scalar_lea.vmem [#allocation10], 64
    %v2055 = vld [vmem:[%s2054] sm:$0xf]
    %v2056 = vld [vmem:[%s2054 + $0x4] sm:$0xf]
    %v2057 = vld [vmem:[%s2054 + $0x8] sm:$0xf]
    %v2058 = vld [vmem:[%s2054 + $0xc] sm:$0xf]
    %v2059 = vld [vmem:[%s2054 + $0x10] sm:$0xf]
    %v2060 = vld [vmem:[%s2054 + $0x14] sm:$0xf]
    %v2061 = vld [vmem:[%s2054 + $0x18] sm:$0xf]
    %v2062 = vld [vmem:[%s2054 + $0x1c] sm:$0xf]
    %v2063 = vld [vmem:[%s2054 + $0x20] sm:$0xf]
    %v2064 = vld [vmem:[%s2054 + $0x24] sm:$0xf]
    %v2065 = vld [vmem:[%s2054 + $0x28] sm:$0xf]
    %v2066 = vld [vmem:[%s2054 + $0x2c] sm:$0xf]
    %v2067 = vld [vmem:[%s2054 + $0x30] sm:$0xf]
    %v2068 = vld [vmem:[%s2054 + $0x34] sm:$0xf]
    %v2069 = vld [vmem:[%s2054 + $0x38] sm:$0xf]
    %v2070 = vld [vmem:[%s2054 + $0x3c] sm:$0xf]
    %s2071 = scalar_lea.vmem [#allocation11], 1
    %v2072 = vld [vmem:[%s2071] sm:$0x1]
    %v2074 = vlaneseq
    %v2075 = vshrl.u32 %v2074, 7
    %v2076 = vsub.s32 0, %v2075
    %v2077 = vrot.slane %v2072, %v2076
    %v2095 = vunpack.c.l.b16 %v2055
    %v2096 = vunpack.c.l.b16 %v2056
    %v2097 = vunpack.c.l.b16 %v2057
    %v2098 = vunpack.c.l.b16 %v2058
    %v2099 = vunpack.c.l.b16 %v2059
    %v2100 = vunpack.c.l.b16 %v2060
    %v2101 = vunpack.c.l.b16 %v2061
    %v2102 = vunpack.c.l.b16 %v2062
    %v2103 = vunpack.c.l.b16 %v2063
    %v2104 = vunpack.c.l.b16 %v2064
    %v2105 = vunpack.c.l.b16 %v2065
    %v2106 = vunpack.c.l.b16 %v2066
    %v2107 = vunpack.c.l.b16 %v2067
    %v2108 = vunpack.c.l.b16 %v2068
    %v2109 = vunpack.c.l.b16 %v2069
    %v2110 = vunpack.c.l.b16 %v2070
    %v2111 = vpack.c.b16 %v2096, %v2095
    %v2112 = vpack.c.b16 %v2098, %v2097
    %v2113 = vpack.c.b16 %v2100, %v2099
    %v2114 = vpack.c.b16 %v2102, %v2101
    %v2115 = vpack.c.b16 %v2104, %v2103
    %v2116 = vpack.c.b16 %v2106, %v2105
    %v2117 = vpack.c.b16 %v2108, %v2107
    %v2118 = vpack.c.b16 %v2110, %v2109
    %2127 = vmatprep.subr.bf16.mxu0 0
    %2128 = vmatpush1.bf16.msra.mxu0 %v2111
    %2129 = vmatprep.subr.bf16.mxu0 0
    %2130 = vmatpush1.bf16.msra.mxu0 %v2112
    %2131 = vmatprep.subr.bf16.mxu0 0
    %2132 = vmatpush1.bf16.msra.mxu0 %v2113
    %2133 = vmatprep.subr.bf16.mxu0 0
    %2134 = vmatpush1.bf16.msra.mxu0 %v2114
    %2135 = vmatprep.subr.bf16.mxu0 0
    %2136 = vmatpush1.bf16.msra.mxu0 %v2115
    %2137 = vmatprep.subr.bf16.mxu0 0
    %2138 = vmatpush1.bf16.msra.mxu0 %v2116
    %2139 = vmatprep.subr.bf16.mxu0 0
    %2140 = vmatpush1.bf16.msra.mxu0 %v2117
    %2141 = vmatprep.subr.bf16.mxu0 0
    %2142 = vmatpush1.bf16.msra.mxu0 %v2118
    %2143 = vmatprep.subr.bf16.mxu0 0
    %2144 = vmatpush1.bf16.msra.mxu0 0
    %2145 = vmatprep.subr.bf16.mxu0 0
    %2146 = vmatpush1.bf16.msra.mxu0 0
    %2147 = vmatprep.subr.bf16.mxu0 0
    %2148 = vmatpush1.bf16.msra.mxu0 0
    %2149 = vmatprep.subr.bf16.mxu0 0
    %2150 = vmatpush1.bf16.msra.mxu0 0
    %2151 = vmatprep.subr.bf16.mxu0 0
    %2152 = vmatpush1.bf16.msra.mxu0 0
    %2153 = vmatprep.subr.bf16.mxu0 0
    %2154 = vmatpush1.bf16.msra.mxu0 0
    %2155 = vmatprep.subr.bf16.mxu0 0
    %2156 = vmatpush1.bf16.msra.mxu0 0
    %2157 = vmatprep.subr.bf16.mxu0 0
    %2158 = vmatpush1.bf16.msra.mxu0 0
    %2159 = vmatprep.mubr.bf16.mxu0 0
    %2160 = vmatmul.mubr.bf16.gmra.mrb[0].mxu0 %v1825
    %v2161 = vpop.f32.mrb[0].mxu0
    %v2162 = vadd.f32 %v2077, %v2161
    %v2163 = vpop.f32.mrb[0].mxu0
    %v2164 = vpop.f32.mrb[0].mxu0
    %v2165 = vadd.f32 %v2077, %v2164
    %v2166 = vpop.f32.mrb[0].mxu0
    %2167 = vdwg.mxu0
    %s2168 = scalar_lea.vmem [#allocation13], 64
    %v2169 = vld [vmem:[%s2168] sm:$0xf]
    %v2170 = vld [vmem:[%s2168 + $0x4] sm:$0xf]
    %v2171 = vld [vmem:[%s2168 + $0x8] sm:$0xf]
    %v2172 = vld [vmem:[%s2168 + $0xc] sm:$0xf]
    %v2173 = vld [vmem:[%s2168 + $0x10] sm:$0xf]
    %v2174 = vld [vmem:[%s2168 + $0x14] sm:$0xf]
    %v2175 = vld [vmem:[%s2168 + $0x18] sm:$0xf]
    %v2176 = vld [vmem:[%s2168 + $0x1c] sm:$0xf]
    %v2177 = vld [vmem:[%s2168 + $0x20] sm:$0xf]
    %v2178 = vld [vmem:[%s2168 + $0x24] sm:$0xf]
    %v2179 = vld [vmem:[%s2168 + $0x28] sm:$0xf]
    %v2180 = vld [vmem:[%s2168 + $0x2c] sm:$0xf]
    %v2181 = vld [vmem:[%s2168 + $0x30] sm:$0xf]
    %v2182 = vld [vmem:[%s2168 + $0x34] sm:$0xf]
    %v2183 = vld [vmem:[%s2168 + $0x38] sm:$0xf]
    %v2184 = vld [vmem:[%s2168 + $0x3c] sm:$0xf]
    %v2185 = vpack.c.bf16 %v1934, %v1934
    %v2186 = vpack.c.bf16 %v2048, %v2048
    %v2187 = vpack.c.bf16 %v2162, %v2162
    %v2189 = vsel %vm698, %v2185, 0
    %v2192 = vsel %vm698, %v2186, 0
    %2194 = vmatprep.subr.bf16.mxu0 0
    %2195 = vmatpush1.bf16.xpose.msra.mxu0 %v2192
    %2196 = vmatprep.subr.bf16.mxu0 0
    %2197 = vmatpush1.bf16.xpose.msra.mxu0 0
    %2198 = vmatprep.subr.bf16.mxu0 0
    %2199 = vmatpush1.bf16.xpose.msra.mxu0 0
    %2200 = vmatprep.subr.bf16.mxu0 0
    %2201 = vmatpush1.bf16.xpose.msra.mxu0 0
    %2202 = vmatprep.subr.bf16.mxu0 0
    %2203 = vmatpush1.bf16.xpose.msra.mxu0 0
    %2204 = vmatprep.subr.bf16.mxu0 0
    %2205 = vmatpush1.bf16.xpose.msra.mxu0 0
    %2206 = vmatprep.subr.bf16.mxu0 0
    %2207 = vmatpush1.bf16.xpose.msra.mxu0 0
    %2208 = vmatprep.subr.bf16.mxu0 0
    %2209 = vmatpush1.bf16.xpose.msra.mxu0 0
    %2210 = vmatprep.subr.bf16.mxu0 0
    %2211 = vmatpush1.bf16.xpose.msra.mxu0 0
    %2212 = vmatprep.subr.bf16.mxu0 0
    %2213 = vmatpush1.bf16.xpose.msra.mxu0 0
    %2214 = vmatprep.subr.bf16.mxu0 0
    %2215 = vmatpush1.bf16.xpose.msra.mxu0 0
    %2216 = vmatprep.subr.bf16.mxu0 0
    %2217 = vmatpush1.bf16.xpose.msra.mxu0 0
    %2218 = vmatprep.subr.bf16.mxu0 0
    %2219 = vmatpush1.bf16.xpose.msra.mxu0 0
    %2220 = vmatprep.subr.bf16.mxu0 0
    %2221 = vmatpush1.bf16.xpose.msra.mxu0 0
    %2222 = vmatprep.subr.bf16.mxu0 0
    %2223 = vmatpush1.bf16.xpose.msra.mxu0 0
    %2224 = vmatprep.subr.bf16.mxu0 0
    %2225 = vmatpush1.bf16.xpose.msra.mxu0 0
    %2226 = vmatprep.mubr.bf16.mxu0 0
    %2227 = vmatmul.mubr.bf16.gmra.mrb[0].mxu0 %v2189
    %v2228 = vpop.f32.mrb[0].mxu0
    %v2229 = vadd.f32 %v694, %v2228
    %v2230 = vpop.f32.mrb[0].mxu0
    %v2231 = vpop.f32.mrb[0].mxu0
    %v2232 = vpop.f32.mrb[0].mxu0
    %2233 = vdwg.mxu0
    %v2234 = vsel %vm745, %v2229, -inf
    %2235 = vmax.xlane.f32.xlu0 %v2234
    %v2236 = vpop.xlane.xlu0 %2235
    %v2237 = vsub.f32 %v2229, %v2236
    %v2238 = vmul.f32 %v2237, 1.442695
    %v2239 = vpow.pop %v2238
    %v2240 = vsel %vm745, %v2239, 0.0
    %2241 = vadd.xlane.f32.xlu0 %v2240
    %v2242 = vpop.xlane.xlu0 %2241
    %v2243 = vrcp.pop %v2242
    %v2244 = vmul.f32 %v2239, %v2243
    %v2245 = vpack.c.bf16 %v2244, %v2244
    %v2247 = vsel %vm745, %v2245, 0
    %v2250 = vsel %vm761, %v2187, 0
    %2252 = vmatprep.subr.bf16.mxu0 0
    %2253 = vmatpush1.bf16.msra.mxu0 %v2250
    %2254 = vmatprep.subr.bf16.mxu0 0
    %2255 = vmatpush1.bf16.msra.mxu0 0
    %2256 = vmatprep.subr.bf16.mxu0 0
    %2257 = vmatpush1.bf16.msra.mxu0 0
    %2258 = vmatprep.subr.bf16.mxu0 0
    %2259 = vmatpush1.bf16.msra.mxu0 0
    %2260 = vmatprep.subr.bf16.mxu0 0
    %2261 = vmatpush1.bf16.msra.mxu0 0
    %2262 = vmatprep.subr.bf16.mxu0 0
    %2263 = vmatpush1.bf16.msra.mxu0 0
    %2264 = vmatprep.subr.bf16.mxu0 0
    %2265 = vmatpush1.bf16.msra.mxu0 0
    %2266 = vmatprep.subr.bf16.mxu0 0
    %2267 = vmatpush1.bf16.msra.mxu0 0
    %2268 = vmatprep.subr.bf16.mxu0 0
    %2269 = vmatpush1.bf16.msra.mxu0 0
    %2270 = vmatprep.subr.bf16.mxu0 0
    %2271 = vmatpush1.bf16.msra.mxu0 0
    %2272 = vmatprep.subr.bf16.mxu0 0
    %2273 = vmatpush1.bf16.msra.mxu0 0
    %2274 = vmatprep.subr.bf16.mxu0 0
    %2275 = vmatpush1.bf16.msra.mxu0 0
    %2276 = vmatprep.subr.bf16.mxu0 0
    %2277 = vmatpush1.bf16.msra.mxu0 0
    %2278 = vmatprep.subr.bf16.mxu0 0
    %2279 = vmatpush1.bf16.msra.mxu0 0
    %2280 = vmatprep.subr.bf16.mxu0 0
    %2281 = vmatpush1.bf16.msra.mxu0 0
    %2282 = vmatprep.subr.bf16.mxu0 0
    %2283 = vmatpush1.bf16.msra.mxu0 0
    %2284 = vmatprep.mubr.bf16.mxu0 0
    %2285 = vmatmul.mubr.bf16.gmra.mrb[0].mxu0 %v2247
    %v2286 = vpop.f32.mrb[0].mxu0
    %v2287 = vadd.f32 0.0, %v2286
    %v2288 = vpop.f32.mrb[0].mxu0
    %v2289 = vpop.f32.mrb[0].mxu0
    %v2290 = vpop.f32.mrb[0].mxu0
    %2291 = vdwg.mxu0
    %v2292 = vpack.c.bf16 %v2287, %v2287
    %2294 = vrot.lane.b32.xlu0 %v2185, 64
    %v2295 = vpop.permute.xlu0 %2294
    %2297 = vrot.lane.b32.xlu0 %v2186, 64
    %v2298 = vpop.permute.xlu0 %2297
    %v2300 = vsel %vm698, %v2295, 0
    %v2303 = vsel %vm698, %v2298, 0
    %2305 = vmatprep.subr.bf16.mxu0 0
    %2306 = vmatpush1.bf16.xpose.msra.mxu0 %v2303
    %2307 = vmatprep.subr.bf16.mxu0 0
    %2308 = vmatpush1.bf16.xpose.msra.mxu0 0
    %2309 = vmatprep.subr.bf16.mxu0 0
    %2310 = vmatpush1.bf16.xpose.msra.mxu0 0
    %2311 = vmatprep.subr.bf16.mxu0 0
    %2312 = vmatpush1.bf16.xpose.msra.mxu0 0
    %2313 = vmatprep.subr.bf16.mxu0 0
    %2314 = vmatpush1.bf16.xpose.msra.mxu0 0
    %2315 = vmatprep.subr.bf16.mxu0 0
    %2316 = vmatpush1.bf16.xpose.msra.mxu0 0
    %2317 = vmatprep.subr.bf16.mxu0 0
    %2318 = vmatpush1.bf16.xpose.msra.mxu0 0
    %2319 = vmatprep.subr.bf16.mxu0 0
    %2320 = vmatpush1.bf16.xpose.msra.mxu0 0
    %2321 = vmatprep.subr.bf16.mxu0 0
    %2322 = vmatpush1.bf16.xpose.msra.mxu0 0
    %2323 = vmatprep.subr.bf16.mxu0 0
    %2324 = vmatpush1.bf16.xpose.msra.mxu0 0
    %2325 = vmatprep.subr.bf16.mxu0 0
    %2326 = vmatpush1.bf16.xpose.msra.mxu0 0
    %2327 = vmatprep.subr.bf16.mxu0 0
    %2328 = vmatpush1.bf16.xpose.msra.mxu0 0
    %2329 = vmatprep.subr.bf16.mxu0 0
    %2330 = vmatpush1.bf16.xpose.msra.mxu0 0
    %2331 = vmatprep.subr.bf16.mxu0 0
    %2332 = vmatpush1.bf16.xpose.msra.mxu0 0
    %2333 = vmatprep.subr.bf16.mxu0 0
    %2334 = vmatpush1.bf16.xpose.msra.mxu0 0
    %2335 = vmatprep.subr.bf16.mxu0 0
    %2336 = vmatpush1.bf16.xpose.msra.mxu0 0
    %2337 = vmatprep.mubr.bf16.mxu0 0
    %2338 = vmatmul.mubr.bf16.gmra.mrb[0].mxu0 %v2300
    %v2339 = vpop.f32.mrb[0].mxu0
    %v2340 = vadd.f32 %v694, %v2339
    %v2341 = vpop.f32.mrb[0].mxu0
    %v2342 = vpop.f32.mrb[0].mxu0
    %v2343 = vpop.f32.mrb[0].mxu0
    %2344 = vdwg.mxu0
    %v2345 = vsel %vm745, %v2340, -inf
    %2346 = vmax.xlane.f32.xlu0 %v2345
    %v2347 = vpop.xlane.xlu0 %2346
    %v2348 = vsub.f32 %v2340, %v2347
    %v2349 = vmul.f32 %v2348, 1.442695
    %v2350 = vpow.pop %v2349
    %v2351 = vsel %vm745, %v2350, 0.0
    %2352 = vadd.xlane.f32.xlu0 %v2351
    %v2353 = vpop.xlane.xlu0 %2352
    %v2354 = vrcp.pop %v2353
    %v2355 = vmul.f32 %v2350, %v2354
    %v2356 = vpack.c.bf16 %v2355, %v2355
    %2358 = vrot.lane.b32.xlu0 %v2187, 64
    %v2359 = vpop.permute.xlu0 %2358
    %v2361 = vsel %vm745, %v2356, 0
    %v2364 = vsel %vm761, %v2359, 0
    %2366 = vmatprep.subr.bf16.mxu0 0
    %2367 = vmatpush1.bf16.msra.mxu0 %v2364
    %2368 = vmatprep.subr.bf16.mxu0 0
    %2369 = vmatpush1.bf16.msra.mxu0 0
    %2370 = vmatprep.subr.bf16.mxu0 0
    %2371 = vmatpush1.bf16.msra.mxu0 0
    %2372 = vmatprep.subr.bf16.mxu0 0
    %2373 = vmatpush1.bf16.msra.mxu0 0
    %2374 = vmatprep.subr.bf16.mxu0 0
    %2375 = vmatpush1.bf16.msra.mxu0 0
    %2376 = vmatprep.subr.bf16.mxu0 0
    %2377 = vmatpush1.bf16.msra.mxu0 0
    %2378 = vmatprep.subr.bf16.mxu0 0
    %2379 = vmatpush1.bf16.msra.mxu0 0
    %2380 = vmatprep.subr.bf16.mxu0 0
    %2381 = vmatpush1.bf16.msra.mxu0 0
    %2382 = vmatprep.subr.bf16.mxu0 0
    %2383 = vmatpush1.bf16.msra.mxu0 0
    %2384 = vmatprep.subr.bf16.mxu0 0
    %2385 = vmatpush1.bf16.msra.mxu0 0
    %2386 = vmatprep.subr.bf16.mxu0 0
    %2387 = vmatpush1.bf16.msra.mxu0 0
    %2388 = vmatprep.subr.bf16.mxu0 0
    %2389 = vmatpush1.bf16.msra.mxu0 0
    %2390 = vmatprep.subr.bf16.mxu0 0
    %2391 = vmatpush1.bf16.msra.mxu0 0
    %2392 = vmatprep.subr.bf16.mxu0 0
    %2393 = vmatpush1.bf16.msra.mxu0 0
    %2394 = vmatprep.subr.bf16.mxu0 0
    %2395 = vmatpush1.bf16.msra.mxu0 0
    %2396 = vmatprep.subr.bf16.mxu0 0
    %2397 = vmatpush1.bf16.msra.mxu0 0
    %2398 = vmatprep.mubr.bf16.mxu0 0
    %2399 = vmatmul.mubr.bf16.gmra.mrb[0].mxu0 %v2361
    %v2400 = vpop.f32.mrb[0].mxu0
    %v2401 = vadd.f32 0.0, %v2400
    %v2402 = vpop.f32.mrb[0].mxu0
    %v2403 = vpop.f32.mrb[0].mxu0
    %v2404 = vpop.f32.mrb[0].mxu0
    %2405 = vdwg.mxu0
    %v2406 = vpack.c.bf16 %v2401, %v2401
    %v2415 = vunpack.c.l.b16 %v2177
    %v2416 = vunpack.c.l.b16 %v2178
    %v2417 = vunpack.c.l.b16 %v2179
    %v2418 = vunpack.c.l.b16 %v2180
    %v2419 = vunpack.c.l.b16 %v2181
    %v2420 = vunpack.c.l.b16 %v2182
    %v2421 = vunpack.c.l.b16 %v2183
    %v2422 = vunpack.c.l.b16 %v2184
    %v2423 = vpack.c.b16 %v2416, %v2415
    %v2424 = vpack.c.b16 %v2418, %v2417
    %v2425 = vpack.c.b16 %v2420, %v2419
    %v2426 = vpack.c.b16 %v2422, %v2421
    %v2432 = vsel %vm698, %v2406, 0
    %2434 = vmatprep.subr.bf16.mxu0 0
    %2435 = vmatpush1.bf16.msra.mxu0 %v2423
    %2436 = vmatprep.subr.bf16.mxu0 0
    %2437 = vmatpush1.bf16.msra.mxu0 %v2424
    %2438 = vmatprep.subr.bf16.mxu0 0
    %2439 = vmatpush1.bf16.msra.mxu0 %v2425
    %2440 = vmatprep.subr.bf16.mxu0 0
    %2441 = vmatpush1.bf16.msra.mxu0 %v2426
    %2442 = vmatprep.subr.bf16.mxu0 0
    %2443 = vmatpush1.bf16.msra.mxu0 0
    %2444 = vmatprep.subr.bf16.mxu0 0
    %2445 = vmatpush1.bf16.msra.mxu0 0
    %2446 = vmatprep.subr.bf16.mxu0 0
    %2447 = vmatpush1.bf16.msra.mxu0 0
    %2448 = vmatprep.subr.bf16.mxu0 0
    %2449 = vmatpush1.bf16.msra.mxu0 0
    %2450 = vmatprep.subr.bf16.mxu0 0
    %2451 = vmatpush1.bf16.msra.mxu0 0
    %2452 = vmatprep.subr.bf16.mxu0 0
    %2453 = vmatpush1.bf16.msra.mxu0 0
    %2454 = vmatprep.subr.bf16.mxu0 0
    %2455 = vmatpush1.bf16.msra.mxu0 0
    %2456 = vmatprep.subr.bf16.mxu0 0
    %2457 = vmatpush1.bf16.msra.mxu0 0
    %2458 = vmatprep.subr.bf16.mxu0 0
    %2459 = vmatpush1.bf16.msra.mxu0 0
    %2460 = vmatprep.subr.bf16.mxu0 0
    %2461 = vmatpush1.bf16.msra.mxu0 0
    %2462 = vmatprep.subr.bf16.mxu0 0
    %2463 = vmatpush1.bf16.msra.mxu0 0
    %2464 = vmatprep.subr.bf16.mxu0 0
    %2465 = vmatpush1.bf16.msra.mxu0 0
    %2466 = vmatprep.mubr.bf16.mxu0 0
    %2467 = vmatmul.mubr.bf16.gmra.mrb[0].mxu0 %v2432
    %v2468 = vpop.f32.mrb[0].mxu0
    %v2469 = vadd.f32 0.0, %v2468
    %v2470 = vpop.f32.mrb[0].mxu0
    %v2471 = vpop.f32.mrb[0].mxu0
    %v2472 = vpop.f32.mrb[0].mxu0
    %2473 = vdwg.mxu0
    %v2482 = vunpack.c.l.b16 %v2169
    %v2483 = vunpack.c.l.b16 %v2170
    %v2484 = vunpack.c.l.b16 %v2171
    %v2485 = vunpack.c.l.b16 %v2172
    %v2486 = vunpack.c.l.b16 %v2173
    %v2487 = vunpack.c.l.b16 %v2174
    %v2488 = vunpack.c.l.b16 %v2175
    %v2489 = vunpack.c.l.b16 %v2176
    %v2490 = vpack.c.b16 %v2483, %v2482
    %v2491 = vpack.c.b16 %v2485, %v2484
    %v2492 = vpack.c.b16 %v2487, %v2486
    %v2493 = vpack.c.b16 %v2489, %v2488
    %v2499 = vsel %vm698, %v2292, 0
    %2501 = vmatprep.subr.bf16.mxu0 0
    %2502 = vmatpush1.bf16.msra.mxu0 %v2490
    %2503 = vmatprep.subr.bf16.mxu0 0
    %2504 = vmatpush1.bf16.msra.mxu0 %v2491
    %2505 = vmatprep.subr.bf16.mxu0 0
    %2506 = vmatpush1.bf16.msra.mxu0 %v2492
    %2507 = vmatprep.subr.bf16.mxu0 0
    %2508 = vmatpush1.bf16.msra.mxu0 %v2493
    %2509 = vmatprep.subr.bf16.mxu0 0
    %2510 = vmatpush1.bf16.msra.mxu0 0
    %2511 = vmatprep.subr.bf16.mxu0 0
    %2512 = vmatpush1.bf16.msra.mxu0 0
    %2513 = vmatprep.subr.bf16.mxu0 0
    %2514 = vmatpush1.bf16.msra.mxu0 0
    %2515 = vmatprep.subr.bf16.mxu0 0
    %2516 = vmatpush1.bf16.msra.mxu0 0
    %2517 = vmatprep.subr.bf16.mxu0 0
    %2518 = vmatpush1.bf16.msra.mxu0 0
    %2519 = vmatprep.subr.bf16.mxu0 0
    %2520 = vmatpush1.bf16.msra.mxu0 0
    %2521 = vmatprep.subr.bf16.mxu0 0
    %2522 = vmatpush1.bf16.msra.mxu0 0
    %2523 = vmatprep.subr.bf16.mxu0 0
    %2524 = vmatpush1.bf16.msra.mxu0 0
    %2525 = vmatprep.subr.bf16.mxu0 0
    %2526 = vmatpush1.bf16.msra.mxu0 0
    %2527 = vmatprep.subr.bf16.mxu0 0
    %2528 = vmatpush1.bf16.msra.mxu0 0
    %2529 = vmatprep.subr.bf16.mxu0 0
    %2530 = vmatpush1.bf16.msra.mxu0 0
    %2531 = vmatprep.subr.bf16.mxu0 0
    %2532 = vmatpush1.bf16.msra.mxu0 0
    %2533 = vmatprep.mubr.bf16.mxu0 0
    %2534 = vmatmul.mubr.bf16.gmra.mrb[0].mxu0 %v2499
    %v2535 = vpop.f32.mrb[0].mxu0
    %v2536 = vadd.f32 %v2469, %v2535
    %v2537 = vpop.f32.mrb[0].mxu0
    %v2538 = vpop.f32.mrb[0].mxu0
    %v2539 = vpop.f32.mrb[0].mxu0
    %2540 = vdwg.mxu0
    %v2541 = vpack.c.bf16 %v1937, %v1937
    %v2542 = vpack.c.bf16 %v2051, %v2051
    %v2543 = vpack.c.bf16 %v2165, %v2165
    %v2545 = vsel %vm698, %v2541, 0
    %v2548 = vsel %vm698, %v2542, 0
    %2550 = vmatprep.subr.bf16.mxu0 0
    %2551 = vmatpush1.bf16.xpose.msra.mxu0 %v2548
    %2552 = vmatprep.subr.bf16.mxu0 0
    %2553 = vmatpush1.bf16.xpose.msra.mxu0 0
    %2554 = vmatprep.subr.bf16.mxu0 0
    %2555 = vmatpush1.bf16.xpose.msra.mxu0 0
    %2556 = vmatprep.subr.bf16.mxu0 0
    %2557 = vmatpush1.bf16.xpose.msra.mxu0 0
    %2558 = vmatprep.subr.bf16.mxu0 0
    %2559 = vmatpush1.bf16.xpose.msra.mxu0 0
    %2560 = vmatprep.subr.bf16.mxu0 0
    %2561 = vmatpush1.bf16.xpose.msra.mxu0 0
    %2562 = vmatprep.subr.bf16.mxu0 0
    %2563 = vmatpush1.bf16.xpose.msra.mxu0 0
    %2564 = vmatprep.subr.bf16.mxu0 0
    %2565 = vmatpush1.bf16.xpose.msra.mxu0 0
    %2566 = vmatprep.subr.bf16.mxu0 0
    %2567 = vmatpush1.bf16.xpose.msra.mxu0 0
    %2568 = vmatprep.subr.bf16.mxu0 0
    %2569 = vmatpush1.bf16.xpose.msra.mxu0 0
    %2570 = vmatprep.subr.bf16.mxu0 0
    %2571 = vmatpush1.bf16.xpose.msra.mxu0 0
    %2572 = vmatprep.subr.bf16.mxu0 0
    %2573 = vmatpush1.bf16.xpose.msra.mxu0 0
    %2574 = vmatprep.subr.bf16.mxu0 0
    %2575 = vmatpush1.bf16.xpose.msra.mxu0 0
    %2576 = vmatprep.subr.bf16.mxu0 0
    %2577 = vmatpush1.bf16.xpose.msra.mxu0 0
    %2578 = vmatprep.subr.bf16.mxu0 0
    %2579 = vmatpush1.bf16.xpose.msra.mxu0 0
    %2580 = vmatprep.subr.bf16.mxu0 0
    %2581 = vmatpush1.bf16.xpose.msra.mxu0 0
    %2582 = vmatprep.mubr.bf16.mxu0 0
    %2583 = vmatmul.mubr.bf16.gmra.mrb[0].mxu0 %v2545
    %v2584 = vpop.f32.mrb[0].mxu0
    %v2585 = vadd.f32 %v1057, %v2584
    %v2586 = vpop.f32.mrb[0].mxu0
    %v2587 = vpop.f32.mrb[0].mxu0
    %v2588 = vpop.f32.mrb[0].mxu0
    %2589 = vdwg.mxu0
    %v2590 = vsel %vm745, %v2585, -inf
    %2591 = vmax.xlane.f32.xlu0 %v2590
    %v2592 = vpop.xlane.xlu0 %2591
    %v2593 = vsub.f32 %v2585, %v2592
    %v2594 = vmul.f32 %v2593, 1.442695
    %v2595 = vpow.pop %v2594
    %v2596 = vsel %vm745, %v2595, 0.0
    %2597 = vadd.xlane.f32.xlu0 %v2596
    %v2598 = vpop.xlane.xlu0 %2597
    %v2599 = vrcp.pop %v2598
    %v2600 = vmul.f32 %v2595, %v2599
    %v2601 = vpack.c.bf16 %v2600, %v2600
    %v2603 = vsel %vm745, %v2601, 0
    %v2606 = vsel %vm761, %v2543, 0
    %2608 = vmatprep.subr.bf16.mxu0 0
    %2609 = vmatpush1.bf16.msra.mxu0 %v2606
    %2610 = vmatprep.subr.bf16.mxu0 0
    %2611 = vmatpush1.bf16.msra.mxu0 0
    %2612 = vmatprep.subr.bf16.mxu0 0
    %2613 = vmatpush1.bf16.msra.mxu0 0
    %2614 = vmatprep.subr.bf16.mxu0 0
    %2615 = vmatpush1.bf16.msra.mxu0 0
    %2616 = vmatprep.subr.bf16.mxu0 0
    %2617 = vmatpush1.bf16.msra.mxu0 0
    %2618 = vmatprep.subr.bf16.mxu0 0
    %2619 = vmatpush1.bf16.msra.mxu0 0
    %2620 = vmatprep.subr.bf16.mxu0 0
    %2621 = vmatpush1.bf16.msra.mxu0 0
    %2622 = vmatprep.subr.bf16.mxu0 0
    %2623 = vmatpush1.bf16.msra.mxu0 0
    %2624 = vmatprep.subr.bf16.mxu0 0
    %2625 = vmatpush1.bf16.msra.mxu0 0
    %2626 = vmatprep.subr.bf16.mxu0 0
    %2627 = vmatpush1.bf16.msra.mxu0 0
    %2628 = vmatprep.subr.bf16.mxu0 0
    %2629 = vmatpush1.bf16.msra.mxu0 0
    %2630 = vmatprep.subr.bf16.mxu0 0
    %2631 = vmatpush1.bf16.msra.mxu0 0
    %2632 = vmatprep.subr.bf16.mxu0 0
    %2633 = vmatpush1.bf16.msra.mxu0 0
    %2634 = vmatprep.subr.bf16.mxu0 0
    %2635 = vmatpush1.bf16.msra.mxu0 0
    %2636 = vmatprep.subr.bf16.mxu0 0
    %2637 = vmatpush1.bf16.msra.mxu0 0
    %2638 = vmatprep.subr.bf16.mxu0 0
    %2639 = vmatpush1.bf16.msra.mxu0 0
    %2640 = vmatprep.mubr.bf16.mxu0 0
    %2641 = vmatmul.mubr.bf16.gmra.mrb[0].mxu0 %v2603
    %v2642 = vpop.f32.mrb[0].mxu0
    %v2643 = vadd.f32 0.0, %v2642
    %v2644 = vpop.f32.mrb[0].mxu0
    %v2645 = vpop.f32.mrb[0].mxu0
    %v2646 = vpop.f32.mrb[0].mxu0
    %2647 = vdwg.mxu0
    %v2648 = vpack.c.bf16 %v2643, %v2643
    %2650 = vrot.lane.b32.xlu0 %v2541, 64
    %v2651 = vpop.permute.xlu0 %2650
    %2653 = vrot.lane.b32.xlu0 %v2542, 64
    %v2654 = vpop.permute.xlu0 %2653
    %v2656 = vsel %vm698, %v2651, 0
    %v2659 = vsel %vm698, %v2654, 0
    %2661 = vmatprep.subr.bf16.mxu0 0
    %2662 = vmatpush1.bf16.xpose.msra.mxu0 %v2659
    %2663 = vmatprep.subr.bf16.mxu0 0
    %2664 = vmatpush1.bf16.xpose.msra.mxu0 0
    %2665 = vmatprep.subr.bf16.mxu0 0
    %2666 = vmatpush1.bf16.xpose.msra.mxu0 0
    %2667 = vmatprep.subr.bf16.mxu0 0
    %2668 = vmatpush1.bf16.xpose.msra.mxu0 0
    %2669 = vmatprep.subr.bf16.mxu0 0
    %2670 = vmatpush1.bf16.xpose.msra.mxu0 0
    %2671 = vmatprep.subr.bf16.mxu0 0
    %2672 = vmatpush1.bf16.xpose.msra.mxu0 0
    %2673 = vmatprep.subr.bf16.mxu0 0
    %2674 = vmatpush1.bf16.xpose.msra.mxu0 0
    %2675 = vmatprep.subr.bf16.mxu0 0
    %2676 = vmatpush1.bf16.xpose.msra.mxu0 0
    %2677 = vmatprep.subr.bf16.mxu0 0
    %2678 = vmatpush1.bf16.xpose.msra.mxu0 0
    %2679 = vmatprep.subr.bf16.mxu0 0
    %2680 = vmatpush1.bf16.xpose.msra.mxu0 0
    %2681 = vmatprep.subr.bf16.mxu0 0
    %2682 = vmatpush1.bf16.xpose.msra.mxu0 0
    %2683 = vmatprep.subr.bf16.mxu0 0
    %2684 = vmatpush1.bf16.xpose.msra.mxu0 0
    %2685 = vmatprep.subr.bf16.mxu0 0
    %2686 = vmatpush1.bf16.xpose.msra.mxu0 0
    %2687 = vmatprep.subr.bf16.mxu0 0
    %2688 = vmatpush1.bf16.xpose.msra.mxu0 0
    %2689 = vmatprep.subr.bf16.mxu0 0
    %2690 = vmatpush1.bf16.xpose.msra.mxu0 0
    %2691 = vmatprep.subr.bf16.mxu0 0
    %2692 = vmatpush1.bf16.xpose.msra.mxu0 0
    %2693 = vmatprep.mubr.bf16.mxu0 0
    %2694 = vmatmul.mubr.bf16.gmra.mrb[0].mxu0 %v2656
    %v2695 = vpop.f32.mrb[0].mxu0
    %v2696 = vadd.f32 %v1057, %v2695
    %v2697 = vpop.f32.mrb[0].mxu0
    %v2698 = vpop.f32.mrb[0].mxu0
    %v2699 = vpop.f32.mrb[0].mxu0
    %2700 = vdwg.mxu0
    %v2701 = vsel %vm745, %v2696, -inf
    %2702 = vmax.xlane.f32.xlu0 %v2701
    %v2703 = vpop.xlane.xlu0 %2702
    %v2704 = vsub.f32 %v2696, %v2703
    %v2705 = vmul.f32 %v2704, 1.442695
    %v2706 = vpow.pop %v2705
    %v2707 = vsel %vm745, %v2706, 0.0
    %2708 = vadd.xlane.f32.xlu0 %v2707
    %v2709 = vpop.xlane.xlu0 %2708
    %v2710 = vrcp.pop %v2709
    %v2711 = vmul.f32 %v2706, %v2710
    %v2712 = vpack.c.bf16 %v2711, %v2711
    %2714 = vrot.lane.b32.xlu0 %v2543, 64
    %v2715 = vpop.permute.xlu0 %2714
    %v2717 = vsel %vm745, %v2712, 0
    %v2720 = vsel %vm761, %v2715, 0
    %2722 = vmatprep.subr.bf16.mxu0 0
    %2723 = vmatpush1.bf16.msra.mxu0 %v2720
    %2724 = vmatprep.subr.bf16.mxu0 0
    %2725 = vmatpush1.bf16.msra.mxu0 0
    %2726 = vmatprep.subr.bf16.mxu0 0
    %2727 = vmatpush1.bf16.msra.mxu0 0
    %2728 = vmatprep.subr.bf16.mxu0 0
    %2729 = vmatpush1.bf16.msra.mxu0 0
    %2730 = vmatprep.subr.bf16.mxu0 0
    %2731 = vmatpush1.bf16.msra.mxu0 0
    %2732 = vmatprep.subr.bf16.mxu0 0
    %2733 = vmatpush1.bf16.msra.mxu0 0
    %2734 = vmatprep.subr.bf16.mxu0 0
    %2735 = vmatpush1.bf16.msra.mxu0 0
    %2736 = vmatprep.subr.bf16.mxu0 0
    %2737 = vmatpush1.bf16.msra.mxu0 0
    %2738 = vmatprep.subr.bf16.mxu0 0
    %2739 = vmatpush1.bf16.msra.mxu0 0
    %2740 = vmatprep.subr.bf16.mxu0 0
    %2741 = vmatpush1.bf16.msra.mxu0 0
    %2742 = vmatprep.subr.bf16.mxu0 0
    %2743 = vmatpush1.bf16.msra.mxu0 0
    %2744 = vmatprep.subr.bf16.mxu0 0
    %2745 = vmatpush1.bf16.msra.mxu0 0
    %2746 = vmatprep.subr.bf16.mxu0 0
    %2747 = vmatpush1.bf16.msra.mxu0 0
    %2748 = vmatprep.subr.bf16.mxu0 0
    %2749 = vmatpush1.bf16.msra.mxu0 0
    %2750 = vmatprep.subr.bf16.mxu0 0
    %2751 = vmatpush1.bf16.msra.mxu0 0
    %2752 = vmatprep.subr.bf16.mxu0 0
    %2753 = vmatpush1.bf16.msra.mxu0 0
    %2754 = vmatprep.mubr.bf16.mxu0 0
    %2755 = vmatmul.mubr.bf16.gmra.mrb[0].mxu0 %v2717
    %v2756 = vpop.f32.mrb[0].mxu0
    %v2757 = vadd.f32 0.0, %v2756
    %v2758 = vpop.f32.mrb[0].mxu0
    %v2759 = vpop.f32.mrb[0].mxu0
    %v2760 = vpop.f32.mrb[0].mxu0
    %2761 = vdwg.mxu0
    %v2762 = vpack.c.bf16 %v2757, %v2757
    %v2764 = vsel %vm698, %v2762, 0
    %2766 = vmatprep.subr.bf16.mxu0 0
    %2767 = vmatpush1.bf16.msra.mxu0 %v2423
    %2768 = vmatprep.subr.bf16.mxu0 0
    %2769 = vmatpush1.bf16.msra.mxu0 %v2424
    %2770 = vmatprep.subr.bf16.mxu0 0
    %2771 = vmatpush1.bf16.msra.mxu0 %v2425
    %2772 = vmatprep.subr.bf16.mxu0 0
    %2773 = vmatpush1.bf16.msra.mxu0 %v2426
    %2774 = vmatprep.subr.bf16.mxu0 0
    %2775 = vmatpush1.bf16.msra.mxu0 0
    %2776 = vmatprep.subr.bf16.mxu0 0
    %2777 = vmatpush1.bf16.msra.mxu0 0
    %2778 = vmatprep.subr.bf16.mxu0 0
    %2779 = vmatpush1.bf16.msra.mxu0 0
    %2780 = vmatprep.subr.bf16.mxu0 0
    %2781 = vmatpush1.bf16.msra.mxu0 0
    %2782 = vmatprep.subr.bf16.mxu0 0
    %2783 = vmatpush1.bf16.msra.mxu0 0
    %2784 = vmatprep.subr.bf16.mxu0 0
    %2785 = vmatpush1.bf16.msra.mxu0 0
    %2786 = vmatprep.subr.bf16.mxu0 0
    %2787 = vmatpush1.bf16.msra.mxu0 0
    %2788 = vmatprep.subr.bf16.mxu0 0
    %2789 = vmatpush1.bf16.msra.mxu0 0
    %2790 = vmatprep.subr.bf16.mxu0 0
    %2791 = vmatpush1.bf16.msra.mxu0 0
    %2792 = vmatprep.subr.bf16.mxu0 0
    %2793 = vmatpush1.bf16.msra.mxu0 0
    %2794 = vmatprep.subr.bf16.mxu0 0
    %2795 = vmatpush1.bf16.msra.mxu0 0
    %2796 = vmatprep.subr.bf16.mxu0 0
    %2797 = vmatpush1.bf16.msra.mxu0 0
    %2798 = vmatprep.mubr.bf16.mxu0 0
    %2799 = vmatmul.mubr.bf16.gmra.mrb[0].mxu0 %v2764
    %v2800 = vpop.f32.mrb[0].mxu0
    %v2801 = vadd.f32 0.0, %v2800
    %v2802 = vpop.f32.mrb[0].mxu0
    %v2803 = vpop.f32.mrb[0].mxu0
    %v2804 = vpop.f32.mrb[0].mxu0
    %2805 = vdwg.mxu0
    %v2807 = vsel %vm698, %v2648, 0
    %2809 = vmatprep.subr.bf16.mxu0 0
    %2810 = vmatpush1.bf16.msra.mxu0 %v2490
    %2811 = vmatprep.subr.bf16.mxu0 0
    %2812 = vmatpush1.bf16.msra.mxu0 %v2491
    %2813 = vmatprep.subr.bf16.mxu0 0
    %2814 = vmatpush1.bf16.msra.mxu0 %v2492
    %2815 = vmatprep.subr.bf16.mxu0 0
    %2816 = vmatpush1.bf16.msra.mxu0 %v2493
    %2817 = vmatprep.subr.bf16.mxu0 0
    %2818 = vmatpush1.bf16.msra.mxu0 0
    %2819 = vmatprep.subr.bf16.mxu0 0
    %2820 = vmatpush1.bf16.msra.mxu0 0
    %2821 = vmatprep.subr.bf16.mxu0 0
    %2822 = vmatpush1.bf16.msra.mxu0 0
    %2823 = vmatprep.subr.bf16.mxu0 0
    %2824 = vmatpush1.bf16.msra.mxu0 0
    %2825 = vmatprep.subr.bf16.mxu0 0
    %2826 = vmatpush1.bf16.msra.mxu0 0
    %2827 = vmatprep.subr.bf16.mxu0 0
    %2828 = vmatpush1.bf16.msra.mxu0 0
    %2829 = vmatprep.subr.bf16.mxu0 0
    %2830 = vmatpush1.bf16.msra.mxu0 0
    %2831 = vmatprep.subr.bf16.mxu0 0
    %2832 = vmatpush1.bf16.msra.mxu0 0
    %2833 = vmatprep.subr.bf16.mxu0 0
    %2834 = vmatpush1.bf16.msra.mxu0 0
    %2835 = vmatprep.subr.bf16.mxu0 0
    %2836 = vmatpush1.bf16.msra.mxu0 0
    %2837 = vmatprep.subr.bf16.mxu0 0
    %2838 = vmatpush1.bf16.msra.mxu0 0
    %2839 = vmatprep.subr.bf16.mxu0 0
    %2840 = vmatpush1.bf16.msra.mxu0 0
    %2841 = vmatprep.mubr.bf16.mxu0 0
    %2842 = vmatmul.mubr.bf16.gmra.mrb[0].mxu0 %v2807
    %v2843 = vpop.f32.mrb[0].mxu0
    %v2844 = vadd.f32 %v2801, %v2843
    %v2845 = vpop.f32.mrb[0].mxu0
    %v2846 = vpop.f32.mrb[0].mxu0
    %v2847 = vpop.f32.mrb[0].mxu0
    %2848 = vdwg.mxu0
    %s2849 = scalar_lea.vmem [#allocation14], 1
    %v2850 = vld [vmem:[%s2849] sm:$0x1]
    %v2852 = vlaneseq
    %v2853 = vshrl.u32 %v2852, 7
    %v2854 = vsub.s32 0, %v2853
    %v2855 = vrot.slane %v2850, %v2854
    %v2857 = vadd.f32 %v2536, %v2855
    %v2858 = vadd.f32 %v2844, %v2855
    %v2859 = vadd.f32 %v1823, %v2857
    %v2860 = vadd.f32 %v1824, %v2858
    %s2861 = scalar_lea.vmem [#allocation16], 1
    %v2862 = vld [vmem:[%s2861] sm:$0x1]
    %s2863 = scalar_lea.vmem [#allocation17], 1
    %v2864 = vld [vmem:[%s2863] sm:$0x1]
    %2865 = vadd.xlane.f32.xlu0 %v2859
    %v2866 = vpop.xlane.xlu0 %2865
    %2867 = vadd.xlane.f32.xlu0 %v2860
    %v2868 = vpop.xlane.xlu0 %2867
    %v2869 = vmul.f32 %v2866, %v302
    %v2870 = vmul.f32 %v2868, %v302
    %v2871 = vsub.f32 %v2859, %v2869
    %v2872 = vsub.f32 %v2860, %v2870
    %v2873 = vmul.f32 %v2871, %v2871
    %v2874 = vmul.f32 %v2872, %v2872
    %2875 = vadd.xlane.f32.xlu0 %v2873
    %v2876 = vpop.xlane.xlu0 %2875
    %2877 = vadd.xlane.f32.xlu0 %v2874
    %v2878 = vpop.xlane.xlu0 %2877
    %v2879 = vmul.f32 %v2876, %v302
    %v2880 = vmul.f32 %v2878, %v302
    %v2881 = vadd.f32 %v2879, 1e-12
    %v2882 = vadd.f32 %v2880, 1e-12
    %v2883 = vrsqrt.pop %v2881
    %v2884 = vrsqrt.pop %v2882
    %v2885 = vmul.f32 %v2871, %v2883
    %v2886 = vmul.f32 %v2872, %v2884
    %v2888 = vlaneseq
    %v2889 = vshrl.u32 %v2888, 7
    %v2890 = vsub.s32 0, %v2889
    %v2891 = vrot.slane %v2862, %v2890
    %v2893 = vmul.f32 %v2885, %v2891
    %v2894 = vmul.f32 %v2886, %v2891
    %v2896 = vlaneseq
    %v2897 = vshrl.u32 %v2896, 7
    %v2898 = vsub.s32 0, %v2897
    %v2899 = vrot.slane %v2864, %v2898
    %v2901 = vadd.f32 %v2893, %v2899
    %v2902 = vadd.f32 %v2894, %v2899
    %v2903 = vpack.c.bf16 %v2902, %v2901
    %s2904 = scalar_lea.vmem [#allocation19], 128
    %v2905 = vld [vmem:[%s2904] sm:$0xff]
    %v2906 = vld [vmem:[%s2904 + $0x8] sm:$0xff]
    %v2907 = vld [vmem:[%s2904 + $0x10] sm:$0xff]
    %v2908 = vld [vmem:[%s2904 + $0x18] sm:$0xff]
    %v2909 = vld [vmem:[%s2904 + $0x20] sm:$0xff]
    %v2910 = vld [vmem:[%s2904 + $0x28] sm:$0xff]
    %v2911 = vld [vmem:[%s2904 + $0x30] sm:$0xff]
    %v2912 = vld [vmem:[%s2904 + $0x38] sm:$0xff]
    %v2913 = vld [vmem:[%s2904 + $0x40] sm:$0xff]
    %v2914 = vld [vmem:[%s2904 + $0x48] sm:$0xff]
    %v2915 = vld [vmem:[%s2904 + $0x50] sm:$0xff]
    %v2916 = vld [vmem:[%s2904 + $0x58] sm:$0xff]
    %v2917 = vld [vmem:[%s2904 + $0x60] sm:$0xff]
    %v2918 = vld [vmem:[%s2904 + $0x68] sm:$0xff]
    %v2919 = vld [vmem:[%s2904 + $0x70] sm:$0xff]
    %v2920 = vld [vmem:[%s2904 + $0x78] sm:$0xff]
    %s2921 = scalar_lea.vmem %s15, 2
    %v2922 = vld [vmem:[%s2921] sm:$0x3]
    %v2924 = vlaneseq
    %v2925 = vshrl.u32 %v2924, 7
    %v2926 = vsub.s32 0, %v2925
    %v2927 = vrot.slane %v2922, %v2926
    %v2928 = vlaneseq
    %v2929 = vshrl.u32 %v2928, 7
    %v2930 = vsub.s32 1, %v2929
    %v2931 = vrot.slane %v2922, %v2930
    %v2950 = vunpack.c.l.b16 %v2905
    %v2951 = vunpack.c.h.b16 %v2905
    %v2952 = vunpack.c.l.b16 %v2906
    %v2953 = vunpack.c.h.b16 %v2906
    %v2954 = vunpack.c.l.b16 %v2907
    %v2955 = vunpack.c.h.b16 %v2907
    %v2956 = vunpack.c.l.b16 %v2908
    %v2957 = vunpack.c.h.b16 %v2908
    %v2958 = vunpack.c.l.b16 %v2909
    %v2959 = vunpack.c.h.b16 %v2909
    %v2960 = vunpack.c.l.b16 %v2910
    %v2961 = vunpack.c.h.b16 %v2910
    %v2962 = vunpack.c.l.b16 %v2911
    %v2963 = vunpack.c.h.b16 %v2911
    %v2964 = vunpack.c.l.b16 %v2912
    %v2965 = vunpack.c.h.b16 %v2912
    %v2966 = vunpack.c.l.b16 %v2913
    %v2967 = vunpack.c.h.b16 %v2913
    %v2968 = vunpack.c.l.b16 %v2914
    %v2969 = vunpack.c.h.b16 %v2914
    %v2970 = vunpack.c.l.b16 %v2915
    %v2971 = vunpack.c.h.b16 %v2915
    %v2972 = vunpack.c.l.b16 %v2916
    %v2973 = vunpack.c.h.b16 %v2916
    %v2974 = vunpack.c.l.b16 %v2917
    %v2975 = vunpack.c.h.b16 %v2917
    %v2976 = vunpack.c.l.b16 %v2918
    %v2977 = vunpack.c.h.b16 %v2918
    %v2978 = vunpack.c.l.b16 %v2919
    %v2979 = vunpack.c.h.b16 %v2919
    %v2980 = vunpack.c.l.b16 %v2920
    %v2981 = vunpack.c.h.b16 %v2920
    %v2982 = vpack.c.b16 %v2952, %v2950
    %v2983 = vpack.c.b16 %v2953, %v2951
    %v2984 = vpack.c.b16 %v2956, %v2954
    %v2985 = vpack.c.b16 %v2957, %v2955
    %v2986 = vpack.c.b16 %v2960, %v2958
    %v2987 = vpack.c.b16 %v2961, %v2959
    %v2988 = vpack.c.b16 %v2964, %v2962
    %v2989 = vpack.c.b16 %v2965, %v2963
    %v2990 = vpack.c.b16 %v2968, %v2966
    %v2991 = vpack.c.b16 %v2969, %v2967
    %v2992 = vpack.c.b16 %v2972, %v2970
    %v2993 = vpack.c.b16 %v2973, %v2971
    %v2994 = vpack.c.b16 %v2976, %v2974
    %v2995 = vpack.c.b16 %v2977, %v2975
    %v2996 = vpack.c.b16 %v2980, %v2978
    %v2997 = vpack.c.b16 %v2981, %v2979
    %3014 = vmatprep.subr.bf16.mxu0 %v2983
    %3015 = vmatpush1.bf16.msra.mxu0 %v2982
    %3016 = vmatprep.subr.bf16.mxu0 %v2985
    %3017 = vmatpush1.bf16.msra.mxu0 %v2984
    %3018 = vmatprep.subr.bf16.mxu0 %v2987
    %3019 = vmatpush1.bf16.msra.mxu0 %v2986
    %3020 = vmatprep.subr.bf16.mxu0 %v2989
    %3021 = vmatpush1.bf16.msra.mxu0 %v2988
    %3022 = vmatprep.subr.bf16.mxu0 %v2991
    %3023 = vmatpush1.bf16.msra.mxu0 %v2990
    %3024 = vmatprep.subr.bf16.mxu0 %v2993
    %3025 = vmatpush1.bf16.msra.mxu0 %v2992
    %3026 = vmatprep.subr.bf16.mxu0 %v2995
    %3027 = vmatpush1.bf16.msra.mxu0 %v2994
    %3028 = vmatprep.subr.bf16.mxu0 %v2997
    %3029 = vmatpush1.bf16.msra.mxu0 %v2996
    %3030 = vmatprep.subr.bf16.mxu0 0
    %3031 = vmatpush1.bf16.msra.mxu0 0
    %3032 = vmatprep.subr.bf16.mxu0 0
    %3033 = vmatpush1.bf16.msra.mxu0 0
    %3034 = vmatprep.subr.bf16.mxu0 0
    %3035 = vmatpush1.bf16.msra.mxu0 0
    %3036 = vmatprep.subr.bf16.mxu0 0
    %3037 = vmatpush1.bf16.msra.mxu0 0
    %3038 = vmatprep.subr.bf16.mxu0 0
    %3039 = vmatpush1.bf16.msra.mxu0 0
    %3040 = vmatprep.subr.bf16.mxu0 0
    %3041 = vmatpush1.bf16.msra.mxu0 0
    %3042 = vmatprep.subr.bf16.mxu0 0
    %3043 = vmatpush1.bf16.msra.mxu0 0
    %3044 = vmatprep.subr.bf16.mxu0 0
    %3045 = vmatpush1.bf16.msra.mxu0 0
    %3046 = vmatprep.mubr.bf16.mxu0 0
    %3047 = vmatmul.mubr.bf16.gmra.mrb[0].mxu0 %v2903
    %v3048 = vpop.f32.mrb[0].mxu0
    %v3049 = vadd.f32 %v2927, %v3048
    %v3050 = vpop.f32.mrb[0].mxu0
    %v3051 = vadd.f32 %v2931, %v3050
    %v3052 = vpop.f32.mrb[0].mxu0
    %v3053 = vadd.f32 %v2927, %v3052
    %v3054 = vpop.f32.mrb[0].mxu0
    %v3055 = vadd.f32 %v2931, %v3054
    %3056 = vdwg.mxu0
    %v3057 = vmul.f32 %v3049, %v3049
    %v3058 = vmul.f32 %v3051, %v3051
    %v3059 = vmul.f32 %v3053, %v3053
    %v3060 = vmul.f32 %v3055, %v3055
    %v3061 = vmul.f32 %v3049, %v3057
    %v3062 = vmul.f32 %v3051, %v3058
    %v3063 = vmul.f32 %v3053, %v3059
    %v3064 = vmul.f32 %v3055, %v3060
    %v3065 = vmul.f32 %v3061, 0.044715
    %v3066 = vmul.f32 %v3062, 0.044715
    %v3067 = vmul.f32 %v3063, 0.044715
    %v3068 = vmul.f32 %v3064, 0.044715
    %v3069 = vadd.f32 %v3049, %v3065
    %v3070 = vadd.f32 %v3051, %v3066
    %v3071 = vadd.f32 %v3053, %v3067
    %v3072 = vadd.f32 %v3055, %v3068
    %v3073 = vmul.f32 %v3069, 0.7978846
    %v3074 = vmul.f32 %v3070, 0.7978846
    %v3075 = vmul.f32 %v3071, 0.7978846
    %v3076 = vmul.f32 %v3072, 0.7978846
    %v3077 = vtanh.pop %v3073
    %v3078 = vtanh.pop %v3074
    %v3079 = vtanh.pop %v3075
    %v3080 = vtanh.pop %v3076
    %v3081 = vadd.f32 %v3077, 1.0
    %v3082 = vadd.f32 %v3078, 1.0
    %v3083 = vadd.f32 %v3079, 1.0
    %v3084 = vadd.f32 %v3080, 1.0
    %v3085 = vmul.f32 %v3081, 0.5
    %v3086 = vmul.f32 %v3082, 0.5
    %v3087 = vmul.f32 %v3083, 0.5
    %v3088 = vmul.f32 %v3084, 0.5
    %v3089 = vmul.f32 %v3049, %v3085
    %v3090 = vmul.f32 %v3051, %v3086
    %v3091 = vmul.f32 %v3053, %v3087
    %v3092 = vmul.f32 %v3055, %v3088
    %v3093 = vpack.c.bf16 %v3091, %v3089
    %v3094 = vpack.c.bf16 %v3092, %v3090
    %s3095 = scalar_lea.vmem [#allocation20], 128
    %v3096 = vld [vmem:[%s3095] sm:$0xf]
    %v3097 = vld [vmem:[%s3095 + $0x4] sm:$0xf]
    %v3098 = vld [vmem:[%s3095 + $0x8] sm:$0xf]
    %v3099 = vld [vmem:[%s3095 + $0xc] sm:$0xf]
    %v3100 = vld [vmem:[%s3095 + $0x10] sm:$0xf]
    %v3101 = vld [vmem:[%s3095 + $0x14] sm:$0xf]
    %v3102 = vld [vmem:[%s3095 + $0x18] sm:$0xf]
    %v3103 = vld [vmem:[%s3095 + $0x1c] sm:$0xf]
    %v3104 = vld [vmem:[%s3095 + $0x20] sm:$0xf]
    %v3105 = vld [vmem:[%s3095 + $0x24] sm:$0xf]
    %v3106 = vld [vmem:[%s3095 + $0x28] sm:$0xf]
    %v3107 = vld [vmem:[%s3095 + $0x2c] sm:$0xf]
    %v3108 = vld [vmem:[%s3095 + $0x30] sm:$0xf]
    %v3109 = vld [vmem:[%s3095 + $0x34] sm:$0xf]
    %v3110 = vld [vmem:[%s3095 + $0x38] sm:$0xf]
    %v3111 = vld [vmem:[%s3095 + $0x3c] sm:$0xf]
    %v3112 = vld [vmem:[%s3095 + $0x40] sm:$0xf]
    %v3113 = vld [vmem:[%s3095 + $0x44] sm:$0xf]
    %v3114 = vld [vmem:[%s3095 + $0x48] sm:$0xf]
    %v3115 = vld [vmem:[%s3095 + $0x4c] sm:$0xf]
    %v3116 = vld [vmem:[%s3095 + $0x50] sm:$0xf]
    %v3117 = vld [vmem:[%s3095 + $0x54] sm:$0xf]
    %v3118 = vld [vmem:[%s3095 + $0x58] sm:$0xf]
    %v3119 = vld [vmem:[%s3095 + $0x5c] sm:$0xf]
    %v3120 = vld [vmem:[%s3095 + $0x60] sm:$0xf]
    %v3121 = vld [vmem:[%s3095 + $0x64] sm:$0xf]
    %v3122 = vld [vmem:[%s3095 + $0x68] sm:$0xf]
    %v3123 = vld [vmem:[%s3095 + $0x6c] sm:$0xf]
    %v3124 = vld [vmem:[%s3095 + $0x70] sm:$0xf]
    %v3125 = vld [vmem:[%s3095 + $0x74] sm:$0xf]
    %v3126 = vld [vmem:[%s3095 + $0x78] sm:$0xf]
    %v3127 = vld [vmem:[%s3095 + $0x7c] sm:$0xf]
    %s3128 = scalar_lea.vmem [#allocation22], 1
    %v3129 = vld [vmem:[%s3128] sm:$0x1]
    %v3131 = vlaneseq
    %v3132 = vshrl.u32 %v3131, 7
    %v3133 = vsub.s32 0, %v3132
    %v3134 = vrot.slane %v3129, %v3133
    %v3168 = vunpack.c.l.b16 %v3096
    %v3169 = vunpack.c.l.b16 %v3097
    %v3170 = vunpack.c.l.b16 %v3098
    %v3171 = vunpack.c.l.b16 %v3099
    %v3172 = vunpack.c.l.b16 %v3100
    %v3173 = vunpack.c.l.b16 %v3101
    %v3174 = vunpack.c.l.b16 %v3102
    %v3175 = vunpack.c.l.b16 %v3103
    %v3176 = vunpack.c.l.b16 %v3104
    %v3177 = vunpack.c.l.b16 %v3105
    %v3178 = vunpack.c.l.b16 %v3106
    %v3179 = vunpack.c.l.b16 %v3107
    %v3180 = vunpack.c.l.b16 %v3108
    %v3181 = vunpack.c.l.b16 %v3109
    %v3182 = vunpack.c.l.b16 %v3110
    %v3183 = vunpack.c.l.b16 %v3111
    %v3184 = vunpack.c.l.b16 %v3112
    %v3185 = vunpack.c.l.b16 %v3113
    %v3186 = vunpack.c.l.b16 %v3114
    %v3187 = vunpack.c.l.b16 %v3115
    %v3188 = vunpack.c.l.b16 %v3116
    %v3189 = vunpack.c.l.b16 %v3117
    %v3190 = vunpack.c.l.b16 %v3118
    %v3191 = vunpack.c.l.b16 %v3119
    %v3192 = vunpack.c.l.b16 %v3120
    %v3193 = vunpack.c.l.b16 %v3121
    %v3194 = vunpack.c.l.b16 %v3122
    %v3195 = vunpack.c.l.b16 %v3123
    %v3196 = vunpack.c.l.b16 %v3124
    %v3197 = vunpack.c.l.b16 %v3125
    %v3198 = vunpack.c.l.b16 %v3126
    %v3199 = vunpack.c.l.b16 %v3127
    %v3200 = vpack.c.b16 %v3169, %v3168
    %v3201 = vpack.c.b16 %v3171, %v3170
    %v3202 = vpack.c.b16 %v3173, %v3172
    %v3203 = vpack.c.b16 %v3175, %v3174
    %v3204 = vpack.c.b16 %v3177, %v3176
    %v3205 = vpack.c.b16 %v3179, %v3178
    %v3206 = vpack.c.b16 %v3181, %v3180
    %v3207 = vpack.c.b16 %v3183, %v3182
    %v3208 = vpack.c.b16 %v3185, %v3184
    %v3209 = vpack.c.b16 %v3187, %v3186
    %v3210 = vpack.c.b16 %v3189, %v3188
    %v3211 = vpack.c.b16 %v3191, %v3190
    %v3212 = vpack.c.b16 %v3193, %v3192
    %v3213 = vpack.c.b16 %v3195, %v3194
    %v3214 = vpack.c.b16 %v3197, %v3196
    %v3215 = vpack.c.b16 %v3199, %v3198
    %3232 = vmatprep.subr.bf16.mxu0 0
    %3233 = vmatpush1.bf16.msra.mxu0 %v3200
    %3234 = vmatprep.subr.bf16.mxu0 0
    %3235 = vmatpush1.bf16.msra.mxu0 %v3201
    %3236 = vmatprep.subr.bf16.mxu0 0
    %3237 = vmatpush1.bf16.msra.mxu0 %v3202
    %3238 = vmatprep.subr.bf16.mxu0 0
    %3239 = vmatpush1.bf16.msra.mxu0 %v3203
    %3240 = vmatprep.subr.bf16.mxu0 0
    %3241 = vmatpush1.bf16.msra.mxu0 %v3204
    %3242 = vmatprep.subr.bf16.mxu0 0
    %3243 = vmatpush1.bf16.msra.mxu0 %v3205
    %3244 = vmatprep.subr.bf16.mxu0 0
    %3245 = vmatpush1.bf16.msra.mxu0 %v3206
    %3246 = vmatprep.subr.bf16.mxu0 0
    %3247 = vmatpush1.bf16.msra.mxu0 %v3207
    %3248 = vmatprep.subr.bf16.mxu0 0
    %3249 = vmatpush1.bf16.msra.mxu0 %v3208
    %3250 = vmatprep.subr.bf16.mxu0 0
    %3251 = vmatpush1.bf16.msra.mxu0 %v3209
    %3252 = vmatprep.subr.bf16.mxu0 0
    %3253 = vmatpush1.bf16.msra.mxu0 %v3210
    %3254 = vmatprep.subr.bf16.mxu0 0
    %3255 = vmatpush1.bf16.msra.mxu0 %v3211
    %3256 = vmatprep.subr.bf16.mxu0 0
    %3257 = vmatpush1.bf16.msra.mxu0 %v3212
    %3258 = vmatprep.subr.bf16.mxu0 0
    %3259 = vmatpush1.bf16.msra.mxu0 %v3213
    %3260 = vmatprep.subr.bf16.mxu0 0
    %3261 = vmatpush1.bf16.msra.mxu0 %v3214
    %3262 = vmatprep.subr.bf16.mxu0 0
    %3263 = vmatpush1.bf16.msra.mxu0 %v3215
    %3264 = vmatprep.mubr.bf16.mxu0 %v3094
    %3265 = vmatmul.mubr.bf16.gmra.mrb[0].mxu0 %v3093
    %v3266 = vpop.f32.mrb[0].mxu0
    %v3267 = vadd.f32 %v3134, %v3266
    %v3268 = vpop.f32.mrb[0].mxu0
    %v3269 = vpop.f32.mrb[0].mxu0
    %v3270 = vadd.f32 %v3134, %v3269
    %v3271 = vpop.f32.mrb[0].mxu0
    %3272 = vdwg.mxu0
    %v3273 = vadd.f32 %v2901, %v3267
    %v3274 = vadd.f32 %v2902, %v3270
    %s3275 = scalar_lea.vmem [#allocation23], 1
    %v3276 = vld [vmem:[%s3275] sm:$0x1]
    %s3277 = scalar_lea.vmem [#allocation25], 1
    %v3278 = vld [vmem:[%s3277] sm:$0x1]
    %3279 = vadd.xlane.f32.xlu0 %v3273
    %v3280 = vpop.xlane.xlu0 %3279
    %3281 = vadd.xlane.f32.xlu0 %v3274
    %v3282 = vpop.xlane.xlu0 %3281
    %v3283 = vmul.f32 %v3280, %v302
    %v3284 = vmul.f32 %v3282, %v302
    %v3285 = vsub.f32 %v3273, %v3283
    %v3286 = vsub.f32 %v3274, %v3284
    %v3287 = vmul.f32 %v3285, %v3285
    %v3288 = vmul.f32 %v3286, %v3286
    %3289 = vadd.xlane.f32.xlu0 %v3287
    %v3290 = vpop.xlane.xlu0 %3289
    %3291 = vadd.xlane.f32.xlu0 %v3288
    %v3292 = vpop.xlane.xlu0 %3291
    %v3293 = vmul.f32 %v3290, %v302
    %v3294 = vmul.f32 %v3292, %v302
    %v3295 = vadd.f32 %v3293, 1e-12
    %v3296 = vadd.f32 %v3294, 1e-12
    %v3297 = vrsqrt.pop %v3295
    %v3298 = vrsqrt.pop %v3296
    %v3299 = vmul.f32 %v3285, %v3297
    %v3300 = vmul.f32 %v3286, %v3298
    %v3302 = vlaneseq
    %v3303 = vshrl.u32 %v3302, 7
    %v3304 = vsub.s32 0, %v3303
    %v3305 = vrot.slane %v3276, %v3304
    %v3307 = vmul.f32 %v3299, %v3305
    %v3308 = vmul.f32 %v3300, %v3305
    %v3310 = vlaneseq
    %v3311 = vshrl.u32 %v3310, 7
    %v3312 = vsub.s32 0, %v3311
    %v3313 = vrot.slane %v3278, %v3312
    %v3315 = vadd.f32 %v3307, %v3313
    %v3316 = vadd.f32 %v3308, %v3313
    %v3318 = vrot.slane %v3316, 7
    %vm3320 = vcmask 1040384
    %v3321 = vsel %vm3320, %v3315, %v3318
    %v3322 = vpack.c.bf16 %v3321, %v3321
    %v3323 = vld [vmem:[%s20] sm:$0xf]
    %v3324 = vld [vmem:[%s20 + $0x4] sm:$0xf]
    %v3325 = vld [vmem:[%s20 + $0x8] sm:$0xf]
    %v3326 = vld [vmem:[%s20 + $0xc] sm:$0xf]
    %v3327 = vld [vmem:[%s20 + $0x10] sm:$0xf]
    %v3328 = vld [vmem:[%s20 + $0x14] sm:$0xf]
    %v3329 = vld [vmem:[%s20 + $0x18] sm:$0xf]
    %v3330 = vld [vmem:[%s20 + $0x1c] sm:$0xf]
    %v3331 = vld [vmem:[%s20 + $0x20] sm:$0xf]
    %v3332 = vld [vmem:[%s20 + $0x24] sm:$0xf]
    %v3333 = vld [vmem:[%s20 + $0x28] sm:$0xf]
    %v3334 = vld [vmem:[%s20 + $0x2c] sm:$0xf]
    %v3335 = vld [vmem:[%s20 + $0x30] sm:$0xf]
    %v3336 = vld [vmem:[%s20 + $0x34] sm:$0xf]
    %v3337 = vld [vmem:[%s20 + $0x38] sm:$0xf]
    %v3338 = vld [vmem:[%s20 + $0x3c] sm:$0xf]
    %v3339 = vld [vmem:[%s21] sm:$0x1]
    %v3341 = vlaneseq
    %v3342 = vshrl.u32 %v3341, 7
    %v3343 = vsub.s32 0, %v3342
    %v3344 = vrot.slane %v3339, %v3343
    %v3362 = vunpack.c.l.b16 %v3323
    %v3363 = vunpack.c.l.b16 %v3324
    %v3364 = vunpack.c.l.b16 %v3325
    %v3365 = vunpack.c.l.b16 %v3326
    %v3366 = vunpack.c.l.b16 %v3327
    %v3367 = vunpack.c.l.b16 %v3328
    %v3368 = vunpack.c.l.b16 %v3329
    %v3369 = vunpack.c.l.b16 %v3330
    %v3370 = vunpack.c.l.b16 %v3331
    %v3371 = vunpack.c.l.b16 %v3332
    %v3372 = vunpack.c.l.b16 %v3333
    %v3373 = vunpack.c.l.b16 %v3334
    %v3374 = vunpack.c.l.b16 %v3335
    %v3375 = vunpack.c.l.b16 %v3336
    %v3376 = vunpack.c.l.b16 %v3337
    %v3377 = vunpack.c.l.b16 %v3338
    %v3378 = vpack.c.b16 %v3363, %v3362
    %v3379 = vpack.c.b16 %v3365, %v3364
    %v3380 = vpack.c.b16 %v3367, %v3366
    %v3381 = vpack.c.b16 %v3369, %v3368
    %v3382 = vpack.c.b16 %v3371, %v3370
    %v3383 = vpack.c.b16 %v3373, %v3372
    %v3384 = vpack.c.b16 %v3375, %v3374
    %v3385 = vpack.c.b16 %v3377, %v3376
    %3394 = vmatprep.subr.bf16.mxu0 0
    %3395 = vmatpush1.bf16.msra.mxu0 %v3378
    %3396 = vmatprep.subr.bf16.mxu0 0
    %3397 = vmatpush1.bf16.msra.mxu0 %v3379
    %3398 = vmatprep.subr.bf16.mxu0 0
    %3399 = vmatpush1.bf16.msra.mxu0 %v3380
    %3400 = vmatprep.subr.bf16.mxu0 0
    %3401 = vmatpush1.bf16.msra.mxu0 %v3381
    %3402 = vmatprep.subr.bf16.mxu0 0
    %3403 = vmatpush1.bf16.msra.mxu0 %v3382
    %3404 = vmatprep.subr.bf16.mxu0 0
    %3405 = vmatpush1.bf16.msra.mxu0 %v3383
    %3406 = vmatprep.subr.bf16.mxu0 0
    %3407 = vmatpush1.bf16.msra.mxu0 %v3384
    %3408 = vmatprep.subr.bf16.mxu0 0
    %3409 = vmatpush1.bf16.msra.mxu0 %v3385
    %3410 = vmatprep.subr.bf16.mxu0 0
    %3411 = vmatpush1.bf16.msra.mxu0 0
    %3412 = vmatprep.subr.bf16.mxu0 0
    %3413 = vmatpush1.bf16.msra.mxu0 0
    %3414 = vmatprep.subr.bf16.mxu0 0
    %3415 = vmatpush1.bf16.msra.mxu0 0
    %3416 = vmatprep.subr.bf16.mxu0 0
    %3417 = vmatpush1.bf16.msra.mxu0 0
    %3418 = vmatprep.subr.bf16.mxu0 0
    %3419 = vmatpush1.bf16.msra.mxu0 0
    %3420 = vmatprep.subr.bf16.mxu0 0
    %3421 = vmatpush1.bf16.msra.mxu0 0
    %3422 = vmatprep.subr.bf16.mxu0 0
    %3423 = vmatpush1.bf16.msra.mxu0 0
    %3424 = vmatprep.subr.bf16.mxu0 0
    %3425 = vmatpush1.bf16.msra.mxu0 0
    %3426 = vmatprep.mubr.bf16.mxu0 0
    %3427 = vmatmul.mubr.bf16.gmra.mrb[0].mxu0 %v3322
    %v3428 = vpop.f32.mrb[0].mxu0
    %v3429 = vadd.f32 %v3344, %v3428
    %v3430 = vpop.f32.mrb[0].mxu0
    %v3431 = vpop.f32.mrb[0].mxu0
    %v3432 = vpop.f32.mrb[0].mxu0
    %3433 = vdwg.mxu0
    %v3434 = vtanh.pop %v3429
    %v3435 = vpack.c.bf16 %v3434, %v3434
    %v3436 = vld [vmem:[#allocation26] sm:$0xf]
    %v3437 = vld [vmem:[#allocation26 + $0x4] sm:$0xf]
    %v3438 = vld [vmem:[#allocation26 + $0x8] sm:$0xf]
    %v3439 = vld [vmem:[#allocation26 + $0xc] sm:$0xf]
    %v3440 = vld [vmem:[#allocation26 + $0x10] sm:$0xf]
    %v3441 = vld [vmem:[#allocation26 + $0x14] sm:$0xf]
    %v3442 = vld [vmem:[#allocation26 + $0x18] sm:$0xf]
    %v3443 = vld [vmem:[#allocation26 + $0x1c] sm:$0xf]
    %v3444 = vld [vmem:[#allocation26 + $0x20] sm:$0xf]
    %v3445 = vld [vmem:[#allocation26 + $0x24] sm:$0xf]
    %v3446 = vld [vmem:[#allocation26 + $0x28] sm:$0xf]
    %v3447 = vld [vmem:[#allocation26 + $0x2c] sm:$0xf]
    %v3448 = vld [vmem:[#allocation26 + $0x30] sm:$0xf]
    %v3449 = vld [vmem:[#allocation26 + $0x34] sm:$0xf]
    %v3450 = vld [vmem:[#allocation26 + $0x38] sm:$0xf]
    %v3451 = vld [vmem:[#allocation26 + $0x3c] sm:$0xf]
    %v3452 = vld [vmem:[%s23] sm:$0x1]
    %v3454 = vlaneseq
    %v3455 = vshrl.u32 %v3454, 7
    %v3456 = vsub.s32 0, %v3455
    %v3457 = vrot.slane %v3452, %v3456
    %v3475 = vunpack.c.l.b16 %v3436
    %v3476 = vunpack.c.l.b16 %v3437
    %v3477 = vunpack.c.l.b16 %v3438
    %v3478 = vunpack.c.l.b16 %v3439
    %v3479 = vunpack.c.l.b16 %v3440
    %v3480 = vunpack.c.l.b16 %v3441
    %v3481 = vunpack.c.l.b16 %v3442
    %v3482 = vunpack.c.l.b16 %v3443
    %v3483 = vunpack.c.l.b16 %v3444
    %v3484 = vunpack.c.l.b16 %v3445
    %v3485 = vunpack.c.l.b16 %v3446
    %v3486 = vunpack.c.l.b16 %v3447
    %v3487 = vunpack.c.l.b16 %v3448
    %v3488 = vunpack.c.l.b16 %v3449
    %v3489 = vunpack.c.l.b16 %v3450
    %v3490 = vunpack.c.l.b16 %v3451
    %v3491 = vpack.c.b16 %v3476, %v3475
    %v3492 = vpack.c.b16 %v3478, %v3477
    %v3493 = vpack.c.b16 %v3480, %v3479
    %v3494 = vpack.c.b16 %v3482, %v3481
    %v3495 = vpack.c.b16 %v3484, %v3483
    %v3496 = vpack.c.b16 %v3486, %v3485
    %v3497 = vpack.c.b16 %v3488, %v3487
    %v3498 = vpack.c.b16 %v3490, %v3489
    %3507 = vmatprep.subr.bf16.mxu0 0
    %3508 = vmatpush1.bf16.msra.mxu0 %v3491
    %3509 = vmatprep.subr.bf16.mxu0 0
    %3510 = vmatpush1.bf16.msra.mxu0 %v3492
    %3511 = vmatprep.subr.bf16.mxu0 0
    %3512 = vmatpush1.bf16.msra.mxu0 %v3493
    %3513 = vmatprep.subr.bf16.mxu0 0
    %3514 = vmatpush1.bf16.msra.mxu0 %v3494
    %3515 = vmatprep.subr.bf16.mxu0 0
    %3516 = vmatpush1.bf16.msra.mxu0 %v3495
    %3517 = vmatprep.subr.bf16.mxu0 0
    %3518 = vmatpush1.bf16.msra.mxu0 %v3496
    %3519 = vmatprep.subr.bf16.mxu0 0
    %3520 = vmatpush1.bf16.msra.mxu0 %v3497
    %3521 = vmatprep.subr.bf16.mxu0 0
    %3522 = vmatpush1.bf16.msra.mxu0 %v3498
    %3523 = vmatprep.subr.bf16.mxu0 0
    %3524 = vmatpush1.bf16.msra.mxu0 0
    %3525 = vmatprep.subr.bf16.mxu0 0
    %3526 = vmatpush1.bf16.msra.mxu0 0
    %3527 = vmatprep.subr.bf16.mxu0 0
    %3528 = vmatpush1.bf16.msra.mxu0 0
    %3529 = vmatprep.subr.bf16.mxu0 0
    %3530 = vmatpush1.bf16.msra.mxu0 0
    %3531 = vmatprep.subr.bf16.mxu0 0
    %3532 = vmatpush1.bf16.msra.mxu0 0
    %3533 = vmatprep.subr.bf16.mxu0 0
    %3534 = vmatpush1.bf16.msra.mxu0 0
    %3535 = vmatprep.subr.bf16.mxu0 0
    %3536 = vmatpush1.bf16.msra.mxu0 0
    %3537 = vmatprep.subr.bf16.mxu0 0
    %3538 = vmatpush1.bf16.msra.mxu0 0
    %3539 = vmatprep.mubr.bf16.mxu0 0
    %3540 = vmatmul.mubr.bf16.gmra.mrb[0].mxu0 %v3435
    %v3541 = vpop.f32.mrb[0].mxu0
    %v3542 = vadd.f32 %v3457, %v3541
    %v3543 = vpop.f32.mrb[0].mxu0
    %v3544 = vpop.f32.mrb[0].mxu0
    %v3545 = vpop.f32.mrb[0].mxu0
    %3546 = vdwg.mxu0
    %3547 = vst [vmem:[#allocation28] sm:$0x3] %v3542
    // Predicated region
    $region162: #{tpu_custom_call.1} parent=1 // pred_check
      _
    $region163: #{tpu_custom_call.1} parent=1 // pred_check_branch
      %3549 = sbr.rel (0) target = $region165
    $region164: #{tpu_custom_call.1} parent=1 // pred_region
      %s3551 = ssub.s32 32, 32
      %3552 = vsyncadd [#allocation4], %s3551
      %s3554 = sshll.u32 [#allocation28], 4
      %s3555 = int_to_ptr.vmem [resolvable:$true] %s3554
      %3557 = dma.vmem_to_hbm [thread:$0]  %s3555, 32, %s24, [#allocation4]
    $region165: #{tpu_custom_call.1} parent=1 // pred_fallthru
      _
    // Predicated region
    $region166: #{tpu_custom_call.1} parent=1 // pred_check
      _
    $region167: #{tpu_custom_call.1} parent=1 // pred_check_branch
      %3559 = sbr.rel (0) target = $region169
    $region168: #{tpu_custom_call.1} parent=1 // pred_region
      %3560 = dma.done [#allocation4], 32
    $region169: #{tpu_custom_call.1} parent=1 // pred_fallthru
      _
    %3561 = vsyncpa [#allocation3], 1
    %3562 = vsyncpa [#allocation6], 1
    %3563 = vsyncpa [#allocation9], 1
    %3564 = vsyncpa [#allocation12], 1
    %3565 = vsyncpa [#allocation15], 1
    %3566 = vsyncpa [#allocation18], 1
    %3567 = vsyncpa [#allocation21], 1
    %3568 = vsyncpa [#allocation24], 1
    %3569 = vsyncpa [#allocation27], 1
    %3570 = vsyncpa [#allocation4], 1

</llo_original>
